<compile_context>
chip_gen: v7x
topology: tpu7x:2x2x1
jax: 0.10.0
libtpu: 0.0.40
codegen_flags: <defaults>
</compile_context>

<pallas_src>
import math
from functools import partial

import jax
import jax.numpy as jnp
from jax.experimental import pallas as pl
from jax.experimental.pallas import tpu as pltpu


# ------------------------------------------------------------------ helpers ---

def _pick_tile(dim, prefs):
    """Largest preferred tile that evenly divides dim, else the full dim
    (a full-extent block is always layout-legal)."""
    for p in prefs:
        if p <= dim and dim % p == 0:
            return p
    return dim


_VMEM_LIMIT = 64 * 1024 * 1024   # <= physical VMEM on v5e/v6e (128 MiB) and v7x (64 MiB)


# ------------------------------------------------------------------ kernels ---

def _matmul_kernel(x_ref, w_ref, b_ref, o_ref, acc_ref, *, activation):
    @pl.when(pl.program_id(2) == 0)
    def _init():
        acc_ref[...] = jnp.zeros_like(acc_ref)

    acc_ref[...] += jnp.dot(x_ref[...], w_ref[...],
                            preferred_element_type=jnp.float32)

    @pl.when(pl.program_id(2) == pl.num_programs(2) - 1)
    def _fin():
        y = acc_ref[...] + b_ref[...]
        if activation == "relu":
            y = jnp.maximum(y, 0.0)
        o_ref[...] = y


def linear(x, w, b=None, activation="none"):
    """x: (M, K), w: (K, N) (already transposed vs torch), b: (N,) or None.
    bf16 operands, f32 accumulation, tiled (M, N, K) grid."""
    M, K = x.shape
    N = w.shape[1]
    if b is None:
        b = jnp.zeros((N,), jnp.float32)
    b2 = b.reshape(1, N).astype(jnp.float32)

    tm = _pick_tile(M, (256, 128, 64, 32, 16, 8))
    tn = _pick_tile(N, (256, 128))
    tk = _pick_tile(K, (512, 256, 128))
    grid = (M // tm, N // tn, K // tk)

    cost = pl.CostEstimate(flops=2 * M * N * K, transcendentals=0,
                           bytes_accessed=2 * (M * K + K * N) + 4 * (M * N + N))

    return pl.pallas_call(
        partial(_matmul_kernel, activation=activation),
        grid=grid,
        out_shape=jax.ShapeDtypeStruct((M, N), jnp.float32),
        in_specs=[
            pl.BlockSpec((tm, tk), lambda i, j, k: (i, k)),
            pl.BlockSpec((tk, tn), lambda i, j, k: (k, j)),
            pl.BlockSpec((1, tn), lambda i, j, k: (0, j)),
        ],
        out_specs=pl.BlockSpec((tm, tn), lambda i, j, k: (i, j)),
        scratch_shapes=[pltpu.VMEM((tm, tn), jnp.float32)],
        compiler_params=pltpu.CompilerParams(
            dimension_semantics=("parallel", "parallel", "arbitrary"),
            vmem_limit_bytes=_VMEM_LIMIT),
        cost_estimate=cost,
    )(x.astype(jnp.bfloat16), w.astype(jnp.bfloat16), b2)


def _ffn_kernel(x_ref, w1_ref, b1_ref, w2_ref, b2_ref, o_ref, acc_ref):
    @pl.when(pl.program_id(1) == 0)
    def _init():
        acc_ref[...] = jnp.zeros_like(acc_ref)

    # (tm, tf) ReLU intermediate never leaves VMEM
    h = jnp.dot(x_ref[...], w1_ref[...], preferred_element_type=jnp.float32)
    h = jnp.maximum(h + b1_ref[...], 0.0)
    acc_ref[...] += jnp.dot(h.astype(jnp.bfloat16), w2_ref[...],
                            preferred_element_type=jnp.float32)

    @pl.when(pl.program_id(1) == pl.num_programs(1) - 1)
    def _fin():
        o_ref[...] = acc_ref[...] + b2_ref[...]


def ffn(x, w1, b1, w2, b2):
    """Fused ReLU(x @ W1 + b1) @ W2 + b2, tiled over rows and ffn_dim."""
    M, D = x.shape
    F = w1.shape[1]
    tm = _pick_tile(M, (256, 128, 64, 32, 16, 8))
    tf = _pick_tile(F, (512, 256, 128))
    grid = (M // tm, F // tf)

    return pl.pallas_call(
        _ffn_kernel,
        grid=grid,
        out_shape=jax.ShapeDtypeStruct((M, D), jnp.float32),
        in_specs=[
            pl.BlockSpec((tm, D), lambda i, f: (i, 0)),
            pl.BlockSpec((D, tf), lambda i, f: (0, f)),
            pl.BlockSpec((1, tf), lambda i, f: (0, f)),
            pl.BlockSpec((tf, D), lambda i, f: (f, 0)),
            pl.BlockSpec((1, D), lambda i, f: (0, 0)),
        ],
        out_specs=pl.BlockSpec((tm, D), lambda i, f: (i, 0)),
        scratch_shapes=[pltpu.VMEM((tm, D), jnp.float32)],
        compiler_params=pltpu.CompilerParams(
            dimension_semantics=("parallel", "arbitrary"),
            vmem_limit_bytes=_VMEM_LIMIT),
        cost_estimate=pl.CostEstimate(
            flops=4 * M * D * F, transcendentals=0,
            bytes_accessed=2 * (M * D + 2 * D * F) + 4 * (M * D + F + D)),
    )(x.astype(jnp.bfloat16), w1.astype(jnp.bfloat16),
      b1.reshape(1, F).astype(jnp.float32),
      w2.astype(jnp.bfloat16), b2.reshape(1, D).astype(jnp.float32))


def _add_ln_kernel(x_ref, r_ref, g_ref, b_ref, o_ref, *, eps):
    x = x_ref[...] + r_ref[...]                      # fused residual add (f32)
    mean = jnp.mean(x, axis=-1, keepdims=True)
    var = jnp.mean(jnp.square(x - mean), axis=-1, keepdims=True)
    o_ref[...] = (x - mean) * jax.lax.rsqrt(var + eps) * g_ref[...] + b_ref[...]


def add_layernorm(x, r, g, b, eps=1e-5):
    """LayerNorm(x + r), row-tiled."""
    M, D = x.shape
    tm = _pick_tile(M, (512, 256, 128, 64, 32, 16, 8))
    return pl.pallas_call(
        partial(_add_ln_kernel, eps=eps),
        grid=(M // tm,),
        out_shape=jax.ShapeDtypeStruct((M, D), jnp.float32),
        in_specs=[
            pl.BlockSpec((tm, D), lambda i: (i, 0)),
            pl.BlockSpec((tm, D), lambda i: (i, 0)),
            pl.BlockSpec((1, D), lambda i: (0, 0)),
            pl.BlockSpec((1, D), lambda i: (0, 0)),
        ],
        out_specs=pl.BlockSpec((tm, D), lambda i: (i, 0)),
        compiler_params=pltpu.CompilerParams(dimension_semantics=("parallel",)),
    )(x, r, g.reshape(1, D), b.reshape(1, D))


def _attention_kernel(q_ref, k_ref, v_ref, m_ref, o_ref, *, scale):
    q = q_ref[...]                                   # (H, U, dh) bf16
    k = k_ref[...]
    v = v_ref[...]
    s = jnp.einsum("hqd,hkd->hqk", q, k,
                   preferred_element_type=jnp.float32) * scale       # f32 scores
    s = s + m_ref[...][None, :, :]                   # additive causal + key-pad mask (f32)
    s = s - jnp.max(s, axis=-1, keepdims=True)
    p = jnp.exp(s)
    p = p * pl.reciprocal(jnp.sum(p, axis=-1, keepdims=True), approx=True)
    o_ref[...] = jnp.einsum("hqk,hkd->hqd", p.astype(jnp.bfloat16), v,
                            preferred_element_type=jnp.float32)


def attention(q, k, v, mask, scale):
    """q/k/v: (N, H, U, dh); mask: (N, U, U) additive f32 mask (shared by all heads)."""
    N, H, U, dh = q.shape
    return pl.pallas_call(
        partial(_attention_kernel, scale=scale),
        grid=(N,),
        out_shape=jax.ShapeDtypeStruct((N, H, U, dh), jnp.float32),
        in_specs=[
            pl.BlockSpec((None, H, U, dh), lambda n: (n, 0, 0, 0)),
            pl.BlockSpec((None, H, U, dh), lambda n: (n, 0, 0, 0)),
            pl.BlockSpec((None, H, U, dh), lambda n: (n, 0, 0, 0)),
            pl.BlockSpec((None, U, U), lambda n: (n, 0, 0)),
        ],
        out_specs=pl.BlockSpec((None, H, U, dh), lambda n: (n, 0, 0, 0)),
        compiler_params=pltpu.CompilerParams(
            dimension_semantics=("parallel",),
            vmem_limit_bytes=_VMEM_LIMIT),
    )(q.astype(jnp.bfloat16), k.astype(jnp.bfloat16), v.astype(jnp.bfloat16), mask)


def _joint_kernel(e_ref, d_ref, w_ref, o_ref):
    e = e_ref[...]                                    # (tt, J) f32
    d = d_ref[...]                                    # (tu, J) f32
    h = jnp.tanh(e[:, None, :] + d[None, :, :])       # (tt, tu, J) f32
    o_ref[...] = jax.lax.dot_general(                 # (tt, tu, tv)
        h.astype(jnp.bfloat16), w_ref[...],
        (((2,), (0,)), ((), ())),
        preferred_element_type=jnp.float32)


def joint(enc_p, dec_p, w_out):
    """DecoderBase.pred hot path: N x Ti x (To+1) x V, tiled over (N, Ti, U, V)."""
    N, Ti, J = enc_p.shape
    U = dec_p.shape[1]
    V = w_out.shape[1]
    tt = _pick_tile(Ti, (64, 32, 16, 8))
    tu = _pick_tile(U, (64, 32, 16, 8))
    tv = _pick_tile(V, (256, 128))
    grid = (N, Ti // tt, U // tu, V // tv)

    cost = pl.CostEstimate(
        flops=2 * N * Ti * U * J * V + 2 * N * Ti * U * J,
        transcendentals=N * Ti * U * J,
        bytes_accessed=4 * (N * Ti * J + N * U * J) + 2 * J * V + 4 * N * Ti * U * V)

    return pl.pallas_call(
        _joint_kernel,
        grid=grid,
        out_shape=jax.ShapeDtypeStruct((N, Ti, U, V), jnp.float32),
        in_specs=[
            pl.BlockSpec((None, tt, J), lambda n, i, u, v: (n, i, 0)),
            pl.BlockSpec((None, tu, J), lambda n, i, u, v: (n, u, 0)),
            pl.BlockSpec((J, tv), lambda n, i, u, v: (0, v)),
        ],
        out_specs=pl.BlockSpec((None, tt, tu, tv), lambda n, i, u, v: (n, i, u, v)),
        compiler_params=pltpu.CompilerParams(
            dimension_semantics=("parallel", "parallel", "parallel", "parallel"),
            vmem_limit_bytes=_VMEM_LIMIT),
        cost_estimate=cost,
    )(enc_p, dec_p, w_out.astype(jnp.bfloat16))


# --------------------------------------------------------------------- glue ---

def sin_pos_enc(T, D):
    pos = jnp.arange(T, dtype=jnp.float32)[:, None]
    div = jnp.exp(jnp.arange(0, D, 2, dtype=jnp.float32) * (-math.log(10000.0) / D))
    pe = jnp.zeros((T, D), jnp.float32)
    pe = pe.at[:, 0::2].set(jnp.sin(pos * div))
    pe = pe.at[:, 1::2].set(jnp.cos(pos * div))
    return pe


def mha(x, lp, mask, nhead):
    N, U, D = x.shape
    dh = D // nhead
    qkv = linear(x.reshape(N * U, D), lp["in_w"], lp["in_b"])        # (N*U, 3D)
    qkv = qkv.reshape(N, U, 3, nhead, dh)
    q = jnp.transpose(qkv[:, :, 0], (0, 2, 1, 3))                    # (N, H, U, dh)
    k = jnp.transpose(qkv[:, :, 1], (0, 2, 1, 3))
    v = jnp.transpose(qkv[:, :, 2], (0, 2, 1, 3))
    o = attention(q, k, v, mask, 1.0 / math.sqrt(dh))                # (N, H, U, dh)
    o = jnp.transpose(o, (0, 2, 1, 3)).reshape(N * U, D)
    return linear(o, lp["out_w"], lp["out_b"]).reshape(N, U, D)


def encoder_layer(x, lp, mask, nhead):
    # Post-norm torch nn.TransformerEncoderLayer (ReLU FFN, eval mode)
    N, U, D = x.shape
    a = mha(x, lp, mask, nhead)
    x = add_layernorm(x.reshape(N * U, D), a.reshape(N * U, D),
                      lp["ln1_g"], lp["ln1_b"]).reshape(N, U, D)
    f = ffn(x.reshape(N * U, D), lp["ff1_w"], lp["ff1_b"], lp["ff2_w"], lp["ff2_b"])
    x = add_layernorm(x.reshape(N * U, D), f,
                      lp["ln2_g"], lp["ln2_b"]).reshape(N, U, D)
    return x


def torch_transformer_decoder_forward(params, enc_out, tgt_pad, tgt_len, *, nhead):
    """Mirrors TorchTransformerDecoder.forward (eval, dropout = identity)."""
    N, U = tgt_pad.shape
    D = params["embed"].shape[1]

    # vocab embedding + scaled absolute sinusoidal positional encoding
    x = params["embed"][tgt_pad].astype(jnp.float32)                 # (N, U, D)
    x = x * jnp.float32(math.sqrt(D)) + sin_pos_enc(U, D)[None]

    # prep_sub_mask (causal) + padding_mask(tgt_len) -> one additive (N, U, U) mask
    # (kept in f32; NOT repeated per head — indexed per batch inside attention()).
    pos = jnp.arange(U)
    causal = pos[None, :] > pos[:, None]                             # (U, U)
    if tgt_len is None:
        keypad = jnp.zeros((N, U), bool)
    else:
        keypad = pos[None, :] >= tgt_len[:, None]                    # (N, U)
    mask = jnp.where(causal[None, :, :] | keypad[:, None, :],
                     jnp.float32(-1e30), jnp.float32(0.0))           # (N, U, U)

    for lp in params["layers"]:
        x = encoder_layer(x, lp, mask, nhead)

    # joint network (DecoderBase.pred)
    Ti, E = enc_out.shape[1], enc_out.shape[2]
    J = params["enc_proj_w"].shape[1]
    e = linear(enc_out.reshape(N * Ti, E), params["enc_proj_w"]).reshape(N, Ti, J)
    d = linear(x.reshape(N * U, D), params["dec_proj_w"],
               params["dec_proj_b"]).reshape(N, U, J)
    return joint(e, d, params["out_w"])                              # (N, Ti, U, V)


def init_params(key, vocab_size, att_dim, jot_dim, enc_dim, ffn_dim, num_layers):
    ks = iter(jax.random.split(key, 8 + 8 * num_layers))

    def w(shape, scale=0.05):
        return jax.random.normal(next(ks), shape, jnp.float32) * scale

    params = {
        "embed": w((vocab_size, att_dim), 1.0),
        "enc_proj_w": w((enc_dim, jot_dim)),       # Linear(enc_dim, jot, bias=False)
        "dec_proj_w": w((att_dim, jot_dim)),       # Linear(att_dim, jot)
        "dec_proj_b": w((jot_dim,)),
        "out_w": w((jot_dim, vocab_size)),         # Linear(jot, vocab, bias=False)
        "layers": [],
    }
    for _ in range(num_layers):
        params["layers"].append({
            "in_w": w((att_dim, 3 * att_dim)), "in_b": w((3 * att_dim,)),
            "out_w": w((att_dim, att_dim)),    "out_b": w((att_dim,)),
            "ff1_w": w((att_dim, ffn_dim)),    "ff1_b": w((ffn_dim,)),
            "ff2_w": w((ffn_dim, att_dim)),    "ff2_b": w((att_dim,)),
            "ln1_g": jnp.ones((att_dim,), jnp.float32),
            "ln1_b": jnp.zeros((att_dim,), jnp.float32),
            "ln2_g": jnp.ones((att_dim,), jnp.float32),
            "ln2_b": jnp.zeros((att_dim,), jnp.float32),
        })
    return params


if __name__ == "__main__":
    vocab_size, att_dim, jot_dim, enc_dim = 16, 32, 32, 32
    nhead, ffn_dim, num_layers = 4, 64, 2
    N, Ti, U = 2, 6, 8                     # U = To + 1 (blank-padded)

    key = jax.random.PRNGKey(0)
    kp, ke, kt = jax.random.split(key, 3)
    params = init_params(kp, vocab_size, att_dim, jot_dim, enc_dim,
                         ffn_dim, num_layers)

    enc_out = jax.random.normal(ke, (N, Ti, enc_dim), jnp.float32)   # N x Ti x D
    tgt_pad = jax.random.randint(kt, (N, U), 0, vocab_size)          # N x To+1
    tgt_len = jnp.array([U, U - 3], dtype=jnp.int32)                 # N

    fwd = jax.jit(partial(torch_transformer_decoder_forward, nhead=nhead))
    out = fwd(params, enc_out, tgt_pad, tgt_len)
    out = jax.block_until_ready(out)

    assert out.shape == (N, Ti, U, vocab_size), out.shape
    assert bool(jnp.all(jnp.isfinite(out)))
    print("KERNEL_OK")
</pallas_src>

<mosaic_0001>
module attributes {stable_mosaic.version = 11 : i64} {
  func.func @_matmul_kernel(%arg0: i32, %arg1: i32, %arg2: i32, %arg3: memref<16x32xbf16, #tpu.memory_space<vmem>>, %arg4: memref<32x96xbf16, #tpu.memory_space<vmem>>, %arg5: memref<1x96xf32, #tpu.memory_space<vmem>>, %arg6: memref<16x96xf32, #tpu.memory_space<vmem>>, %arg7: memref<16x96xf32, #tpu.memory_space<vmem>>) attributes {dimension_semantics = [#tpu.dimension_semantics<parallel>, #tpu.dimension_semantics<parallel>, #tpu.dimension_semantics<arbitrary>], iteration_bounds = array<i64: 1, 1, 1>, scalar_prefetch = 0 : i64, scratch_operands = 1 : i64, tpu.core_type = #tpu.core_type<tc>, window_params = [{transform_indices = @transform_0, window_bounds = array<i64: 16, 32>}, {transform_indices = @transform_1, window_bounds = array<i64: 32, 96>}, {transform_indices = @transform_2, window_bounds = array<i64: 1, 96>}, {transform_indices = @transform_3, window_bounds = array<i64: 16, 96>}]} {
    %c0_i32 = arith.constant 0 : i32
    %0 = arith.cmpi eq, %arg2, %c0_i32 : i32
    %1 = arith.extui %0 : i1 to i32
    %c0_i32_0 = arith.constant 0 : i32
    %2 = arith.cmpi ne, %1, %c0_i32_0 : i32
    scf.if %2 {
      %cst_10 = arith.constant 0.000000e+00 : f32
      %12 = vector.broadcast %cst_10 : f32 to vector<16x96xf32>
      %c0_11 = arith.constant 0 : index
      %c0_12 = arith.constant 0 : index
      %13 = vector.load %arg7[%c0_11, %c0_12] : memref<16x96xf32, #tpu.memory_space<vmem>>, vector<16x96xf32>
      tpu.vector_store %arg7[%c0_11, %c0_12], %12 {strides = array<i32>} : memref<16x96xf32, #tpu.memory_space<vmem>>, vector<16x96xf32>,
    } else {
    }
    %c0 = arith.constant 0 : index
    %c0_1 = arith.constant 0 : index
    %3 = vector.load %arg7[%c0, %c0_1] : memref<16x96xf32, #tpu.memory_space<vmem>>, vector<16x96xf32>
    %c0_2 = arith.constant 0 : index
    %c0_3 = arith.constant 0 : index
    %4 = vector.load %arg3[%c0_2, %c0_3] : memref<16x32xbf16, #tpu.memory_space<vmem>>, vector<16x32xbf16>
    %c0_4 = arith.constant 0 : index
    %c0_5 = arith.constant 0 : index
    %5 = vector.load %arg4[%c0_4, %c0_5] : memref<32x96xbf16, #tpu.memory_space<vmem>>, vector<32x96xbf16>
    %cst = arith.constant dense<0.000000e+00> : vector<16x96xf32>
    %6 = tpu.matmul %4, %5, %cst {dimension_numbers = #tpu.dot_dimension_numbers<[1], [0], [0], [1], [0, 0, 1, 1], [], []>} : vector<16x32xbf16>, vector<32x96xbf16>, vector<16x96xf32> -> vector<16x96xf32>
    %7 = arith.addf %3, %6 : vector<16x96xf32>
    %c0_6 = arith.constant 0 : index
    %c0_7 = arith.constant 0 : index
    %8 = vector.load %arg7[%c0_6, %c0_7] : memref<16x96xf32, #tpu.memory_space<vmem>>, vector<16x96xf32>
    tpu.vector_store %arg7[%c0_6, %c0_7], %7 {strides = array<i32>} : memref<16x96xf32, #tpu.memory_space<vmem>>, vector<16x96xf32>,
    %c0_i32_8 = arith.constant 0 : i32
    %9 = arith.cmpi eq, %arg2, %c0_i32_8 : i32
    %10 = arith.extui %9 : i1 to i32
    %c0_i32_9 = arith.constant 0 : i32
    %11 = arith.cmpi ne, %10, %c0_i32_9 : i32
    scf.if %11 {
      %c0_10 = arith.constant 0 : index
      %c0_11 = arith.constant 0 : index
      %12 = vector.load %arg7[%c0_10, %c0_11] : memref<16x96xf32, #tpu.memory_space<vmem>>, vector<16x96xf32>
      %c0_12 = arith.constant 0 : index
      %c0_13 = arith.constant 0 : index
      %13 = vector.load %arg5[%c0_12, %c0_13] : memref<1x96xf32, #tpu.memory_space<vmem>>, vector<1x96xf32>
      %14 = vector.broadcast %13 : vector<1x96xf32> to vector<16x96xf32>
      %15 = arith.addf %12, %14 : vector<16x96xf32>
      %c0_14 = arith.constant 0 : index
      %c0_15 = arith.constant 0 : index
      %16 = vector.load %arg6[%c0_14, %c0_15] : memref<16x96xf32, #tpu.memory_space<vmem>>, vector<16x96xf32>
      tpu.vector_store %arg6[%c0_14, %c0_15], %15 {strides = array<i32>} : memref<16x96xf32, #tpu.memory_space<vmem>>, vector<16x96xf32>,
    } else {
    }
    return
  }
  func.func @transform_0(%arg0: i32, %arg1: i32, %arg2: i32) -> (i32, i32) {
    %c0_i32 = arith.constant 0 : i32
    return %arg0, %arg2 : i32, i32
  }
  func.func @transform_1(%arg0: i32, %arg1: i32, %arg2: i32) -> (i32, i32) {
    %c0_i32 = arith.constant 0 : i32
    return %arg2, %arg1 : i32, i32
  }
  func.func @transform_2(%arg0: i32, %arg1: i32, %arg2: i32) -> (i32, i32) {
    %c0_i32 = arith.constant 0 : i32
    %c0_i32_0 = arith.constant 0 : i32
    return %c0_i32, %arg1 : i32, i32
  }
  func.func @transform_3(%arg0: i32, %arg1: i32, %arg2: i32) -> (i32, i32) {
    %c0_i32 = arith.constant 0 : i32
    return %arg0, %arg1 : i32, i32
  }
}

module attributes {stable_mosaic.version = 11 : i64} {
  func.func @_attention_kernel(%arg0: i32, %arg1: memref<1x4x8x8xbf16, #tpu.memory_space<vmem>>, %arg2: memref<1x4x8x8xbf16, #tpu.memory_space<vmem>>, %arg3: memref<1x4x8x8xbf16, #tpu.memory_space<vmem>>, %arg4: memref<1x8x8xf32, #tpu.memory_space<vmem>>, %arg5: memref<1x4x8x8xf32, #tpu.memory_space<vmem>>) attributes {dimension_semantics = [#tpu.dimension_semantics<parallel>], iteration_bounds = array<i64: 2>, scalar_prefetch = 0 : i64, scratch_operands = 0 : i64, tpu.core_type = #tpu.core_type<tc>, window_params = [{transform_indices = @transform_0, window_bounds = array<i64: 1, 4, 8, 8>}, {transform_indices = @transform_1, window_bounds = array<i64: 1, 4, 8, 8>}, {transform_indices = @transform_2, window_bounds = array<i64: 1, 4, 8, 8>}, {transform_indices = @transform_3, window_bounds = array<i64: 1, 8, 8>}, {transform_indices = @transform_4, window_bounds = array<i64: 1, 4, 8, 8>}]} {
    %c0 = arith.constant 0 : index
    %c0_0 = arith.constant 0 : index
    %c0_1 = arith.constant 0 : index
    %c0_2 = arith.constant 0 : index
    %0 = vector.load %arg1[%c0, %c0_0, %c0_1, %c0_2] : memref<1x4x8x8xbf16, #tpu.memory_space<vmem>>, vector<1x4x8x8xbf16>
    %1 = vector.shape_cast %0 : vector<1x4x8x8xbf16> to vector<4x8x8xbf16>
    %c0_3 = arith.constant 0 : index
    %c0_4 = arith.constant 0 : index
    %c0_5 = arith.constant 0 : index
    %c0_6 = arith.constant 0 : index
    %2 = vector.load %arg2[%c0_3, %c0_4, %c0_5, %c0_6] : memref<1x4x8x8xbf16, #tpu.memory_space<vmem>>, vector<1x4x8x8xbf16>
    %3 = vector.shape_cast %2 : vector<1x4x8x8xbf16> to vector<4x8x8xbf16>
    %c0_7 = arith.constant 0 : index
    %c0_8 = arith.constant 0 : index
    %c0_9 = arith.constant 0 : index
    %c0_10 = arith.constant 0 : index
    %4 = vector.load %arg3[%c0_7, %c0_8, %c0_9, %c0_10] : memref<1x4x8x8xbf16, #tpu.memory_space<vmem>>, vector<1x4x8x8xbf16>
    %5 = vector.shape_cast %4 : vector<1x4x8x8xbf16> to vector<4x8x8xbf16>
    "tpu.trace_start"() <{level = 10 : i32, message = "hqd,hkd->hqk"}> : () -> ()
    %cst = arith.constant dense<0.000000e+00> : vector<4x8x8xf32>
    %6 = tpu.matmul %1, %3, %cst {dimension_numbers = #tpu.dot_dimension_numbers<[2], [2], [1], [1], [0, 0, 0, 1, 1, 1], [0], [0]>} : vector<4x8x8xbf16>, vector<4x8x8xbf16>, vector<4x8x8xf32> -> vector<4x8x8xf32>
    "tpu.trace_stop"() : () -> ()
    %cst_11 = arith.constant 0.353553385 : f32
    %7 = vector.broadcast %cst_11 : f32 to vector<4x8x8xf32>
    %8 = arith.mulf %6, %7 : vector<4x8x8xf32>
    %c0_12 = arith.constant 0 : index
    %c0_13 = arith.constant 0 : index
    %c0_14 = arith.constant 0 : index
    %9 = vector.load %arg4[%c0_12, %c0_13, %c0_14] : memref<1x8x8xf32, #tpu.memory_space<vmem>>, vector<1x8x8xf32>
    %10 = vector.shape_cast %9 : vector<1x8x8xf32> to vector<8x8xf32>
    %11 = vector.shape_cast %10 : vector<8x8xf32> to vector<1x8x8xf32>
    %12 = vector.broadcast %11 : vector<1x8x8xf32> to vector<4x8x8xf32>
    %13 = arith.addf %8, %12 : vector<4x8x8xf32>
    %cst_15 = arith.constant dense<0xFF800000> : vector<4x8xf32>
    %14 = vector.multi_reduction <maximumf>, %13, %cst_15 [2] : vector<4x8x8xf32> to vector<4x8xf32>
    %15 = vector.shape_cast %14 : vector<4x8xf32> to vector<4x8x1xf32>
    %16 = vector.broadcast %15 : vector<4x8x1xf32> to vector<4x8x8xf32>
    %17 = arith.subf %13, %16 : vector<4x8x8xf32>
    %18 = math.exp %17 : vector<4x8x8xf32>
    %cst_16 = arith.constant dense<0.000000e+00> : vector<4x8xf32>
    %19 = vector.multi_reduction <add>, %18, %cst_16 [2] : vector<4x8x8xf32> to vector<4x8xf32>
    %20 = vector.shape_cast %19 : vector<4x8xf32> to vector<4x8x1xf32>
    %21 = tpu.reciprocal %20 {approx = true} : vector<4x8x1xf32> -> vector<4x8x1xf32>
    %22 = vector.broadcast %21 : vector<4x8x1xf32> to vector<4x8x8xf32>
    %23 = arith.mulf %18, %22 : vector<4x8x8xf32>
    %24 = arith.truncf %23 : vector<4x8x8xf32> to vector<4x8x8xbf16>
    "tpu.trace_start"() <{level = 10 : i32, message = "hqk,hkd->hqd"}> : () -> ()
    %cst_17 = arith.constant dense<0.000000e+00> : vector<4x8x8xf32>
    %25 = tpu.matmul %24, %5, %cst_17 {dimension_numbers = #tpu.dot_dimension_numbers<[2], [1], [1], [2], [0, 0, 0, 1, 1, 2], [0], [0]>} : vector<4x8x8xbf16>, vector<4x8x8xbf16>, vector<4x8x8xf32> -> vector<4x8x8xf32>
    "tpu.trace_stop"() : () -> ()
    %c0_18 = arith.constant 0 : index
    %c0_19 = arith.constant 0 : index
    %c0_20 = arith.constant 0 : index
    %c0_21 = arith.constant 0 : index
    %26 = vector.load %arg5[%c0_18, %c0_19, %c0_20, %c0_21] : memref<1x4x8x8xf32, #tpu.memory_space<vmem>>, vector<1x4x8x8xf32>
    %27 = vector.shape_cast %26 : vector<1x4x8x8xf32> to vector<4x8x8xf32>
    %28 = vector.shape_cast %25 : vector<4x8x8xf32> to vector<1x4x8x8xf32>
    tpu.vector_store %arg5[%c0_18, %c0_19, %c0_20, %c0_21], %28 {strides = array<i32>} : memref<1x4x8x8xf32, #tpu.memory_space<vmem>>, vector<1x4x8x8xf32>,
    return
  }
  func.func @transform_0(%arg0: i32) -> (i32, i32, i32, i32) {
    %c0_i32 = arith.constant 0 : i32
    %c0_i32_0 = arith.constant 0 : i32
    %c0_i32_1 = arith.constant 0 : i32
    %c0_i32_2 = arith.constant 0 : i32
    return %arg0, %c0_i32, %c0_i32_0, %c0_i32_1 : i32, i32, i32, i32
  }
  func.func @transform_1(%arg0: i32) -> (i32, i32, i32, i32) {
    %c0_i32 = arith.constant 0 : i32
    %c0_i32_0 = arith.constant 0 : i32
    %c0_i32_1 = arith.constant 0 : i32
    %c0_i32_2 = arith.constant 0 : i32
    return %arg0, %c0_i32, %c0_i32_0, %c0_i32_1 : i32, i32, i32, i32
  }
  func.func @transform_2(%arg0: i32) -> (i32, i32, i32, i32) {
    %c0_i32 = arith.constant 0 : i32
    %c0_i32_0 = arith.constant 0 : i32
    %c0_i32_1 = arith.constant 0 : i32
    %c0_i32_2 = arith.constant 0 : i32
    return %arg0, %c0_i32, %c0_i32_0, %c0_i32_1 : i32, i32, i32, i32
  }
  func.func @transform_3(%arg0: i32) -> (i32, i32, i32) {
    %c0_i32 = arith.constant 0 : i32
    %c0_i32_0 = arith.constant 0 : i32
    %c0_i32_1 = arith.constant 0 : i32
    return %arg0, %c0_i32, %c0_i32_0 : i32, i32, i32
  }
  func.func @transform_4(%arg0: i32) -> (i32, i32, i32, i32) {
    %c0_i32 = arith.constant 0 : i32
    %c0_i32_0 = arith.constant 0 : i32
    %c0_i32_1 = arith.constant 0 : i32
    %c0_i32_2 = arith.constant 0 : i32
    return %arg0, %c0_i32, %c0_i32_0, %c0_i32_1 : i32, i32, i32, i32
  }
}

module attributes {stable_mosaic.version = 11 : i64} {
  func.func @_add_ln_kernel(%arg0: i32, %arg1: memref<16x32xf32, #tpu.memory_space<vmem>>, %arg2: memref<16x32xf32, #tpu.memory_space<vmem>>, %arg3: memref<1x32xf32, #tpu.memory_space<vmem>>, %arg4: memref<1x32xf32, #tpu.memory_space<vmem>>, %arg5: memref<16x32xf32, #tpu.memory_space<vmem>>) attributes {dimension_semantics = [#tpu.dimension_semantics<parallel>], iteration_bounds = array<i64: 1>, scalar_prefetch = 0 : i64, scratch_operands = 0 : i64, tpu.core_type = #tpu.core_type<tc>, window_params = [{transform_indices = @transform_0, window_bounds = array<i64: 16, 32>}, {transform_indices = @transform_1, window_bounds = array<i64: 16, 32>}, {pipeline_mode = #tpu.pipeline_mode<synchronous>, transform_indices = @transform_2, window_bounds = array<i64: 1, 32>}, {pipeline_mode = #tpu.pipeline_mode<synchronous>, transform_indices = @transform_3, window_bounds = array<i64: 1, 32>}, {transform_indices = @transform_4, window_bounds = array<i64: 16, 32>}]} {
    %c0 = arith.constant 0 : index
    %c0_0 = arith.constant 0 : index
    %0 = vector.load %arg1[%c0, %c0_0] : memref<16x32xf32, #tpu.memory_space<vmem>>, vector<16x32xf32>
    %c0_1 = arith.constant 0 : index
    %c0_2 = arith.constant 0 : index
    %1 = vector.load %arg2[%c0_1, %c0_2] : memref<16x32xf32, #tpu.memory_space<vmem>>, vector<16x32xf32>
    %2 = arith.addf %0, %1 : vector<16x32xf32>
    %cst = arith.constant dense<0.000000e+00> : vector<16xf32>
    %3 = vector.multi_reduction <add>, %2, %cst [1] : vector<16x32xf32> to vector<16xf32>
    %4 = vector.shape_cast %3 : vector<16xf32> to vector<16x1xf32>
    %cst_3 = arith.constant 3.200000e+01 : f32
    %5 = vector.broadcast %cst_3 : f32 to vector<16x1xf32>
    %6 = arith.divf %4, %5 : vector<16x1xf32>
    %7 = vector.broadcast %6 : vector<16x1xf32> to vector<16x32xf32>
    %8 = arith.subf %2, %7 : vector<16x32xf32>
    %9 = arith.mulf %8, %8 : vector<16x32xf32>
    %cst_4 = arith.constant dense<0.000000e+00> : vector<16xf32>
    %10 = vector.multi_reduction <add>, %9, %cst_4 [1] : vector<16x32xf32> to vector<16xf32>
    %11 = vector.shape_cast %10 : vector<16xf32> to vector<16x1xf32>
    %cst_5 = arith.constant 3.200000e+01 : f32
    %12 = vector.broadcast %cst_5 : f32 to vector<16x1xf32>
    %13 = arith.divf %11, %12 : vector<16x1xf32>
    %14 = vector.broadcast %6 : vector<16x1xf32> to vector<16x32xf32>
    %15 = arith.subf %2, %14 : vector<16x32xf32>
    %cst_6 = arith.constant 9.99999974E-6 : f32
    %16 = vector.broadcast %cst_6 : f32 to vector<16x1xf32>
    %17 = arith.addf %13, %16 : vector<16x1xf32>
    %18 = math.rsqrt %17 : vector<16x1xf32>
    %19 = vector.broadcast %18 : vector<16x1xf32> to vector<16x32xf32>
    %20 = arith.mulf %15, %19 : vector<16x32xf32>
    %c0_7 = arith.constant 0 : index
    %c0_8 = arith.constant 0 : index
    %21 = vector.load %arg3[%c0_7, %c0_8] : memref<1x32xf32, #tpu.memory_space<vmem>>, vector<1x32xf32>
    %22 = vector.broadcast %21 : vector<1x32xf32> to vector<16x32xf32>
    %23 = arith.mulf %20, %22 : vector<16x32xf32>
    %c0_9 = arith.constant 0 : index
    %c0_10 = arith.constant 0 : index
    %24 = vector.load %arg4[%c0_9, %c0_10] : memref<1x32xf32, #tpu.memory_space<vmem>>, vector<1x32xf32>
    %25 = vector.broadcast %24 : vector<1x32xf32> to vector<16x32xf32>
    %26 = arith.addf %23, %25 : vector<16x32xf32>
    %c0_11 = arith.constant 0 : index
    %c0_12 = arith.constant 0 : index
    %27 = vector.load %arg5[%c0_11, %c0_12] : memref<16x32xf32, #tpu.memory_space<vmem>>, vector<16x32xf32>
    tpu.vector_store %arg5[%c0_11, %c0_12], %26 {strides = array<i32>} : memref<16x32xf32, #tpu.memory_space<vmem>>, vector<16x32xf32>,
    return
  }
  func.func @transform_0(%arg0: i32) -> (i32, i32) {
    %c0_i32 = arith.constant 0 : i32
    %c0_i32_0 = arith.constant 0 : i32
    return %arg0, %c0_i32 : i32, i32
  }
  func.func @transform_1(%arg0: i32) -> (i32, i32) {
    %c0_i32 = arith.constant 0 : i32
    %c0_i32_0 = arith.constant 0 : i32
    return %arg0, %c0_i32 : i32, i32
  }
  func.func @transform_2(%arg0: i32) -> (i32, i32) {
    %c0_i32 = arith.constant 0 : i32
    %c0_i32_0 = arith.constant 0 : i32
    %c0_i32_1 = arith.constant 0 : i32
    return %c0_i32, %c0_i32_0 : i32, i32
  }
  func.func @transform_3(%arg0: i32) -> (i32, i32) {
    %c0_i32 = arith.constant 0 : i32
    %c0_i32_0 = arith.constant 0 : i32
    %c0_i32_1 = arith.constant 0 : i32
    return %c0_i32, %c0_i32_0 : i32, i32
  }
  func.func @transform_4(%arg0: i32) -> (i32, i32) {
    %c0_i32 = arith.constant 0 : i32
    %c0_i32_0 = arith.constant 0 : i32
    return %arg0, %c0_i32 : i32, i32
  }
}

module attributes {stable_mosaic.version = 11 : i64} {
  func.func @_matmul_kernel(%arg0: i32, %arg1: i32, %arg2: i32, %arg3: memref<16x32xbf16, #tpu.memory_space<vmem>>, %arg4: memref<32x32xbf16, #tpu.memory_space<vmem>>, %arg5: memref<1x32xf32, #tpu.memory_space<vmem>>, %arg6: memref<16x32xf32, #tpu.memory_space<vmem>>, %arg7: memref<16x32xf32, #tpu.memory_space<vmem>>) attributes {dimension_semantics = [#tpu.dimension_semantics<parallel>, #tpu.dimension_semantics<parallel>, #tpu.dimension_semantics<arbitrary>], iteration_bounds = array<i64: 1, 1, 1>, scalar_prefetch = 0 : i64, scratch_operands = 1 : i64, tpu.core_type = #tpu.core_type<tc>, window_params = [{transform_indices = @transform_0, window_bounds = array<i64: 16, 32>}, {transform_indices = @transform_1, window_bounds = array<i64: 32, 32>}, {transform_indices = @transform_2, window_bounds = array<i64: 1, 32>}, {transform_indices = @transform_3, window_bounds = array<i64: 16, 32>}]} {
    %c0_i32 = arith.constant 0 : i32
    %0 = arith.cmpi eq, %arg2, %c0_i32 : i32
    %1 = arith.extui %0 : i1 to i32
    %c0_i32_0 = arith.constant 0 : i32
    %2 = arith.cmpi ne, %1, %c0_i32_0 : i32
    scf.if %2 {
      %cst_10 = arith.constant 0.000000e+00 : f32
      %12 = vector.broadcast %cst_10 : f32 to vector<16x32xf32>
      %c0_11 = arith.constant 0 : index
      %c0_12 = arith.constant 0 : index
      %13 = vector.load %arg7[%c0_11, %c0_12] : memref<16x32xf32, #tpu.memory_space<vmem>>, vector<16x32xf32>
      tpu.vector_store %arg7[%c0_11, %c0_12], %12 {strides = array<i32>} : memref<16x32xf32, #tpu.memory_space<vmem>>, vector<16x32xf32>,
    } else {
    }
    %c0 = arith.constant 0 : index
    %c0_1 = arith.constant 0 : index
    %3 = vector.load %arg7[%c0, %c0_1] : memref<16x32xf32, #tpu.memory_space<vmem>>, vector<16x32xf32>
    %c0_2 = arith.constant 0 : index
    %c0_3 = arith.constant 0 : index
    %4 = vector.load %arg3[%c0_2, %c0_3] : memref<16x32xbf16, #tpu.memory_space<vmem>>, vector<16x32xbf16>
    %c0_4 = arith.constant 0 : index
    %c0_5 = arith.constant 0 : index
    %5 = vector.load %arg4[%c0_4, %c0_5] : memref<32x32xbf16, #tpu.memory_space<vmem>>, vector<32x32xbf16>
    %cst = arith.constant dense<0.000000e+00> : vector<16x32xf32>
    %6 = tpu.matmul %4, %5, %cst {dimension_numbers = #tpu.dot_dimension_numbers<[1], [0], [0], [1], [0, 0, 1, 1], [], []>} : vector<16x32xbf16>, vector<32x32xbf16>, vector<16x32xf32> -> vector<16x32xf32>
    %7 = arith.addf %3, %6 : vector<16x32xf32>
    %c0_6 = arith.constant 0 : index
    %c0_7 = arith.constant 0 : index
    %8 = vector.load %arg7[%c0_6, %c0_7] : memref<16x32xf32, #tpu.memory_space<vmem>>, vector<16x32xf32>
    tpu.vector_store %arg7[%c0_6, %c0_7], %7 {strides = array<i32>} : memref<16x32xf32, #tpu.memory_space<vmem>>, vector<16x32xf32>,
    %c0_i32_8 = arith.constant 0 : i32
    %9 = arith.cmpi eq, %arg2, %c0_i32_8 : i32
    %10 = arith.extui %9 : i1 to i32
    %c0_i32_9 = arith.constant 0 : i32
    %11 = arith.cmpi ne, %10, %c0_i32_9 : i32
    scf.if %11 {
      %c0_10 = arith.constant 0 : index
      %c0_11 = arith.constant 0 : index
      %12 = vector.load %arg7[%c0_10, %c0_11] : memref<16x32xf32, #tpu.memory_space<vmem>>, vector<16x32xf32>
      %c0_12 = arith.constant 0 : index
      %c0_13 = arith.constant 0 : index
      %13 = vector.load %arg5[%c0_12, %c0_13] : memref<1x32xf32, #tpu.memory_space<vmem>>, vector<1x32xf32>
      %14 = vector.broadcast %13 : vector<1x32xf32> to vector<16x32xf32>
      %15 = arith.addf %12, %14 : vector<16x32xf32>
      %c0_14 = arith.constant 0 : index
      %c0_15 = arith.constant 0 : index
      %16 = vector.load %arg6[%c0_14, %c0_15] : memref<16x32xf32, #tpu.memory_space<vmem>>, vector<16x32xf32>
      tpu.vector_store %arg6[%c0_14, %c0_15], %15 {strides = array<i32>} : memref<16x32xf32, #tpu.memory_space<vmem>>, vector<16x32xf32>,
    } else {
    }
    return
  }
  func.func @transform_0(%arg0: i32, %arg1: i32, %arg2: i32) -> (i32, i32) {
    %c0_i32 = arith.constant 0 : i32
    return %arg0, %arg2 : i32, i32
  }
  func.func @transform_1(%arg0: i32, %arg1: i32, %arg2: i32) -> (i32, i32) {
    %c0_i32 = arith.constant 0 : i32
    return %arg2, %arg1 : i32, i32
  }
  func.func @transform_2(%arg0: i32, %arg1: i32, %arg2: i32) -> (i32, i32) {
    %c0_i32 = arith.constant 0 : i32
    %c0_i32_0 = arith.constant 0 : i32
    return %c0_i32, %arg1 : i32, i32
  }
  func.func @transform_3(%arg0: i32, %arg1: i32, %arg2: i32) -> (i32, i32) {
    %c0_i32 = arith.constant 0 : i32
    return %arg0, %arg1 : i32, i32
  }
}

module attributes {stable_mosaic.version = 11 : i64} {
  func.func @_ffn_kernel(%arg0: i32, %arg1: i32, %arg2: memref<16x32xbf16, #tpu.memory_space<vmem>>, %arg3: memref<32x64xbf16, #tpu.memory_space<vmem>>, %arg4: memref<1x64xf32, #tpu.memory_space<vmem>>, %arg5: memref<64x32xbf16, #tpu.memory_space<vmem>>, %arg6: memref<1x32xf32, #tpu.memory_space<vmem>>, %arg7: memref<16x32xf32, #tpu.memory_space<vmem>>, %arg8: memref<16x32xf32, #tpu.memory_space<vmem>>) attributes {dimension_semantics = [#tpu.dimension_semantics<parallel>, #tpu.dimension_semantics<arbitrary>], iteration_bounds = array<i64: 1, 1>, scalar_prefetch = 0 : i64, scratch_operands = 1 : i64, tpu.core_type = #tpu.core_type<tc>, window_params = [{transform_indices = @transform_0, window_bounds = array<i64: 16, 32>}, {transform_indices = @transform_1, window_bounds = array<i64: 32, 64>}, {transform_indices = @transform_2, window_bounds = array<i64: 1, 64>}, {transform_indices = @transform_3, window_bounds = array<i64: 64, 32>}, {pipeline_mode = #tpu.pipeline_mode<synchronous>, transform_indices = @transform_4, window_bounds = array<i64: 1, 32>}, {transform_indices = @transform_5, window_bounds = array<i64: 16, 32>}]} {
    %c0_i32 = arith.constant 0 : i32
    %0 = arith.cmpi eq, %arg1, %c0_i32 : i32
    %1 = arith.extui %0 : i1 to i32
    %c0_i32_0 = arith.constant 0 : i32
    %2 = arith.cmpi ne, %1, %c0_i32_0 : i32
    scf.if %2 {
      %cst_16 = arith.constant 0.000000e+00 : f32
      %20 = vector.broadcast %cst_16 : f32 to vector<16x32xf32>
      %c0_17 = arith.constant 0 : index
      %c0_18 = arith.constant 0 : index
      %21 = vector.load %arg8[%c0_17, %c0_18] : memref<16x32xf32, #tpu.memory_space<vmem>>, vector<16x32xf32>
      tpu.vector_store %arg8[%c0_17, %c0_18], %20 {strides = array<i32>} : memref<16x32xf32, #tpu.memory_space<vmem>>, vector<16x32xf32>,
    } else {
    }
    %c0 = arith.constant 0 : index
    %c0_1 = arith.constant 0 : index
    %3 = vector.load %arg2[%c0, %c0_1] : memref<16x32xbf16, #tpu.memory_space<vmem>>, vector<16x32xbf16>
    %c0_2 = arith.constant 0 : index
    %c0_3 = arith.constant 0 : index
    %4 = vector.load %arg3[%c0_2, %c0_3] : memref<32x64xbf16, #tpu.memory_space<vmem>>, vector<32x64xbf16>
    %cst = arith.constant dense<0.000000e+00> : vector<16x64xf32>
    %5 = tpu.matmul %3, %4, %cst {dimension_numbers = #tpu.dot_dimension_numbers<[1], [0], [0], [1], [0, 0, 1, 1], [], []>} : vector<16x32xbf16>, vector<32x64xbf16>, vector<16x64xf32> -> vector<16x64xf32>
    %c0_4 = arith.constant 0 : index
    %c0_5 = arith.constant 0 : index
    %6 = vector.load %arg4[%c0_4, %c0_5] : memref<1x64xf32, #tpu.memory_space<vmem>>, vector<1x64xf32>
    %7 = vector.broadcast %6 : vector<1x64xf32> to vector<16x64xf32>
    %8 = arith.addf %5, %7 : vector<16x64xf32>
    %cst_6 = arith.constant 0.000000e+00 : f32
    %9 = vector.broadcast %cst_6 : f32 to vector<16x64xf32>
    %10 = arith.maximumf %8, %9 : vector<16x64xf32>
    %c0_7 = arith.constant 0 : index
    %c0_8 = arith.constant 0 : index
    %11 = vector.load %arg8[%c0_7, %c0_8] : memref<16x32xf32, #tpu.memory_space<vmem>>, vector<16x32xf32>
    %12 = arith.truncf %10 : vector<16x64xf32> to vector<16x64xbf16>
    %c0_9 = arith.constant 0 : index
    %c0_10 = arith.constant 0 : index
    %13 = vector.load %arg5[%c0_9, %c0_10] : memref<64x32xbf16, #tpu.memory_space<vmem>>, vector<64x32xbf16>
    %cst_11 = arith.constant dense<0.000000e+00> : vector<16x32xf32>
    %14 = tpu.matmul %12, %13, %cst_11 {dimension_numbers = #tpu.dot_dimension_numbers<[1], [0], [0], [1], [0, 0, 1, 1], [], []>} : vector<16x64xbf16>, vector<64x32xbf16>, vector<16x32xf32> -> vector<16x32xf32>
    %15 = arith.addf %11, %14 : vector<16x32xf32>
    %c0_12 = arith.constant 0 : index
    %c0_13 = arith.constant 0 : index
    %16 = vector.load %arg8[%c0_12, %c0_13] : memref<16x32xf32, #tpu.memory_space<vmem>>, vector<16x32xf32>
    tpu.vector_store %arg8[%c0_12, %c0_13], %15 {strides = array<i32>} : memref<16x32xf32, #tpu.memory_space<vmem>>, vector<16x32xf32>,
    %c0_i32_14 = arith.constant 0 : i32
    %17 = arith.cmpi eq, %arg1, %c0_i32_14 : i32
    %18 = arith.extui %17 : i1 to i32
    %c0_i32_15 = arith.constant 0 : i32
    %19 = arith.cmpi ne, %18, %c0_i32_15 : i32
    scf.if %19 {
      %c0_16 = arith.constant 0 : index
      %c0_17 = arith.constant 0 : index
      %20 = vector.load %arg8[%c0_16, %c0_17] : memref<16x32xf32, #tpu.memory_space<vmem>>, vector<16x32xf32>
      %c0_18 = arith.constant 0 : index
      %c0_19 = arith.constant 0 : index
      %21 = vector.load %arg6[%c0_18, %c0_19] : memref<1x32xf32, #tpu.memory_space<vmem>>, vector<1x32xf32>
      %22 = vector.broadcast %21 : vector<1x32xf32> to vector<16x32xf32>
      %23 = arith.addf %20, %22 : vector<16x32xf32>
      %c0_20 = arith.constant 0 : index
      %c0_21 = arith.constant 0 : index
      %24 = vector.load %arg7[%c0_20, %c0_21] : memref<16x32xf32, #tpu.memory_space<vmem>>, vector<16x32xf32>
      tpu.vector_store %arg7[%c0_20, %c0_21], %23 {strides = array<i32>} : memref<16x32xf32, #tpu.memory_space<vmem>>, vector<16x32xf32>,
    } else {
    }
    return
  }
  func.func @transform_0(%arg0: i32, %arg1: i32) -> (i32, i32) {
    %c0_i32 = arith.constant 0 : i32
    %c0_i32_0 = arith.constant 0 : i32
    return %arg0, %c0_i32 : i32, i32
  }
  func.func @transform_1(%arg0: i32, %arg1: i32) -> (i32, i32) {
    %c0_i32 = arith.constant 0 : i32
    %c0_i32_0 = arith.constant 0 : i32
    return %c0_i32, %arg1 : i32, i32
  }
  func.func @transform_2(%arg0: i32, %arg1: i32) -> (i32, i32) {
    %c0_i32 = arith.constant 0 : i32
    %c0_i32_0 = arith.constant 0 : i32
    return %c0_i32, %arg1 : i32, i32
  }
  func.func @transform_3(%arg0: i32, %arg1: i32) -> (i32, i32) {
    %c0_i32 = arith.constant 0 : i32
    %c0_i32_0 = arith.constant 0 : i32
    return %arg1, %c0_i32 : i32, i32
  }
  func.func @transform_4(%arg0: i32, %arg1: i32) -> (i32, i32) {
    %c0_i32 = arith.constant 0 : i32
    %c0_i32_0 = arith.constant 0 : i32
    %c0_i32_1 = arith.constant 0 : i32
    return %c0_i32, %c0_i32_0 : i32, i32
  }
  func.func @transform_5(%arg0: i32, %arg1: i32) -> (i32, i32) {
    %c0_i32 = arith.constant 0 : i32
    %c0_i32_0 = arith.constant 0 : i32
    return %arg0, %c0_i32 : i32, i32
  }
}

module attributes {stable_mosaic.version = 11 : i64} {
  func.func @_matmul_kernel(%arg0: i32, %arg1: i32, %arg2: i32, %arg3: memref<12x32xbf16, #tpu.memory_space<vmem>>, %arg4: memref<32x32xbf16, #tpu.memory_space<vmem>>, %arg5: memref<1x32xf32, #tpu.memory_space<vmem>>, %arg6: memref<12x32xf32, #tpu.memory_space<vmem>>, %arg7: memref<12x32xf32, #tpu.memory_space<vmem>>) attributes {dimension_semantics = [#tpu.dimension_semantics<parallel>, #tpu.dimension_semantics<parallel>, #tpu.dimension_semantics<arbitrary>], iteration_bounds = array<i64: 1, 1, 1>, scalar_prefetch = 0 : i64, scratch_operands = 1 : i64, tpu.core_type = #tpu.core_type<tc>, window_params = [{transform_indices = @transform_0, window_bounds = array<i64: 12, 32>}, {transform_indices = @transform_1, window_bounds = array<i64: 32, 32>}, {transform_indices = @transform_2, window_bounds = array<i64: 1, 32>}, {transform_indices = @transform_3, window_bounds = array<i64: 12, 32>}]} {
    %c0_i32 = arith.constant 0 : i32
    %0 = arith.cmpi eq, %arg2, %c0_i32 : i32
    %1 = arith.extui %0 : i1 to i32
    %c0_i32_0 = arith.constant 0 : i32
    %2 = arith.cmpi ne, %1, %c0_i32_0 : i32
    scf.if %2 {
      %cst_10 = arith.constant 0.000000e+00 : f32
      %12 = vector.broadcast %cst_10 : f32 to vector<12x32xf32>
      %c0_11 = arith.constant 0 : index
      %c0_12 = arith.constant 0 : index
      %13 = vector.load %arg7[%c0_11, %c0_12] : memref<12x32xf32, #tpu.memory_space<vmem>>, vector<12x32xf32>
      tpu.vector_store %arg7[%c0_11, %c0_12], %12 {strides = array<i32>} : memref<12x32xf32, #tpu.memory_space<vmem>>, vector<12x32xf32>,
    } else {
    }
    %c0 = arith.constant 0 : index
    %c0_1 = arith.constant 0 : index
    %3 = vector.load %arg7[%c0, %c0_1] : memref<12x32xf32, #tpu.memory_space<vmem>>, vector<12x32xf32>
    %c0_2 = arith.constant 0 : index
    %c0_3 = arith.constant 0 : index
    %4 = vector.load %arg3[%c0_2, %c0_3] : memref<12x32xbf16, #tpu.memory_space<vmem>>, vector<12x32xbf16>
    %c0_4 = arith.constant 0 : index
    %c0_5 = arith.constant 0 : index
    %5 = vector.load %arg4[%c0_4, %c0_5] : memref<32x32xbf16, #tpu.memory_space<vmem>>, vector<32x32xbf16>
    %cst = arith.constant dense<0.000000e+00> : vector<12x32xf32>
    %6 = tpu.matmul %4, %5, %cst {dimension_numbers = #tpu.dot_dimension_numbers<[1], [0], [0], [1], [0, 0, 1, 1], [], []>} : vector<12x32xbf16>, vector<32x32xbf16>, vector<12x32xf32> -> vector<12x32xf32>
    %7 = arith.addf %3, %6 : vector<12x32xf32>
    %c0_6 = arith.constant 0 : index
    %c0_7 = arith.constant 0 : index
    %8 = vector.load %arg7[%c0_6, %c0_7] : memref<12x32xf32, #tpu.memory_space<vmem>>, vector<12x32xf32>
    tpu.vector_store %arg7[%c0_6, %c0_7], %7 {strides = array<i32>} : memref<12x32xf32, #tpu.memory_space<vmem>>, vector<12x32xf32>,
    %c0_i32_8 = arith.constant 0 : i32
    %9 = arith.cmpi eq, %arg2, %c0_i32_8 : i32
    %10 = arith.extui %9 : i1 to i32
    %c0_i32_9 = arith.constant 0 : i32
    %11 = arith.cmpi ne, %10, %c0_i32_9 : i32
    scf.if %11 {
      %c0_10 = arith.constant 0 : index
      %c0_11 = arith.constant 0 : index
      %12 = vector.load %arg7[%c0_10, %c0_11] : memref<12x32xf32, #tpu.memory_space<vmem>>, vector<12x32xf32>
      %c0_12 = arith.constant 0 : index
      %c0_13 = arith.constant 0 : index
      %13 = vector.load %arg5[%c0_12, %c0_13] : memref<1x32xf32, #tpu.memory_space<vmem>>, vector<1x32xf32>
      %14 = vector.broadcast %13 : vector<1x32xf32> to vector<12x32xf32>
      %15 = arith.addf %12, %14 : vector<12x32xf32>
      %c0_14 = arith.constant 0 : index
      %c0_15 = arith.constant 0 : index
      %16 = vector.load %arg6[%c0_14, %c0_15] : memref<12x32xf32, #tpu.memory_space<vmem>>, vector<12x32xf32>
      tpu.vector_store %arg6[%c0_14, %c0_15], %15 {strides = array<i32>} : memref<12x32xf32, #tpu.memory_space<vmem>>, vector<12x32xf32>,
    } else {
    }
    return
  }
  func.func @transform_0(%arg0: i32, %arg1: i32, %arg2: i32) -> (i32, i32) {
    %c0_i32 = arith.constant 0 : i32
    return %arg0, %arg2 : i32, i32
  }
  func.func @transform_1(%arg0: i32, %arg1: i32, %arg2: i32) -> (i32, i32) {
    %c0_i32 = arith.constant 0 : i32
    return %arg2, %arg1 : i32, i32
  }
  func.func @transform_2(%arg0: i32, %arg1: i32, %arg2: i32) -> (i32, i32) {
    %c0_i32 = arith.constant 0 : i32
    %c0_i32_0 = arith.constant 0 : i32
    return %c0_i32, %arg1 : i32, i32
  }
  func.func @transform_3(%arg0: i32, %arg1: i32, %arg2: i32) -> (i32, i32) {
    %c0_i32 = arith.constant 0 : i32
    return %arg0, %arg1 : i32, i32
  }
}

module attributes {stable_mosaic.version = 11 : i64} {
  func.func @_joint_kernel(%arg0: i32, %arg1: i32, %arg2: i32, %arg3: i32, %arg4: memref<1x6x32xf32, #tpu.memory_space<vmem>>, %arg5: memref<1x8x32xf32, #tpu.memory_space<vmem>>, %arg6: memref<32x16xbf16, #tpu.memory_space<vmem>>, %arg7: memref<1x6x8x16xf32, #tpu.memory_space<vmem>>) attributes {dimension_semantics = [#tpu.dimension_semantics<parallel>, #tpu.dimension_semantics<parallel>, #tpu.dimension_semantics<parallel>, #tpu.dimension_semantics<parallel>], iteration_bounds = array<i64: 2, 1, 1, 1>, scalar_prefetch = 0 : i64, scratch_operands = 0 : i64, tpu.core_type = #tpu.core_type<tc>, window_params = [{transform_indices = @transform_0, window_bounds = array<i64: 1, 6, 32>}, {transform_indices = @transform_1, window_bounds = array<i64: 1, 8, 32>}, {transform_indices = @transform_2, window_bounds = array<i64: 32, 16>}, {transform_indices = @transform_3, window_bounds = array<i64: 1, 6, 8, 16>}]} {
    %c0 = arith.constant 0 : index
    %c0_0 = arith.constant 0 : index
    %c0_1 = arith.constant 0 : index
    %0 = vector.load %arg4[%c0, %c0_0, %c0_1] : memref<1x6x32xf32, #tpu.memory_space<vmem>>, vector<1x6x32xf32>
    %1 = vector.shape_cast %0 : vector<1x6x32xf32> to vector<6x32xf32>
    %c0_2 = arith.constant 0 : index
    %c0_3 = arith.constant 0 : index
    %c0_4 = arith.constant 0 : index
    %2 = vector.load %arg5[%c0_2, %c0_3, %c0_4] : memref<1x8x32xf32, #tpu.memory_space<vmem>>, vector<1x8x32xf32>
    %3 = vector.shape_cast %2 : vector<1x8x32xf32> to vector<8x32xf32>
    %4 = vector.shape_cast %1 : vector<6x32xf32> to vector<6x1x32xf32>
    %5 = vector.shape_cast %3 : vector<8x32xf32> to vector<1x8x32xf32>
    %6 = vector.broadcast %4 : vector<6x1x32xf32> to vector<6x8x32xf32>
    %7 = vector.broadcast %5 : vector<1x8x32xf32> to vector<6x8x32xf32>
    %8 = arith.addf %6, %7 : vector<6x8x32xf32>
    %9 = math.tanh %8 : vector<6x8x32xf32>
    %10 = arith.truncf %9 : vector<6x8x32xf32> to vector<6x8x32xbf16>
    %c0_5 = arith.constant 0 : index
    %c0_6 = arith.constant 0 : index
    %11 = vector.load %arg6[%c0_5, %c0_6] : memref<32x16xbf16, #tpu.memory_space<vmem>>, vector<32x16xbf16>
    %cst = arith.constant dense<0.000000e+00> : vector<6x8x16xf32>
    %12 = tpu.matmul %10, %11, %cst {dimension_numbers = #tpu.dot_dimension_numbers<[2], [0], [0, 1], [1], [0, 0, 0, 1, 1, 1], [], []>} : vector<6x8x32xbf16>, vector<32x16xbf16>, vector<6x8x16xf32> -> vector<6x8x16xf32>
    %c0_7 = arith.constant 0 : index
    %c0_8 = arith.constant 0 : index
    %c0_9 = arith.constant 0 : index
    %c0_10 = arith.constant 0 : index
    %13 = vector.load %arg7[%c0_7, %c0_8, %c0_9, %c0_10] : memref<1x6x8x16xf32, #tpu.memory_space<vmem>>, vector<1x6x8x16xf32>
    %14 = vector.shape_cast %13 : vector<1x6x8x16xf32> to vector<6x8x16xf32>
    %15 = vector.shape_cast %12 : vector<6x8x16xf32> to vector<1x6x8x16xf32>
    tpu.vector_store %arg7[%c0_7, %c0_8, %c0_9, %c0_10], %15 {strides = array<i32>} : memref<1x6x8x16xf32, #tpu.memory_space<vmem>>, vector<1x6x8x16xf32>,
    return
  }
  func.func @transform_0(%arg0: i32, %arg1: i32, %arg2: i32, %arg3: i32) -> (i32, i32, i32) {
    %c0_i32 = arith.constant 0 : i32
    %c0_i32_0 = arith.constant 0 : i32
    return %arg0, %arg1, %c0_i32 : i32, i32, i32
  }
  func.func @transform_1(%arg0: i32, %arg1: i32, %arg2: i32, %arg3: i32) -> (i32, i32, i32) {
    %c0_i32 = arith.constant 0 : i32
    %c0_i32_0 = arith.constant 0 : i32
    return %arg0, %arg2, %c0_i32 : i32, i32, i32
  }
  func.func @transform_2(%arg0: i32, %arg1: i32, %arg2: i32, %arg3: i32) -> (i32, i32) {
    %c0_i32 = arith.constant 0 : i32
    %c0_i32_0 = arith.constant 0 : i32
    return %c0_i32, %arg3 : i32, i32
  }
  func.func @transform_3(%arg0: i32, %arg1: i32, %arg2: i32, %arg3: i32) -> (i32, i32, i32, i32) {
    %c0_i32 = arith.constant 0 : i32
    return %arg0, %arg1, %arg2, %arg3 : i32, i32, i32, i32
  }
}

</mosaic_0001>

<llo_original>
// kernel: torch_transformer_decoder_forward.15
$region0: #{torch_transformer_decoder_forward.15}
  #allocation0 [shape = 'u32[]', space=smem, size = 0x4, offset = 0x4, fixed_abs, tag = 'smem constant byte address 0x4 - core index']
  #allocation1 [shape = 'u32[144,128]{1,0:T(1,128)}', space=vmem, size = 0x12000, scoped, tag = 'internal scratch']
  #allocation2 [shape = 'f32[16,96]{1,0:T(8,128)}', space=vmem, size = 0x2000, scoped, tag = 'scratch operand']
  %s0 = inlined_call_operand.hbm [shape: bf16[16,32], index: 0, kind: input, shape index: {}]
  %s1 = inlined_call_operand.hbm [shape: bf16[32,96], index: 1, kind: input, shape index: {}]
  %s2 = inlined_call_operand.hbm [shape: f32[1,96], index: 2, kind: input, shape index: {}]
  %s3 = inlined_call_operand.hbm [shape: f32[16,96], index: 3, kind: output, shape index: {}]
  %s4 = sld [smem:[#allocation0]]
  $region42: #{torch_transformer_decoder_forward.15} parent=0
    _
  %s6 = ssub.s32 1, %s4
  %s7 = scalar_select 0, %s6, %s4
  $region1: #{torch_transformer_decoder_forward.15} parent=0
    #allocation3 [shape = 'u8[4096]{0}', space=vmem, size = 0x1000, scoped, tag = 'input window, operand 0, single buffered']
    #allocation4 [shape = 's32[1]{0}', space=sflag, size = 0x4, scoped, tag = 'scoped memory for torch_transformer_decoder_forward.15']
    #allocation5 [shape = 's32[1]{0}', space=sflag, size = 0x4, scoped, tag = 'scoped memory for torch_transformer_decoder_forward.15']
    #allocation6 [shape = 'u8[8192]{0}', space=vmem, size = 0x2000, scoped, tag = 'input window, operand 1, single buffered']
    #allocation7 [shape = 's32[1]{0}', space=sflag, size = 0x4, scoped, tag = 'scoped memory for torch_transformer_decoder_forward.15']
    #allocation8 [shape = 'u8[512]{0}', space=vmem, size = 0x400, scoped, tag = 'input window, operand 2, single buffered']
    #allocation9 [shape = 'u8[8192]{0}', space=vmem, size = 0x2000, scoped, tag = 'output window, operand 0, single buffered']
    %8 = vsyncpa [#allocation4], 0
    %9 = vsyncpa [#allocation7], 0
    %10 = vsyncpa [#allocation5], 0
    // Predicated region
    $region2: #{torch_transformer_decoder_forward.15} parent=1 // pred_check
      _
    $region3: #{torch_transformer_decoder_forward.15} parent=1 // pred_check_branch
      %12 = sbr.rel (0) target = $region5
    $region4: #{torch_transformer_decoder_forward.15} parent=1 // pred_region
      %s14 = ssub.s32 128, 128
      %15 = vsyncadd [#allocation4], %s14
      %s16 = sshll.u32 [#allocation3], 4
      %s17 = int_to_ptr.vmem [resolvable:$true] %s16
      %22 = dma.hbm_to_vmem [thread:$0]  %s0, 128, %s17, [#allocation4], 64, 64, 4
    $region5: #{torch_transformer_decoder_forward.15} parent=1 // pred_fallthru
      _
    // Predicated region
    $region6: #{torch_transformer_decoder_forward.15} parent=1 // pred_check
      _
    $region7: #{torch_transformer_decoder_forward.15} parent=1 // pred_check_branch
      %24 = sbr.rel (0) target = $region9
    $region8: #{torch_transformer_decoder_forward.15} parent=1 // pred_region
      %s26 = ssub.s32 256, 256
      %27 = vsyncadd [#allocation7], %s26
      %s28 = sshll.u32 [#allocation6], 4
      %s29 = int_to_ptr.vmem [resolvable:$true] %s28
      %34 = dma.hbm_to_vmem [thread:$0]  %s1, 256, %s29, [#allocation7], 64, 64, 4
    $region9: #{torch_transformer_decoder_forward.15} parent=1 // pred_fallthru
      _
    // Predicated region
    $region10: #{torch_transformer_decoder_forward.15} parent=1 // pred_check
      _
    $region11: #{torch_transformer_decoder_forward.15} parent=1 // pred_check_branch
      %36 = sbr.rel (0) target = $region13
    $region12: #{torch_transformer_decoder_forward.15} parent=1 // pred_region
      %s38 = ssub.s32 16, 16
      %39 = vsyncadd [#allocation7], %s38
      %s41 = sshll.u32 [#allocation8], 4
      %s42 = int_to_ptr.vmem [resolvable:$true] %s41
      %44 = dma.hbm_to_vmem [thread:$0]  %s2, 16, %s42, [#allocation7]
    $region13: #{torch_transformer_decoder_forward.15} parent=1 // pred_fallthru
      _
    // Predicated region
    $region14: #{torch_transformer_decoder_forward.15} parent=1 // pred_check
      _
    $region15: #{torch_transformer_decoder_forward.15} parent=1 // pred_check_branch
      %46 = sbr.rel (0) target = $region17
    $region16: #{torch_transformer_decoder_forward.15} parent=1 // pred_region
      %47 = dma.done [#allocation4], 128
    $region17: #{torch_transformer_decoder_forward.15} parent=1 // pred_fallthru
      _
    // Predicated region
    $region18: #{torch_transformer_decoder_forward.15} parent=1 // pred_check
      _
    $region19: #{torch_transformer_decoder_forward.15} parent=1 // pred_check_branch
      %49 = sbr.rel (0) target = $region21
    $region20: #{torch_transformer_decoder_forward.15} parent=1 // pred_region
      %50 = dma.done [#allocation7], 256
    $region21: #{torch_transformer_decoder_forward.15} parent=1 // pred_fallthru
      _
    // Predicated region
    $region22: #{torch_transformer_decoder_forward.15} parent=1 // pred_check
      _
    $region23: #{torch_transformer_decoder_forward.15} parent=1 // pred_check_branch
      %52 = sbr.rel (0) target = $region25
    $region24: #{torch_transformer_decoder_forward.15} parent=1 // pred_region
      %53 = dma.done [#allocation7], 16
    $region25: #{torch_transformer_decoder_forward.15} parent=1 // pred_fallthru
      _
    %p55 = scmp.eq.s32.totalorder 0, 0
    // Predicated region
    $region26: #{torch_transformer_decoder_forward.15} parent=1 // pred_check
      %p56 = pneg %p55
    $region27: #{torch_transformer_decoder_forward.15} parent=1 // pred_check_branch
      %58 = sbr.rel (%p56) target = $region29
    $region28: #{torch_transformer_decoder_forward.15} parent=1 // pred_region
      %vm59 = vcmask 785408
      %60 = vst.msk [vmem:[#allocation2] sm:$0xff] %vm59, 0.0
      %61 = vst.msk [vmem:[#allocation2 + $0x8] sm:$0xff] %vm59, 0.0
    $region29: #{torch_transformer_decoder_forward.15} parent=1 // pred_fallthru
      _
    %v62 = vld [vmem:[#allocation2] sm:$0xff]
    %v63 = vld [vmem:[#allocation2 + $0x8] sm:$0xff]
    %v64 = vld [vmem:[#allocation3] sm:$0xf]
    %v65 = vld [vmem:[#allocation3 + $0x4] sm:$0xf]
    %v66 = vld [vmem:[#allocation6] sm:$0xf]
    %v67 = vld [vmem:[#allocation6 + $0x4] sm:$0xf]
    %v68 = vld [vmem:[#allocation6 + $0x8] sm:$0xf]
    %v69 = vld [vmem:[#allocation6 + $0xc] sm:$0xf]
    %v72 = vunpack.c.l.b16 %v64
    %v73 = vunpack.c.l.b16 %v65
    %v74 = vpack.c.b16 %v73, %v72
    %v79 = vunpack.c.l.b16 %v66
    %v80 = vunpack.c.l.b16 %v67
    %v81 = vunpack.c.l.b16 %v68
    %v82 = vunpack.c.l.b16 %v69
    %v83 = vpack.c.b16 %v80, %v79
    %v84 = vpack.c.b16 %v82, %v81
    %vm87 = vcmask 261120
    %v89 = vsel %vm87, %v74, 0
    %91 = vmatprep.subr.bf16.mxu0 0
    %92 = vmatpush1.bf16.msra.mxu0 %v83
    %93 = vmatprep.subr.bf16.mxu0 0
    %94 = vmatpush1.bf16.msra.mxu0 %v84
    %95 = vmatprep.subr.bf16.mxu0 0
    %96 = vmatpush1.bf16.msra.mxu0 0
    %97 = vmatprep.subr.bf16.mxu0 0
    %98 = vmatpush1.bf16.msra.mxu0 0
    %99 = vmatprep.subr.bf16.mxu0 0
    %100 = vmatpush1.bf16.msra.mxu0 0
    %101 = vmatprep.subr.bf16.mxu0 0
    %102 = vmatpush1.bf16.msra.mxu0 0
    %103 = vmatprep.subr.bf16.mxu0 0
    %104 = vmatpush1.bf16.msra.mxu0 0
    %105 = vmatprep.subr.bf16.mxu0 0
    %106 = vmatpush1.bf16.msra.mxu0 0
    %107 = vmatprep.subr.bf16.mxu0 0
    %108 = vmatpush1.bf16.msra.mxu0 0
    %109 = vmatprep.subr.bf16.mxu0 0
    %110 = vmatpush1.bf16.msra.mxu0 0
    %111 = vmatprep.subr.bf16.mxu0 0
    %112 = vmatpush1.bf16.msra.mxu0 0
    %113 = vmatprep.subr.bf16.mxu0 0
    %114 = vmatpush1.bf16.msra.mxu0 0
    %115 = vmatprep.subr.bf16.mxu0 0
    %116 = vmatpush1.bf16.msra.mxu0 0
    %117 = vmatprep.subr.bf16.mxu0 0
    %118 = vmatpush1.bf16.msra.mxu0 0
    %119 = vmatprep.subr.bf16.mxu0 0
    %120 = vmatpush1.bf16.msra.mxu0 0
    %121 = vmatprep.subr.bf16.mxu0 0
    %122 = vmatpush1.bf16.msra.mxu0 0
    %123 = vmatprep.mubr.bf16.mxu0 0
    %124 = vmatmul.mubr.bf16.gmra.mrb[0].mxu0 %v89
    %v125 = vpop.f32.mrb[0].mxu0
    %v126 = vadd.f32 0.0, %v125
    %v127 = vpop.f32.mrb[0].mxu0
    %v128 = vpop.f32.mrb[0].mxu0
    %v129 = vadd.f32 0.0, %v128
    %v130 = vpop.f32.mrb[0].mxu0
    %131 = vdwg.mxu0
    %v132 = vadd.f32 %v62, %v126
    %v133 = vadd.f32 %v63, %v129
    %vm134 = vcmask 785408
    %135 = vst.msk [vmem:[#allocation2] sm:$0xff] %vm134, %v132
    %136 = vst.msk [vmem:[#allocation2 + $0x8] sm:$0xff] %vm134, %v133
    // Predicated region
    $region30: #{torch_transformer_decoder_forward.15} parent=1 // pred_check
      %p137 = pneg %p55
    $region31: #{torch_transformer_decoder_forward.15} parent=1 // pred_check_branch
      %139 = sbr.rel (%p137) target = $region33
    $region32: #{torch_transformer_decoder_forward.15} parent=1 // pred_region
      %v140 = vld [vmem:[#allocation2] sm:$0xff]
      %v141 = vld [vmem:[#allocation2 + $0x8] sm:$0xff]
      %v142 = vld [vmem:[#allocation8] sm:$0x1]
      %v144 = vlaneseq
      %v145 = vshrl.u32 %v144, 7
      %v146 = vsub.s32 0, %v145
      %v147 = vrot.slane %v142, %v146
      %v149 = vadd.f32 %v140, %v147
      %v150 = vadd.f32 %v141, %v147
      %151 = vst.msk [vmem:[#allocation9] sm:$0xff] %vm134, %v149
      %152 = vst.msk [vmem:[#allocation9 + $0x8] sm:$0xff] %vm134, %v150
    $region33: #{torch_transformer_decoder_forward.15} parent=1 // pred_fallthru
      _
    // Predicated region
    $region34: #{torch_transformer_decoder_forward.15} parent=1 // pred_check
      _
    $region35: #{torch_transformer_decoder_forward.15} parent=1 // pred_check_branch
      %154 = sbr.rel (0) target = $region37
    $region36: #{torch_transformer_decoder_forward.15} parent=1 // pred_region
      %s156 = ssub.s32 256, 256
      %157 = vsyncadd [#allocation5], %s156
      %s158 = sshll.u32 [#allocation9], 4
      %s159 = int_to_ptr.vmem [resolvable:$true] %s158
      %164 = dma.vmem_to_hbm [thread:$0]  %s159, 256, %s3, [#allocation5], 128, 128, 8
    $region37: #{torch_transformer_decoder_forward.15} parent=1 // pred_fallthru
      _
    // Predicated region
    $region38: #{torch_transformer_decoder_forward.15} parent=1 // pred_check
      _
    $region39: #{torch_transformer_decoder_forward.15} parent=1 // pred_check_branch
      %166 = sbr.rel (0) target = $region41
    $region40: #{torch_transformer_decoder_forward.15} parent=1 // pred_region
      %167 = dma.done [#allocation5], 256
    $region41: #{torch_transformer_decoder_forward.15} parent=1 // pred_fallthru
      _
    %168 = vsyncpa [#allocation4], 1
    %169 = vsyncpa [#allocation7], 1
    %170 = vsyncpa [#allocation5], 1

// kernel: torch_transformer_decoder_forward.18
$region0: #{torch_transformer_decoder_forward.18}
  #allocation0 [shape = 'u32[]', space=smem, size = 0x4, offset = 0x4, fixed_abs, tag = 'smem constant byte address 0x4 - core index']
  #allocation1 [shape = 'u32[144,128]{1,0:T(1,128)}', space=vmem, size = 0x12000, scoped, tag = 'internal scratch']
  %s0 = inlined_call_operand.hbm [shape: f32[16,32], index: 0, kind: input, shape index: {}]
  %s1 = inlined_call_operand.hbm [shape: f32[16,32], index: 1, kind: input, shape index: {}]
  %s2 = inlined_call_operand.vmem [shape: f32[1,32], index: 2, kind: input, shape index: {}]
  %s3 = inlined_call_operand.vmem [shape: f32[1,32], index: 3, kind: input, shape index: {}]
  %s4 = inlined_call_operand.vmem [shape: f32[16,32], index: 4, kind: output, shape index: {}]
  %s5 = sld [smem:[#allocation0]]
  $region34: #{torch_transformer_decoder_forward.18} parent=0
    _
  %s7 = ssub.s32 1, %s5
  %s8 = scalar_select 0, %s7, %s5
  $region1: #{torch_transformer_decoder_forward.18} parent=0
    #allocation2 [shape = 'u8[8192]{0}', space=vmem, size = 0x2000, scoped, tag = 'input window, operand 0, single buffered']
    #allocation3 [shape = 's32[1]{0}', space=sflag, size = 0x4, scoped, tag = 'scoped memory for torch_transformer_decoder_forward.18']
    #allocation4 [shape = 'u8[8192]{0}', space=vmem, size = 0x2000, scoped, tag = 'input window, operand 1, single buffered']
    #allocation5 [shape = 's32[1]{0}', space=sflag, size = 0x4, scoped, tag = 'scoped memory for torch_transformer_decoder_forward.18']
    %9 = vsyncpa [#allocation3], 0
    %10 = vsyncpa [#allocation5], 0
    // Predicated region
    $region2: #{torch_transformer_decoder_forward.18} parent=1 // pred_check
      _
    $region3: #{torch_transformer_decoder_forward.18} parent=1 // pred_check_branch
      %12 = sbr.rel (0) target = $region5
    $region4: #{torch_transformer_decoder_forward.18} parent=1 // pred_region
      %s14 = ssub.s32 256, 256
      %15 = vsyncadd [#allocation3], %s14
      %s16 = sshll.u32 [#allocation2], 4
      %s17 = int_to_ptr.vmem [resolvable:$true] %s16
      %22 = dma.hbm_to_vmem [thread:$0]  %s0, 256, %s17, [#allocation3], 128, 128, 8
    $region5: #{torch_transformer_decoder_forward.18} parent=1 // pred_fallthru
      _
    // Predicated region
    $region6: #{torch_transformer_decoder_forward.18} parent=1 // pred_check
      _
    $region7: #{torch_transformer_decoder_forward.18} parent=1 // pred_check_branch
      %24 = sbr.rel (0) target = $region9
    $region8: #{torch_transformer_decoder_forward.18} parent=1 // pred_region
      %s26 = ssub.s32 256, 256
      %27 = vsyncadd [#allocation5], %s26
      %s28 = sshll.u32 [#allocation4], 4
      %s29 = int_to_ptr.vmem [resolvable:$true] %s28
      %34 = dma.hbm_to_vmem [thread:$0]  %s1, 256, %s29, [#allocation5], 128, 128, 8
    $region9: #{torch_transformer_decoder_forward.18} parent=1 // pred_fallthru
      _
    // Predicated region
    $region10: #{torch_transformer_decoder_forward.18} parent=1 // pred_check
      _
    $region11: #{torch_transformer_decoder_forward.18} parent=1 // pred_check_branch
      %36 = sbr.rel (0) target = $region13
    $region12: #{torch_transformer_decoder_forward.18} parent=1 // pred_region
      _
    $region13: #{torch_transformer_decoder_forward.18} parent=1 // pred_fallthru
      _
    // Predicated region
    $region14: #{torch_transformer_decoder_forward.18} parent=1 // pred_check
      _
    $region15: #{torch_transformer_decoder_forward.18} parent=1 // pred_check_branch
      %38 = sbr.rel (0) target = $region17
    $region16: #{torch_transformer_decoder_forward.18} parent=1 // pred_region
      _
    $region17: #{torch_transformer_decoder_forward.18} parent=1 // pred_fallthru
      _
    // Predicated region
    $region18: #{torch_transformer_decoder_forward.18} parent=1 // pred_check
      _
    $region19: #{torch_transformer_decoder_forward.18} parent=1 // pred_check_branch
      %40 = sbr.rel (0) target = $region21
    $region20: #{torch_transformer_decoder_forward.18} parent=1 // pred_region
      %41 = dma.done [#allocation3], 256
    $region21: #{torch_transformer_decoder_forward.18} parent=1 // pred_fallthru
      _
    // Predicated region
    $region22: #{torch_transformer_decoder_forward.18} parent=1 // pred_check
      _
    $region23: #{torch_transformer_decoder_forward.18} parent=1 // pred_check_branch
      %43 = sbr.rel (0) target = $region25
    $region24: #{torch_transformer_decoder_forward.18} parent=1 // pred_region
      %44 = dma.done [#allocation5], 256
    $region25: #{torch_transformer_decoder_forward.18} parent=1 // pred_fallthru
      _
    %v45 = vld [vmem:[#allocation2] sm:$0xff]
    %v46 = vld [vmem:[#allocation2 + $0x8] sm:$0xff]
    %v47 = vld [vmem:[#allocation4] sm:$0xff]
    %v48 = vld [vmem:[#allocation4 + $0x8] sm:$0xff]
    %v49 = vadd.f32 %v45, %v47
    %v50 = vadd.f32 %v46, %v48
    %vm51 = vcmask 261120
    %v52 = vsel %vm51, %v49, 0.0
    %53 = vadd.xlane.f32.xlu0 %v52
    %v54 = vpop.xlane.xlu0 %53
    %v55 = vsel %vm51, %v50, 0.0
    %56 = vadd.xlane.f32.xlu0 %v55
    %v57 = vpop.xlane.xlu0 %56
    %v58 = vrcp.pop 32.0
    %v59 = vmul.f32 %v54, %v58
    %v60 = vmul.f32 %v57, %v58
    %v61 = vsub.f32 %v49, %v59
    %v62 = vsub.f32 %v50, %v60
    %v63 = vmul.f32 %v61, %v61
    %v64 = vmul.f32 %v62, %v62
    %v65 = vsel %vm51, %v63, 0.0
    %66 = vadd.xlane.f32.xlu0 %v65
    %v67 = vpop.xlane.xlu0 %66
    %v68 = vsel %vm51, %v64, 0.0
    %69 = vadd.xlane.f32.xlu0 %v68
    %v70 = vpop.xlane.xlu0 %69
    %v71 = vmul.f32 %v67, %v58
    %v72 = vmul.f32 %v70, %v58
    %v73 = vadd.f32 %v71, 1e-05
    %v74 = vadd.f32 %v72, 1e-05
    %v75 = vrsqrt.pop %v73
    %v76 = vrsqrt.pop %v74
    %v77 = vmul.f32 %v61, %v75
    %v78 = vmul.f32 %v62, %v76
    %v79 = vld [vmem:[%s2] sm:$0x1]
    %v81 = vlaneseq
    %v82 = vshrl.u32 %v81, 7
    %v83 = vsub.s32 0, %v82
    %v84 = vrot.slane %v79, %v83
    %v86 = vmul.f32 %v77, %v84
    %v87 = vmul.f32 %v78, %v84
    %v88 = vld [vmem:[%s3] sm:$0x1]
    %v90 = vlaneseq
    %v91 = vshrl.u32 %v90, 7
    %v92 = vsub.s32 0, %v91
    %v93 = vrot.slane %v88, %v92
    %v95 = vadd.f32 %v86, %v93
    %v96 = vadd.f32 %v87, %v93
    %97 = vst.msk [vmem:[%s4] sm:$0xff] %vm51, %v95
    %98 = vst.msk [vmem:[%s4 + $0x8] sm:$0xff] %vm51, %v96
    // Predicated region
    $region26: #{torch_transformer_decoder_forward.18} parent=1 // pred_check
      _
    $region27: #{torch_transformer_decoder_forward.18} parent=1 // pred_check_branch
      %100 = sbr.rel (0) target = $region29
    $region28: #{torch_transformer_decoder_forward.18} parent=1 // pred_region
      _
    $region29: #{torch_transformer_decoder_forward.18} parent=1 // pred_fallthru
      _
    // Predicated region
    $region30: #{torch_transformer_decoder_forward.18} parent=1 // pred_check
      _
    $region31: #{torch_transformer_decoder_forward.18} parent=1 // pred_check_branch
      %102 = sbr.rel (0) target = $region33
    $region32: #{torch_transformer_decoder_forward.18} parent=1 // pred_region
      _
    $region33: #{torch_transformer_decoder_forward.18} parent=1 // pred_fallthru
      _
    %103 = vsyncpa [#allocation3], 1
    %104 = vsyncpa [#allocation5], 1

// kernel: torch_transformer_decoder_forward.17
$region0: #{torch_transformer_decoder_forward.17}
  #allocation0 [shape = 'u32[]', space=smem, size = 0x4, offset = 0x4, fixed_abs, tag = 'smem constant byte address 0x4 - core index']
  #allocation1 [shape = 'u32[144,128]{1,0:T(1,128)}', space=vmem, size = 0x12000, scoped, tag = 'internal scratch']
  #allocation2 [shape = 'f32[16,32]{1,0:T(8,128)}', space=vmem, size = 0x2000, scoped, tag = 'scratch operand']
  %s0 = inlined_call_operand.hbm [shape: bf16[16,32], index: 0, kind: input, shape index: {}]
  %s1 = inlined_call_operand.hbm [shape: bf16[32,32], index: 1, kind: input, shape index: {}]
  %s2 = inlined_call_operand.hbm [shape: f32[1,32], index: 2, kind: input, shape index: {}]
  %s3 = inlined_call_operand.hbm [shape: f32[16,32], index: 3, kind: output, shape index: {}]
  %s4 = sld [smem:[#allocation0]]
  $region42: #{torch_transformer_decoder_forward.17} parent=0
    _
  %s6 = ssub.s32 1, %s4
  %s7 = scalar_select 0, %s6, %s4
  $region1: #{torch_transformer_decoder_forward.17} parent=0
    #allocation3 [shape = 'u8[4096]{0}', space=vmem, size = 0x1000, scoped, tag = 'input window, operand 0, single buffered']
    #allocation4 [shape = 's32[1]{0}', space=sflag, size = 0x4, scoped, tag = 'scoped memory for torch_transformer_decoder_forward.17']
    #allocation5 [shape = 's32[1]{0}', space=sflag, size = 0x4, scoped, tag = 'scoped memory for torch_transformer_decoder_forward.17']
    #allocation6 [shape = 'u8[8192]{0}', space=vmem, size = 0x2000, scoped, tag = 'input window, operand 1, single buffered']
    #allocation7 [shape = 's32[1]{0}', space=sflag, size = 0x4, scoped, tag = 'scoped memory for torch_transformer_decoder_forward.17']
    #allocation8 [shape = 'u8[512]{0}', space=vmem, size = 0x400, scoped, tag = 'input window, operand 2, single buffered']
    #allocation9 [shape = 'u8[8192]{0}', space=vmem, size = 0x2000, scoped, tag = 'output window, operand 0, single buffered']
    %8 = vsyncpa [#allocation4], 0
    %9 = vsyncpa [#allocation7], 0
    %10 = vsyncpa [#allocation5], 0
    // Predicated region
    $region2: #{torch_transformer_decoder_forward.17} parent=1 // pred_check
      _
    $region3: #{torch_transformer_decoder_forward.17} parent=1 // pred_check_branch
      %12 = sbr.rel (0) target = $region5
    $region4: #{torch_transformer_decoder_forward.17} parent=1 // pred_region
      %s14 = ssub.s32 128, 128
      %15 = vsyncadd [#allocation4], %s14
      %s16 = sshll.u32 [#allocation3], 4
      %s17 = int_to_ptr.vmem [resolvable:$true] %s16
      %22 = dma.hbm_to_vmem [thread:$0]  %s0, 128, %s17, [#allocation4], 64, 64, 4
    $region5: #{torch_transformer_decoder_forward.17} parent=1 // pred_fallthru
      _
    // Predicated region
    $region6: #{torch_transformer_decoder_forward.17} parent=1 // pred_check
      _
    $region7: #{torch_transformer_decoder_forward.17} parent=1 // pred_check_branch
      %24 = sbr.rel (0) target = $region9
    $region8: #{torch_transformer_decoder_forward.17} parent=1 // pred_region
      %s26 = ssub.s32 256, 256
      %27 = vsyncadd [#allocation7], %s26
      %s28 = sshll.u32 [#allocation6], 4
      %s29 = int_to_ptr.vmem [resolvable:$true] %s28
      %34 = dma.hbm_to_vmem [thread:$0]  %s1, 256, %s29, [#allocation7], 64, 64, 4
    $region9: #{torch_transformer_decoder_forward.17} parent=1 // pred_fallthru
      _
    // Predicated region
    $region10: #{torch_transformer_decoder_forward.17} parent=1 // pred_check
      _
    $region11: #{torch_transformer_decoder_forward.17} parent=1 // pred_check_branch
      %36 = sbr.rel (0) target = $region13
    $region12: #{torch_transformer_decoder_forward.17} parent=1 // pred_region
      %s38 = ssub.s32 16, 16
      %39 = vsyncadd [#allocation7], %s38
      %s41 = sshll.u32 [#allocation8], 4
      %s42 = int_to_ptr.vmem [resolvable:$true] %s41
      %44 = dma.hbm_to_vmem [thread:$0]  %s2, 16, %s42, [#allocation7]
    $region13: #{torch_transformer_decoder_forward.17} parent=1 // pred_fallthru
      _
    // Predicated region
    $region14: #{torch_transformer_decoder_forward.17} parent=1 // pred_check
      _
    $region15: #{torch_transformer_decoder_forward.17} parent=1 // pred_check_branch
      %46 = sbr.rel (0) target = $region17
    $region16: #{torch_transformer_decoder_forward.17} parent=1 // pred_region
      %47 = dma.done [#allocation4], 128
    $region17: #{torch_transformer_decoder_forward.17} parent=1 // pred_fallthru
      _
    // Predicated region
    $region18: #{torch_transformer_decoder_forward.17} parent=1 // pred_check
      _
    $region19: #{torch_transformer_decoder_forward.17} parent=1 // pred_check_branch
      %49 = sbr.rel (0) target = $region21
    $region20: #{torch_transformer_decoder_forward.17} parent=1 // pred_region
      %50 = dma.done [#allocation7], 256
    $region21: #{torch_transformer_decoder_forward.17} parent=1 // pred_fallthru
      _
    // Predicated region
    $region22: #{torch_transformer_decoder_forward.17} parent=1 // pred_check
      _
    $region23: #{torch_transformer_decoder_forward.17} parent=1 // pred_check_branch
      %52 = sbr.rel (0) target = $region25
    $region24: #{torch_transformer_decoder_forward.17} parent=1 // pred_region
      %53 = dma.done [#allocation7], 16
    $region25: #{torch_transformer_decoder_forward.17} parent=1 // pred_fallthru
      _
    %p55 = scmp.eq.s32.totalorder 0, 0
    // Predicated region
    $region26: #{torch_transformer_decoder_forward.17} parent=1 // pred_check
      %p56 = pneg %p55
    $region27: #{torch_transformer_decoder_forward.17} parent=1 // pred_check_branch
      %58 = sbr.rel (%p56) target = $region29
    $region28: #{torch_transformer_decoder_forward.17} parent=1 // pred_region
      %vm59 = vcmask 261120
      %60 = vst.msk [vmem:[#allocation2] sm:$0xff] %vm59, 0.0
      %61 = vst.msk [vmem:[#allocation2 + $0x8] sm:$0xff] %vm59, 0.0
    $region29: #{torch_transformer_decoder_forward.17} parent=1 // pred_fallthru
      _
    %v62 = vld [vmem:[#allocation2] sm:$0xff]
    %v63 = vld [vmem:[#allocation2 + $0x8] sm:$0xff]
    %v64 = vld [vmem:[#allocation3] sm:$0xf]
    %v65 = vld [vmem:[#allocation3 + $0x4] sm:$0xf]
    %v66 = vld [vmem:[#allocation6] sm:$0xf]
    %v67 = vld [vmem:[#allocation6 + $0x4] sm:$0xf]
    %v68 = vld [vmem:[#allocation6 + $0x8] sm:$0xf]
    %v69 = vld [vmem:[#allocation6 + $0xc] sm:$0xf]
    %v72 = vunpack.c.l.b16 %v64
    %v73 = vunpack.c.l.b16 %v65
    %v74 = vpack.c.b16 %v73, %v72
    %v79 = vunpack.c.l.b16 %v66
    %v80 = vunpack.c.l.b16 %v67
    %v81 = vunpack.c.l.b16 %v68
    %v82 = vunpack.c.l.b16 %v69
    %v83 = vpack.c.b16 %v80, %v79
    %v84 = vpack.c.b16 %v82, %v81
    %vm87 = vcmask 261120
    %v89 = vsel %vm87, %v74, 0
    %91 = vmatprep.subr.bf16.mxu0 0
    %92 = vmatpush1.bf16.msra.mxu0 %v83
    %93 = vmatprep.subr.bf16.mxu0 0
    %94 = vmatpush1.bf16.msra.mxu0 %v84
    %95 = vmatprep.subr.bf16.mxu0 0
    %96 = vmatpush1.bf16.msra.mxu0 0
    %97 = vmatprep.subr.bf16.mxu0 0
    %98 = vmatpush1.bf16.msra.mxu0 0
    %99 = vmatprep.subr.bf16.mxu0 0
    %100 = vmatpush1.bf16.msra.mxu0 0
    %101 = vmatprep.subr.bf16.mxu0 0
    %102 = vmatpush1.bf16.msra.mxu0 0
    %103 = vmatprep.subr.bf16.mxu0 0
    %104 = vmatpush1.bf16.msra.mxu0 0
    %105 = vmatprep.subr.bf16.mxu0 0
    %106 = vmatpush1.bf16.msra.mxu0 0
    %107 = vmatprep.subr.bf16.mxu0 0
    %108 = vmatpush1.bf16.msra.mxu0 0
    %109 = vmatprep.subr.bf16.mxu0 0
    %110 = vmatpush1.bf16.msra.mxu0 0
    %111 = vmatprep.subr.bf16.mxu0 0
    %112 = vmatpush1.bf16.msra.mxu0 0
    %113 = vmatprep.subr.bf16.mxu0 0
    %114 = vmatpush1.bf16.msra.mxu0 0
    %115 = vmatprep.subr.bf16.mxu0 0
    %116 = vmatpush1.bf16.msra.mxu0 0
    %117 = vmatprep.subr.bf16.mxu0 0
    %118 = vmatpush1.bf16.msra.mxu0 0
    %119 = vmatprep.subr.bf16.mxu0 0
    %120 = vmatpush1.bf16.msra.mxu0 0
    %121 = vmatprep.subr.bf16.mxu0 0
    %122 = vmatpush1.bf16.msra.mxu0 0
    %123 = vmatprep.mubr.bf16.mxu0 0
    %124 = vmatmul.mubr.bf16.gmra.mrb[0].mxu0 %v89
    %v125 = vpop.f32.mrb[0].mxu0
    %v126 = vadd.f32 0.0, %v125
    %v127 = vpop.f32.mrb[0].mxu0
    %v128 = vpop.f32.mrb[0].mxu0
    %v129 = vadd.f32 0.0, %v128
    %v130 = vpop.f32.mrb[0].mxu0
    %131 = vdwg.mxu0
    %v132 = vadd.f32 %v62, %v126
    %v133 = vadd.f32 %v63, %v129
    %134 = vst.msk [vmem:[#allocation2] sm:$0xff] %vm87, %v132
    %135 = vst.msk [vmem:[#allocation2 + $0x8] sm:$0xff] %vm87, %v133
    // Predicated region
    $region30: #{torch_transformer_decoder_forward.17} parent=1 // pred_check
      %p136 = pneg %p55
    $region31: #{torch_transformer_decoder_forward.17} parent=1 // pred_check_branch
      %138 = sbr.rel (%p136) target = $region33
    $region32: #{torch_transformer_decoder_forward.17} parent=1 // pred_region
      %v139 = vld [vmem:[#allocation2] sm:$0xff]
      %v140 = vld [vmem:[#allocation2 + $0x8] sm:$0xff]
      %v141 = vld [vmem:[#allocation8] sm:$0x1]
      %v143 = vlaneseq
      %v144 = vshrl.u32 %v143, 7
      %v145 = vsub.s32 0, %v144
      %v146 = vrot.slane %v141, %v145
      %v148 = vadd.f32 %v139, %v146
      %v149 = vadd.f32 %v140, %v146
      %150 = vst.msk [vmem:[#allocation9] sm:$0xff] %vm87, %v148
      %151 = vst.msk [vmem:[#allocation9 + $0x8] sm:$0xff] %vm87, %v149
    $region33: #{torch_transformer_decoder_forward.17} parent=1 // pred_fallthru
      _
    // Predicated region
    $region34: #{torch_transformer_decoder_forward.17} parent=1 // pred_check
      _
    $region35: #{torch_transformer_decoder_forward.17} parent=1 // pred_check_branch
      %153 = sbr.rel (0) target = $region37
    $region36: #{torch_transformer_decoder_forward.17} parent=1 // pred_region
      %s155 = ssub.s32 256, 256
      %156 = vsyncadd [#allocation5], %s155
      %s157 = sshll.u32 [#allocation9], 4
      %s158 = int_to_ptr.vmem [resolvable:$true] %s157
      %163 = dma.vmem_to_hbm [thread:$0]  %s158, 256, %s3, [#allocation5], 128, 128, 8
    $region37: #{torch_transformer_decoder_forward.17} parent=1 // pred_fallthru
      _
    // Predicated region
    $region38: #{torch_transformer_decoder_forward.17} parent=1 // pred_check
      _
    $region39: #{torch_transformer_decoder_forward.17} parent=1 // pred_check_branch
      %165 = sbr.rel (0) target = $region41
    $region40: #{torch_transformer_decoder_forward.17} parent=1 // pred_region
      %166 = dma.done [#allocation5], 256
    $region41: #{torch_transformer_decoder_forward.17} parent=1 // pred_fallthru
      _
    %167 = vsyncpa [#allocation4], 1
    %168 = vsyncpa [#allocation7], 1
    %169 = vsyncpa [#allocation5], 1

// kernel: torch_transformer_decoder_forward.16
$region0: #{torch_transformer_decoder_forward.16}
  #allocation0 [shape = 'u32[]', space=smem, size = 0x4, offset = 0x4, fixed_abs, tag = 'smem constant byte address 0x4 - core index']
  #allocation1 [shape = 'u32[144,128]{1,0:T(1,128)}', space=vmem, size = 0x12000, scoped, tag = 'internal scratch']
  %s0 = inlined_call_operand.hbm [shape: bf16[2,4,8,8], index: 0, kind: input, shape index: {}]
  %s1 = inlined_call_operand.hbm [shape: bf16[2,4,8,8], index: 1, kind: input, shape index: {}]
  %s2 = inlined_call_operand.hbm [shape: bf16[2,4,8,8], index: 2, kind: input, shape index: {}]
  %s3 = inlined_call_operand.hbm [shape: f32[2,8,8], index: 3, kind: input, shape index: {}]
  %s4 = inlined_call_operand.hbm [shape: f32[2,4,8,8], index: 4, kind: output, shape index: {}]
  %s5 = sld [smem:[#allocation0]]
  $region65: #{torch_transformer_decoder_forward.16} parent=0
    _
  %s7 = ssub.s32 1, %s5
  %s8 = scalar_select 0, %s7, %s5
  $region1: #{torch_transformer_decoder_forward.16} parent=0
    #allocation2 [shape = 'u8[16384]{0}', space=vmem, size = 0x4000, scoped, tag = 'input window, operand 0']
    #allocation3 [shape = 's32[2]{0}', space=sflag, size = 0x8, scoped, tag = 'scoped memory for torch_transformer_decoder_forward.16']
    #allocation4 [shape = 's32[2]{0}', space=sflag, size = 0x8, scoped, tag = 'scoped memory for torch_transformer_decoder_forward.16']
    #allocation5 [shape = 'u8[16384]{0}', space=vmem, size = 0x4000, scoped, tag = 'input window, operand 1']
    #allocation6 [shape = 's32[2]{0}', space=sflag, size = 0x8, scoped, tag = 'scoped memory for torch_transformer_decoder_forward.16']
    #allocation7 [shape = 'u8[16384]{0}', space=vmem, size = 0x4000, scoped, tag = 'input window, operand 2']
    #allocation8 [shape = 'u8[8192]{0}', space=vmem, size = 0x2000, scoped, tag = 'input window, operand 3']
    #allocation9 [shape = 's32[2]{0}', space=sflag, size = 0x8, scoped, tag = 'scoped memory for torch_transformer_decoder_forward.16']
    #allocation10 [shape = 'u8[32768]{0}', space=vmem, size = 0x8000, scoped, tag = 'output window, operand 0']
    %9 = vsyncpa [#allocation3], 0
    %s10 = scalar_lea.sflag [#allocation3], 1
    %11 = vsyncpa %s10, 0
    %12 = vsyncpa [#allocation6], 0
    %s13 = scalar_lea.sflag [#allocation6], 1
    %14 = vsyncpa %s13, 0
    %15 = vsyncpa [#allocation9], 0
    %s16 = scalar_lea.sflag [#allocation9], 1
    %17 = vsyncpa %s16, 0
    %18 = vsyncpa [#allocation4], 0
    %s19 = scalar_lea.sflag [#allocation4], 1
    %20 = vsyncpa %s19, 0
    loop: start=0, step=1, limit=4
    $region2: #{torch_transformer_decoder_forward.16} parent=1 // loop_pre_header
      _
    $region3: #{torch_transformer_decoder_forward.16} parent=1 // loop_header
      %s22 = sphi 0, %s26
      %p23 = scmp.ge.s32.totalorder %s22, 4
      %s32 = sphi 0, %s34
      %s35 = sphi 0, %s32
      %s36 = sphi 0, %s35
      %s52 = sphi 0, %s36
      %s58 = sphi 0, %s60
      %s61 = sphi 0, %s58
      %s62 = sphi 0, %s61
      %s78 = sphi 0, %s62
      %s84 = sphi 0, %s86
      %s87 = sphi 0, %s84
      %s88 = sphi 0, %s87
      %s104 = sphi 0, %s88
      %s110 = sphi 0, %s112
      %s113 = sphi 0, %s110
      %s114 = sphi 0, %s113
      %s130 = sphi 0, %s114
      %s136 = sphi 0, %s138
      %s139 = sphi 0, %s136
      %s140 = sphi 0, %s139
      %s156 = sphi 0, %s140
    $region4: #{torch_transformer_decoder_forward.16} parent=1 // loop_header_branch
      %25 = sbr.rel (%p23) target = $region8
    $region5: #{torch_transformer_decoder_forward.16} parent=1 // loop_body
      %s27 = ssub.s32 %s22, 1
      %s28 = ssub.s32 %s22, 2
      %s29 = sadd.s32 %s22, 1
      %s30 = ssub.s32 %s22, %s29
      %p31 = scmp.eq.s32.totalorder %s30, 0
      %s33 = sadd.s32 %s32, 1
      %s34 = scalar_select %p31, %s32, %s33
      %p37 = pneg %p31
      %p38 = scmp.eq.s32.totalorder %s22, 1
      %p39 = por %p37, %p38
      %p40 = scmp.ne.s32.totalorder %s32, %s35
      %p41 = scmp.eq.s32.totalorder %s22, 0
      %p42 = por %p40, %p41
      %p43 = scmp.ne.s32.totalorder %s32, %s35
      %p44 = scmp.eq.s32.totalorder %s27, 1
      %p45 = por %p43, %p44
      %p46 = scmp.ne.s32.totalorder %s35, %s36
      %p47 = scmp.eq.s32.totalorder %s27, 0
      %p48 = por %p46, %p47
      %p49 = scmp.ne.s32.totalorder %s35, %s36
      %p50 = scmp.eq.s32.totalorder %s28, 1
      %p51 = por %p49, %p50
      %p53 = scmp.ne.s32.totalorder %s36, %s52
      %p54 = scmp.eq.s32.totalorder %s28, 0
      %p55 = por %p53, %p54
      %s56 = ssub.s32 %s22, %s29
      %p57 = scmp.eq.s32.totalorder %s56, 0
      %s59 = sadd.s32 %s58, 1
      %s60 = scalar_select %p57, %s58, %s59
      %p63 = pneg %p57
      %p64 = scmp.eq.s32.totalorder %s22, 1
      %p65 = por %p63, %p64
      %p66 = scmp.ne.s32.totalorder %s58, %s61
      %p67 = scmp.eq.s32.totalorder %s22, 0
      %p68 = por %p66, %p67
      %p69 = scmp.ne.s32.totalorder %s58, %s61
      %p70 = scmp.eq.s32.totalorder %s27, 1
      %p71 = por %p69, %p70
      %p72 = scmp.ne.s32.totalorder %s61, %s62
      %p73 = scmp.eq.s32.totalorder %s27, 0
      %p74 = por %p72, %p73
      %p75 = scmp.ne.s32.totalorder %s61, %s62
      %p76 = scmp.eq.s32.totalorder %s28, 1
      %p77 = por %p75, %p76
      %p79 = scmp.ne.s32.totalorder %s62, %s78
      %p80 = scmp.eq.s32.totalorder %s28, 0
      %p81 = por %p79, %p80
      %s82 = ssub.s32 %s22, %s29
      %p83 = scmp.eq.s32.totalorder %s82, 0
      %s85 = sadd.s32 %s84, 1
      %s86 = scalar_select %p83, %s84, %s85
      %p89 = pneg %p83
      %p90 = scmp.eq.s32.totalorder %s22, 1
      %p91 = por %p89, %p90
      %p92 = scmp.ne.s32.totalorder %s84, %s87
      %p93 = scmp.eq.s32.totalorder %s22, 0
      %p94 = por %p92, %p93
      %p95 = scmp.ne.s32.totalorder %s84, %s87
      %p96 = scmp.eq.s32.totalorder %s27, 1
      %p97 = por %p95, %p96
      %p98 = scmp.ne.s32.totalorder %s87, %s88
      %p99 = scmp.eq.s32.totalorder %s27, 0
      %p100 = por %p98, %p99
      %p101 = scmp.ne.s32.totalorder %s87, %s88
      %p102 = scmp.eq.s32.totalorder %s28, 1
      %p103 = por %p101, %p102
      %p105 = scmp.ne.s32.totalorder %s88, %s104
      %p106 = scmp.eq.s32.totalorder %s28, 0
      %p107 = por %p105, %p106
      %s108 = ssub.s32 %s22, %s29
      %p109 = scmp.eq.s32.totalorder %s108, 0
      %s111 = sadd.s32 %s110, 1
      %s112 = scalar_select %p109, %s110, %s111
      %p115 = pneg %p109
      %p116 = scmp.eq.s32.totalorder %s22, 1
      %p117 = por %p115, %p116
      %p118 = scmp.ne.s32.totalorder %s110, %s113
      %p119 = scmp.eq.s32.totalorder %s22, 0
      %p120 = por %p118, %p119
      %p121 = scmp.ne.s32.totalorder %s110, %s113
      %p122 = scmp.eq.s32.totalorder %s27, 1
      %p123 = por %p121, %p122
      %p124 = scmp.ne.s32.totalorder %s113, %s114
      %p125 = scmp.eq.s32.totalorder %s27, 0
      %p126 = por %p124, %p125
      %p127 = scmp.ne.s32.totalorder %s113, %s114
      %p128 = scmp.eq.s32.totalorder %s28, 1
      %p129 = por %p127, %p128
      %p131 = scmp.ne.s32.totalorder %s114, %s130
      %p132 = scmp.eq.s32.totalorder %s28, 0
      %p133 = por %p131, %p132
      %s134 = ssub.s32 %s22, %s29
      %p135 = scmp.eq.s32.totalorder %s134, 0
      %s137 = sadd.s32 %s136, 1
      %s138 = scalar_select %p135, %s136, %s137
      %p141 = pneg %p135
      %p142 = scmp.eq.s32.totalorder %s22, 1
      %p143 = por %p141, %p142
      %p144 = scmp.ne.s32.totalorder %s136, %s139
      %p145 = scmp.eq.s32.totalorder %s22, 0
      %p146 = por %p144, %p145
      %p147 = scmp.ne.s32.totalorder %s136, %s139
      %p148 = scmp.eq.s32.totalorder %s27, 1
      %p149 = por %p147, %p148
      %p150 = scmp.ne.s32.totalorder %s139, %s140
      %p151 = scmp.eq.s32.totalorder %s27, 0
      %p152 = por %p150, %p151
      %p153 = scmp.ne.s32.totalorder %s139, %s140
      %p154 = scmp.eq.s32.totalorder %s28, 1
      %p155 = por %p153, %p154
      %p157 = scmp.ne.s32.totalorder %s140, %s156
      %p158 = scmp.eq.s32.totalorder %s28, 0
      %p159 = por %p157, %p158
      %p160 = scmp.le.s32.totalorder 1, %s22
      %p161 = scmp.lt.s32.totalorder %s22, 3
      %p162 = pnand %p160, %p161
      %p163 = pneg %p162
      // Predicated region
      $region9: #{torch_transformer_decoder_forward.16} parent=5 // pred_check
        _
      $region10: #{torch_transformer_decoder_forward.16} parent=5 // pred_check_branch
        %165 = sbr.rel (%p162) target = $region12
      $region11: #{torch_transformer_decoder_forward.16} parent=5 // pred_region
        %s166 = ssub.s32 %s22, 1
      $region12: #{torch_transformer_decoder_forward.16} parent=5 // pred_fallthru
        _
      %p167 = scmp.lt.s32.totalorder %s22, 2
      // Predicated region
      $region13: #{torch_transformer_decoder_forward.16} parent=5 // pred_check
        %p168 = pneg %p167
      $region14: #{torch_transformer_decoder_forward.16} parent=5 // pred_check_branch
        %170 = sbr.rel (%p168) target = $region16
      $region15: #{torch_transformer_decoder_forward.16} parent=5 // pred_region
        // Predicated region
        $region17: #{torch_transformer_decoder_forward.16} parent=15 // pred_check
          %p171 = pneg %p42
        $region18: #{torch_transformer_decoder_forward.16} parent=15 // pred_check_branch
          %173 = sbr.rel (%p171) target = $region20
        $region19: #{torch_transformer_decoder_forward.16} parent=15 // pred_region
          %s174 = sand.u32 %s32, 1
          %s175 = scalar_lea.sflag [#allocation3], %s174
          %s176 = sand.u32 %s32, 1
          %s177 = smul.addr %s176, 16
          %s178 = scalar_lea.vmem [#allocation2], %s177
          %s180 = ssub.s32 256, 256
          %181 = vsyncadd %s175, %s180
          %s182 = smul.addr %s22, 4
          %s183 = smul.addr %s182, 64
          %s184 = scalar_lea.hbm %s0, %s183
          %s185 = sshll.u32 %s178, 4
          %s186 = int_to_ptr.vmem [resolvable:$true] %s185
          %191 = dma.hbm_to_vmem [thread:$0]  %s184, 256, %s186, %s175, 64, 64, 4
        $region20: #{torch_transformer_decoder_forward.16} parent=15 // pred_fallthru
          _
        // Predicated region
        $region21: #{torch_transformer_decoder_forward.16} parent=15 // pred_check
          %p192 = pneg %p68
        $region22: #{torch_transformer_decoder_forward.16} parent=15 // pred_check_branch
          %194 = sbr.rel (%p192) target = $region24
        $region23: #{torch_transformer_decoder_forward.16} parent=15 // pred_region
          %s195 = sand.u32 %s22, 1
          %s196 = scalar_lea.sflag [#allocation6], %s195
          %s197 = sand.u32 %s58, 1
          %s198 = smul.addr %s197, 16
          %s199 = scalar_lea.vmem [#allocation5], %s198
          %s201 = ssub.s32 256, 256
          %202 = vsyncadd %s196, %s201
          %s203 = smul.addr %s22, 4
          %s204 = smul.addr %s203, 64
          %s205 = scalar_lea.hbm %s1, %s204
          %s206 = sshll.u32 %s199, 4
          %s207 = int_to_ptr.vmem [resolvable:$true] %s206
          %212 = dma.hbm_to_vmem [thread:$0]  %s205, 256, %s207, %s196, 64, 64, 4
        $region24: #{torch_transformer_decoder_forward.16} parent=15 // pred_fallthru
          _
        // Predicated region
        $region25: #{torch_transformer_decoder_forward.16} parent=15 // pred_check
          %p213 = pneg %p94
        $region26: #{torch_transformer_decoder_forward.16} parent=15 // pred_check_branch
          %215 = sbr.rel (%p213) target = $region28
        $region27: #{torch_transformer_decoder_forward.16} parent=15 // pred_region
          %s216 = sand.u32 %s22, 1
          %s217 = scalar_lea.sflag [#allocation6], %s216
          %s218 = sand.u32 %s84, 1
          %s219 = smul.addr %s218, 16
          %s220 = scalar_lea.vmem [#allocation7], %s219
          %s222 = ssub.s32 256, 256
          %223 = vsyncadd %s217, %s222
          %s224 = smul.addr %s22, 4
          %s225 = smul.addr %s224, 64
          %s226 = scalar_lea.hbm %s2, %s225
          %s227 = sshll.u32 %s220, 4
          %s228 = int_to_ptr.vmem [resolvable:$true] %s227
          %233 = dma.hbm_to_vmem [thread:$0]  %s226, 256, %s228, %s217, 64, 64, 4
        $region28: #{torch_transformer_decoder_forward.16} parent=15 // pred_fallthru
          _
        // Predicated region
        $region29: #{torch_transformer_decoder_forward.16} parent=15 // pred_check
          %p234 = pneg %p120
        $region30: #{torch_transformer_decoder_forward.16} parent=15 // pred_check_branch
          %236 = sbr.rel (%p234) target = $region32
        $region31: #{torch_transformer_decoder_forward.16} parent=15 // pred_region
          %s237 = sand.u32 %s110, 1
          %s238 = scalar_lea.sflag [#allocation9], %s237
          %s239 = sand.u32 %s110, 1
          %s240 = smul.addr %s239, 8
          %s241 = scalar_lea.vmem [#allocation8], %s240
          %s243 = ssub.s32 128, 128
          %244 = vsyncadd %s238, %s243
          %s245 = smul.addr %s22, 128
          %s246 = scalar_lea.hbm %s3, %s245
          %s248 = sshll.u32 %s241, 4
          %s249 = int_to_ptr.vmem [resolvable:$true] %s248
          %251 = dma.hbm_to_vmem [thread:$0]  %s246, 128, %s249, %s238
        $region32: #{torch_transformer_decoder_forward.16} parent=15 // pred_fallthru
          _
      $region16: #{torch_transformer_decoder_forward.16} parent=5 // pred_fallthru
        _
      %p252 = scmp.le.s32.totalorder 1, %s22
      %p253 = scmp.lt.s32.totalorder %s22, 3
      %p254 = pnand %p252, %p253
      %p255 = pneg %p254
      // Predicated region
      $region33: #{torch_transformer_decoder_forward.16} parent=5 // pred_check
        _
      $region34: #{torch_transformer_decoder_forward.16} parent=5 // pred_check_branch
        %257 = sbr.rel (%p254) target = $region36
      $region35: #{torch_transformer_decoder_forward.16} parent=5 // pred_region
        %s258 = ssub.s32 %s22, 1
        %s259 = sand.u32 %s35, 1
        %s260 = scalar_lea.sflag [#allocation3], %s259
        %s261 = sand.u32 %s35, 1
        %s262 = smul.addr %s261, 16
        %s263 = scalar_lea.vmem [#allocation2], %s262
        // Predicated region
        $region37: #{torch_transformer_decoder_forward.16} parent=35 // pred_check
          %p264 = pneg %p48
        $region38: #{torch_transformer_decoder_forward.16} parent=35 // pred_check_branch
          %266 = sbr.rel (%p264) target = $region40
        $region39: #{torch_transformer_decoder_forward.16} parent=35 // pred_region
          %267 = dma.done %s260, 256
        $region40: #{torch_transformer_decoder_forward.16} parent=35 // pred_fallthru
          _
        %s268 = sand.u32 %s27, 1
        %s269 = scalar_lea.sflag [#allocation6], %s268
        %s270 = sand.u32 %s61, 1
        %s271 = smul.addr %s270, 16
        %s272 = scalar_lea.vmem [#allocation5], %s271
        // Predicated region
        $region41: #{torch_transformer_decoder_forward.16} parent=35 // pred_check
          %p273 = pneg %p74
        $region42: #{torch_transformer_decoder_forward.16} parent=35 // pred_check_branch
          %275 = sbr.rel (%p273) target = $region44
        $region43: #{torch_transformer_decoder_forward.16} parent=35 // pred_region
          %276 = dma.done %s269, 256
        $region44: #{torch_transformer_decoder_forward.16} parent=35 // pred_fallthru
          _
        %s277 = sand.u32 %s27, 1
        %s278 = scalar_lea.sflag [#allocation6], %s277
        %s279 = sand.u32 %s87, 1
        %s280 = smul.addr %s279, 16
        %s281 = scalar_lea.vmem [#allocation7], %s280
        // Predicated region
        $region45: #{torch_transformer_decoder_forward.16} parent=35 // pred_check
          %p282 = pneg %p100
        $region46: #{torch_transformer_decoder_forward.16} parent=35 // pred_check_branch
          %284 = sbr.rel (%p282) target = $region48
        $region47: #{torch_transformer_decoder_forward.16} parent=35 // pred_region
          %285 = dma.done %s278, 256
        $region48: #{torch_transformer_decoder_forward.16} parent=35 // pred_fallthru
          _
        %s286 = sand.u32 %s113, 1
        %s287 = scalar_lea.sflag [#allocation9], %s286
        %s288 = sand.u32 %s113, 1
        %s289 = smul.addr %s288, 8
        %s290 = scalar_lea.vmem [#allocation8], %s289
        // Predicated region
        $region49: #{torch_transformer_decoder_forward.16} parent=35 // pred_check
          %p291 = pneg %p126
        $region50: #{torch_transformer_decoder_forward.16} parent=35 // pred_check_branch
          %293 = sbr.rel (%p291) target = $region52
        $region51: #{torch_transformer_decoder_forward.16} parent=35 // pred_region
          %294 = dma.done %s287, 128
        $region52: #{torch_transformer_decoder_forward.16} parent=35 // pred_fallthru
          _
        %s295 = sand.u32 %s35, 1
        %s296 = scalar_lea.sflag [#allocation3], %s295
        %s297 = sand.u32 %s35, 1
        %s298 = smul.addr %s297, 16
        %s299 = scalar_lea.vmem [#allocation2], %s298
        %p300 = pneg %p48
        %p301 = pneg %p45
        %s302 = sand.u32 %s27, 1
        %s303 = scalar_lea.sflag [#allocation6], %s302
        %s304 = sand.u32 %s61, 1
        %s305 = smul.addr %s304, 16
        %s306 = scalar_lea.vmem [#allocation5], %s305
        %p307 = pneg %p74
        %p308 = pneg %p71
        %s309 = sand.u32 %s27, 1
        %s310 = scalar_lea.sflag [#allocation6], %s309
        %s311 = sand.u32 %s87, 1
        %s312 = smul.addr %s311, 16
        %s313 = scalar_lea.vmem [#allocation7], %s312
        %p314 = pneg %p100
        %p315 = pneg %p97
        %s316 = sand.u32 %s113, 1
        %s317 = scalar_lea.sflag [#allocation9], %s316
        %s318 = sand.u32 %s113, 1
        %s319 = smul.addr %s318, 8
        %s320 = scalar_lea.vmem [#allocation8], %s319
        %p321 = pneg %p126
        %p322 = pneg %p123
        %p323 = pneg %p152
        %p324 = pneg %p149
        %s325 = sand.u32 %s139, 1
        %s326 = scalar_lea.sflag [#allocation4], %s325
        %s327 = sand.u32 %s139, 1
        %s328 = smul.addr %s327, 32
        %s329 = scalar_lea.vmem [#allocation10], %s328
        %v331 = vld [vmem:[%s263] sm:$0xf]
        %v332 = vld [vmem:[%s263 + $0x4] sm:$0xf]
        %v333 = vld [vmem:[%s263 + $0x8] sm:$0xf]
        %v334 = vld [vmem:[%s263 + $0xc] sm:$0xf]
        %v335 = vld [vmem:[%s272] sm:$0xf]
        %v336 = vld [vmem:[%s272 + $0x4] sm:$0xf]
        %v337 = vld [vmem:[%s272 + $0x8] sm:$0xf]
        %v338 = vld [vmem:[%s272 + $0xc] sm:$0xf]
        %v339 = vld [vmem:[%s281] sm:$0xf]
        %v340 = vld [vmem:[%s281 + $0x4] sm:$0xf]
        %v341 = vld [vmem:[%s281 + $0x8] sm:$0xf]
        %v342 = vld [vmem:[%s281 + $0xc] sm:$0xf]
        %vm343 = vcmask 64512
        %v345 = vsel %vm343, %v331, 0
        %v348 = vsel %vm343, %v335, 0
        %350 = vmatprep.subr.bf16.mxu0 0
        %351 = vmatpush1.bf16.xpose.msra.mxu0 %v348
        %352 = vmatprep.subr.bf16.mxu0 0
        %353 = vmatpush1.bf16.xpose.msra.mxu0 0
        %354 = vmatprep.subr.bf16.mxu0 0
        %355 = vmatpush1.bf16.xpose.msra.mxu0 0
        %356 = vmatprep.subr.bf16.mxu0 0
        %357 = vmatpush1.bf16.xpose.msra.mxu0 0
        %358 = vmatprep.subr.bf16.mxu0 0
        %359 = vmatpush1.bf16.xpose.msra.mxu0 0
        %360 = vmatprep.subr.bf16.mxu0 0
        %361 = vmatpush1.bf16.xpose.msra.mxu0 0
        %362 = vmatprep.subr.bf16.mxu0 0
        %363 = vmatpush1.bf16.xpose.msra.mxu0 0
        %364 = vmatprep.subr.bf16.mxu0 0
        %365 = vmatpush1.bf16.xpose.msra.mxu0 0
        %366 = vmatprep.subr.bf16.mxu0 0
        %367 = vmatpush1.bf16.xpose.msra.mxu0 0
        %368 = vmatprep.subr.bf16.mxu0 0
        %369 = vmatpush1.bf16.xpose.msra.mxu0 0
        %370 = vmatprep.subr.bf16.mxu0 0
        %371 = vmatpush1.bf16.xpose.msra.mxu0 0
        %372 = vmatprep.subr.bf16.mxu0 0
        %373 = vmatpush1.bf16.xpose.msra.mxu0 0
        %374 = vmatprep.subr.bf16.mxu0 0
        %375 = vmatpush1.bf16.xpose.msra.mxu0 0
        %376 = vmatprep.subr.bf16.mxu0 0
        %377 = vmatpush1.bf16.xpose.msra.mxu0 0
        %378 = vmatprep.subr.bf16.mxu0 0
        %379 = vmatpush1.bf16.xpose.msra.mxu0 0
        %380 = vmatprep.subr.bf16.mxu0 0
        %381 = vmatpush1.bf16.xpose.msra.mxu0 0
        %382 = vmatprep.mubr.bf16.mxu0 0
        %383 = vmatmul.mubr.bf16.gmra.mrb[0].mxu0 %v345
        %v384 = vpop.f32.mrb[0].mxu0
        %v385 = vadd.f32 0.0, %v384
        %v386 = vpop.f32.mrb[0].mxu0
        %v387 = vpop.f32.mrb[0].mxu0
        %v388 = vpop.f32.mrb[0].mxu0
        %389 = vdwg.mxu0
        %v391 = vsel %vm343, %v332, 0
        %v394 = vsel %vm343, %v336, 0
        %396 = vmatprep.subr.bf16.mxu0 0
        %397 = vmatpush1.bf16.xpose.msra.mxu0 %v394
        %398 = vmatprep.subr.bf16.mxu0 0
        %399 = vmatpush1.bf16.xpose.msra.mxu0 0
        %400 = vmatprep.subr.bf16.mxu0 0
        %401 = vmatpush1.bf16.xpose.msra.mxu0 0
        %402 = vmatprep.subr.bf16.mxu0 0
        %403 = vmatpush1.bf16.xpose.msra.mxu0 0
        %404 = vmatprep.subr.bf16.mxu0 0
        %405 = vmatpush1.bf16.xpose.msra.mxu0 0
        %406 = vmatprep.subr.bf16.mxu0 0
        %407 = vmatpush1.bf16.xpose.msra.mxu0 0
        %408 = vmatprep.subr.bf16.mxu0 0
        %409 = vmatpush1.bf16.xpose.msra.mxu0 0
        %410 = vmatprep.subr.bf16.mxu0 0
        %411 = vmatpush1.bf16.xpose.msra.mxu0 0
        %412 = vmatprep.subr.bf16.mxu0 0
        %413 = vmatpush1.bf16.xpose.msra.mxu0 0
        %414 = vmatprep.subr.bf16.mxu0 0
        %415 = vmatpush1.bf16.xpose.msra.mxu0 0
        %416 = vmatprep.subr.bf16.mxu0 0
        %417 = vmatpush1.bf16.xpose.msra.mxu0 0
        %418 = vmatprep.subr.bf16.mxu0 0
        %419 = vmatpush1.bf16.xpose.msra.mxu0 0
        %420 = vmatprep.subr.bf16.mxu0 0
        %421 = vmatpush1.bf16.xpose.msra.mxu0 0
        %422 = vmatprep.subr.bf16.mxu0 0
        %423 = vmatpush1.bf16.xpose.msra.mxu0 0
        %424 = vmatprep.subr.bf16.mxu0 0
        %425 = vmatpush1.bf16.xpose.msra.mxu0 0
        %426 = vmatprep.subr.bf16.mxu0 0
        %427 = vmatpush1.bf16.xpose.msra.mxu0 0
        %428 = vmatprep.mubr.bf16.mxu0 0
        %429 = vmatmul.mubr.bf16.gmra.mrb[0].mxu0 %v391
        %v430 = vpop.f32.mrb[0].mxu0
        %v431 = vadd.f32 0.0, %v430
        %v432 = vpop.f32.mrb[0].mxu0
        %v433 = vpop.f32.mrb[0].mxu0
        %v434 = vpop.f32.mrb[0].mxu0
        %435 = vdwg.mxu0
        %v437 = vsel %vm343, %v333, 0
        %v440 = vsel %vm343, %v337, 0
        %442 = vmatprep.subr.bf16.mxu0 0
        %443 = vmatpush1.bf16.xpose.msra.mxu0 %v440
        %444 = vmatprep.subr.bf16.mxu0 0
        %445 = vmatpush1.bf16.xpose.msra.mxu0 0
        %446 = vmatprep.subr.bf16.mxu0 0
        %447 = vmatpush1.bf16.xpose.msra.mxu0 0
        %448 = vmatprep.subr.bf16.mxu0 0
        %449 = vmatpush1.bf16.xpose.msra.mxu0 0
        %450 = vmatprep.subr.bf16.mxu0 0
        %451 = vmatpush1.bf16.xpose.msra.mxu0 0
        %452 = vmatprep.subr.bf16.mxu0 0
        %453 = vmatpush1.bf16.xpose.msra.mxu0 0
        %454 = vmatprep.subr.bf16.mxu0 0
        %455 = vmatpush1.bf16.xpose.msra.mxu0 0
        %456 = vmatprep.subr.bf16.mxu0 0
        %457 = vmatpush1.bf16.xpose.msra.mxu0 0
        %458 = vmatprep.subr.bf16.mxu0 0
        %459 = vmatpush1.bf16.xpose.msra.mxu0 0
        %460 = vmatprep.subr.bf16.mxu0 0
        %461 = vmatpush1.bf16.xpose.msra.mxu0 0
        %462 = vmatprep.subr.bf16.mxu0 0
        %463 = vmatpush1.bf16.xpose.msra.mxu0 0
        %464 = vmatprep.subr.bf16.mxu0 0
        %465 = vmatpush1.bf16.xpose.msra.mxu0 0
        %466 = vmatprep.subr.bf16.mxu0 0
        %467 = vmatpush1.bf16.xpose.msra.mxu0 0
        %468 = vmatprep.subr.bf16.mxu0 0
        %469 = vmatpush1.bf16.xpose.msra.mxu0 0
        %470 = vmatprep.subr.bf16.mxu0 0
        %471 = vmatpush1.bf16.xpose.msra.mxu0 0
        %472 = vmatprep.subr.bf16.mxu0 0
        %473 = vmatpush1.bf16.xpose.msra.mxu0 0
        %474 = vmatprep.mubr.bf16.mxu0 0
        %475 = vmatmul.mubr.bf16.gmra.mrb[0].mxu0 %v437
        %v476 = vpop.f32.mrb[0].mxu0
        %v477 = vadd.f32 0.0, %v476
        %v478 = vpop.f32.mrb[0].mxu0
        %v479 = vpop.f32.mrb[0].mxu0
        %v480 = vpop.f32.mrb[0].mxu0
        %481 = vdwg.mxu0
        %v483 = vsel %vm343, %v334, 0
        %v486 = vsel %vm343, %v338, 0
        %488 = vmatprep.subr.bf16.mxu0 0
        %489 = vmatpush1.bf16.xpose.msra.mxu0 %v486
        %490 = vmatprep.subr.bf16.mxu0 0
        %491 = vmatpush1.bf16.xpose.msra.mxu0 0
        %492 = vmatprep.subr.bf16.mxu0 0
        %493 = vmatpush1.bf16.xpose.msra.mxu0 0
        %494 = vmatprep.subr.bf16.mxu0 0
        %495 = vmatpush1.bf16.xpose.msra.mxu0 0
        %496 = vmatprep.subr.bf16.mxu0 0
        %497 = vmatpush1.bf16.xpose.msra.mxu0 0
        %498 = vmatprep.subr.bf16.mxu0 0
        %499 = vmatpush1.bf16.xpose.msra.mxu0 0
        %500 = vmatprep.subr.bf16.mxu0 0
        %501 = vmatpush1.bf16.xpose.msra.mxu0 0
        %502 = vmatprep.subr.bf16.mxu0 0
        %503 = vmatpush1.bf16.xpose.msra.mxu0 0
        %504 = vmatprep.subr.bf16.mxu0 0
        %505 = vmatpush1.bf16.xpose.msra.mxu0 0
        %506 = vmatprep.subr.bf16.mxu0 0
        %507 = vmatpush1.bf16.xpose.msra.mxu0 0
        %508 = vmatprep.subr.bf16.mxu0 0
        %509 = vmatpush1.bf16.xpose.msra.mxu0 0
        %510 = vmatprep.subr.bf16.mxu0 0
        %511 = vmatpush1.bf16.xpose.msra.mxu0 0
        %512 = vmatprep.subr.bf16.mxu0 0
        %513 = vmatpush1.bf16.xpose.msra.mxu0 0
        %514 = vmatprep.subr.bf16.mxu0 0
        %515 = vmatpush1.bf16.xpose.msra.mxu0 0
        %516 = vmatprep.subr.bf16.mxu0 0
        %517 = vmatpush1.bf16.xpose.msra.mxu0 0
        %518 = vmatprep.subr.bf16.mxu0 0
        %519 = vmatpush1.bf16.xpose.msra.mxu0 0
        %520 = vmatprep.mubr.bf16.mxu0 0
        %521 = vmatmul.mubr.bf16.gmra.mrb[0].mxu0 %v483
        %v522 = vpop.f32.mrb[0].mxu0
        %v523 = vadd.f32 0.0, %v522
        %v524 = vpop.f32.mrb[0].mxu0
        %v525 = vpop.f32.mrb[0].mxu0
        %v526 = vpop.f32.mrb[0].mxu0
        %527 = vdwg.mxu0
        %v528 = vmul.f32 %v385, 0.35355338
        %v529 = vmul.f32 %v431, 0.35355338
        %v530 = vmul.f32 %v477, 0.35355338
        %v531 = vmul.f32 %v523, 0.35355338
        %v532 = vld [vmem:[%s290] sm:$0xff]
        %v533 = vadd.f32 %v528, %v532
        %v534 = vadd.f32 %v529, %v532
        %v535 = vadd.f32 %v530, %v532
        %v536 = vadd.f32 %v531, %v532
        %v537 = vsel %vm343, %v533, -inf
        %538 = vmax.xlane.f32.xlu0 %v537
        %v539 = vpop.xlane.xlu0 %538
        %v540 = vsel %vm343, %v534, -inf
        %541 = vmax.xlane.f32.xlu0 %v540
        %v542 = vpop.xlane.xlu0 %541
        %v543 = vsel %vm343, %v535, -inf
        %544 = vmax.xlane.f32.xlu0 %v543
        %v545 = vpop.xlane.xlu0 %544
        %v546 = vsel %vm343, %v536, -inf
        %547 = vmax.xlane.f32.xlu0 %v546
        %v548 = vpop.xlane.xlu0 %547
        %v549 = vsub.f32 %v533, %v539
        %v550 = vsub.f32 %v534, %v542
        %v551 = vsub.f32 %v535, %v545
        %v552 = vsub.f32 %v536, %v548
        %v553 = vmul.f32 %v549, 1.442695
        %v554 = vpow.pop %v553
        %v555 = vmul.f32 %v550, 1.442695
        %v556 = vpow.pop %v555
        %v557 = vmul.f32 %v551, 1.442695
        %v558 = vpow.pop %v557
        %v559 = vmul.f32 %v552, 1.442695
        %v560 = vpow.pop %v559
        %v561 = vsel %vm343, %v554, 0.0
        %562 = vadd.xlane.f32.xlu0 %v561
        %v563 = vpop.xlane.xlu0 %562
        %v564 = vsel %vm343, %v556, 0.0
        %565 = vadd.xlane.f32.xlu0 %v564
        %v566 = vpop.xlane.xlu0 %565
        %v567 = vsel %vm343, %v558, 0.0
        %568 = vadd.xlane.f32.xlu0 %v567
        %v569 = vpop.xlane.xlu0 %568
        %v570 = vsel %vm343, %v560, 0.0
        %571 = vadd.xlane.f32.xlu0 %v570
        %v572 = vpop.xlane.xlu0 %571
        %v573 = vrcp.pop %v563
        %v574 = vrcp.pop %v566
        %v575 = vrcp.pop %v569
        %v576 = vrcp.pop %v572
        %v577 = vmul.f32 %v554, %v573
        %v578 = vmul.f32 %v556, %v574
        %v579 = vmul.f32 %v558, %v575
        %v580 = vmul.f32 %v560, %v576
        %v581 = vpack.c.bf16 %v577, %v577
        %v582 = vpack.c.bf16 %v578, %v578
        %v583 = vpack.c.bf16 %v579, %v579
        %v584 = vpack.c.bf16 %v580, %v580
        %v586 = vsel %vm343, %v581, 0
        %vm588 = vcmask 1043456
        %v590 = vsel %vm588, %v339, 0
        %592 = vmatprep.subr.bf16.mxu0 0
        %593 = vmatpush1.bf16.msra.mxu0 %v590
        %594 = vmatprep.subr.bf16.mxu0 0
        %595 = vmatpush1.bf16.msra.mxu0 0
        %596 = vmatprep.subr.bf16.mxu0 0
        %597 = vmatpush1.bf16.msra.mxu0 0
        %598 = vmatprep.subr.bf16.mxu0 0
        %599 = vmatpush1.bf16.msra.mxu0 0
        %600 = vmatprep.subr.bf16.mxu0 0
        %601 = vmatpush1.bf16.msra.mxu0 0
        %602 = vmatprep.subr.bf16.mxu0 0
        %603 = vmatpush1.bf16.msra.mxu0 0
        %604 = vmatprep.subr.bf16.mxu0 0
        %605 = vmatpush1.bf16.msra.mxu0 0
        %606 = vmatprep.subr.bf16.mxu0 0
        %607 = vmatpush1.bf16.msra.mxu0 0
        %608 = vmatprep.subr.bf16.mxu0 0
        %609 = vmatpush1.bf16.msra.mxu0 0
        %610 = vmatprep.subr.bf16.mxu0 0
        %611 = vmatpush1.bf16.msra.mxu0 0
        %612 = vmatprep.subr.bf16.mxu0 0
        %613 = vmatpush1.bf16.msra.mxu0 0
        %614 = vmatprep.subr.bf16.mxu0 0
        %615 = vmatpush1.bf16.msra.mxu0 0
        %616 = vmatprep.subr.bf16.mxu0 0
        %617 = vmatpush1.bf16.msra.mxu0 0
        %618 = vmatprep.subr.bf16.mxu0 0
        %619 = vmatpush1.bf16.msra.mxu0 0
        %620 = vmatprep.subr.bf16.mxu0 0
        %621 = vmatpush1.bf16.msra.mxu0 0
        %622 = vmatprep.subr.bf16.mxu0 0
        %623 = vmatpush1.bf16.msra.mxu0 0
        %624 = vmatprep.mubr.bf16.mxu0 0
        %625 = vmatmul.mubr.bf16.gmra.mrb[0].mxu0 %v586
        %v626 = vpop.f32.mrb[0].mxu0
        %v627 = vadd.f32 0.0, %v626
        %v628 = vpop.f32.mrb[0].mxu0
        %v629 = vpop.f32.mrb[0].mxu0
        %v630 = vpop.f32.mrb[0].mxu0
        %631 = vdwg.mxu0
        %v633 = vsel %vm343, %v582, 0
        %v636 = vsel %vm588, %v340, 0
        %638 = vmatprep.subr.bf16.mxu0 0
        %639 = vmatpush1.bf16.msra.mxu0 %v636
        %640 = vmatprep.subr.bf16.mxu0 0
        %641 = vmatpush1.bf16.msra.mxu0 0
        %642 = vmatprep.subr.bf16.mxu0 0
        %643 = vmatpush1.bf16.msra.mxu0 0
        %644 = vmatprep.subr.bf16.mxu0 0
        %645 = vmatpush1.bf16.msra.mxu0 0
        %646 = vmatprep.subr.bf16.mxu0 0
        %647 = vmatpush1.bf16.msra.mxu0 0
        %648 = vmatprep.subr.bf16.mxu0 0
        %649 = vmatpush1.bf16.msra.mxu0 0
        %650 = vmatprep.subr.bf16.mxu0 0
        %651 = vmatpush1.bf16.msra.mxu0 0
        %652 = vmatprep.subr.bf16.mxu0 0
        %653 = vmatpush1.bf16.msra.mxu0 0
        %654 = vmatprep.subr.bf16.mxu0 0
        %655 = vmatpush1.bf16.msra.mxu0 0
        %656 = vmatprep.subr.bf16.mxu0 0
        %657 = vmatpush1.bf16.msra.mxu0 0
        %658 = vmatprep.subr.bf16.mxu0 0
        %659 = vmatpush1.bf16.msra.mxu0 0
        %660 = vmatprep.subr.bf16.mxu0 0
        %661 = vmatpush1.bf16.msra.mxu0 0
        %662 = vmatprep.subr.bf16.mxu0 0
        %663 = vmatpush1.bf16.msra.mxu0 0
        %664 = vmatprep.subr.bf16.mxu0 0
        %665 = vmatpush1.bf16.msra.mxu0 0
        %666 = vmatprep.subr.bf16.mxu0 0
        %667 = vmatpush1.bf16.msra.mxu0 0
        %668 = vmatprep.subr.bf16.mxu0 0
        %669 = vmatpush1.bf16.msra.mxu0 0
        %670 = vmatprep.mubr.bf16.mxu0 0
        %671 = vmatmul.mubr.bf16.gmra.mrb[0].mxu0 %v633
        %v672 = vpop.f32.mrb[0].mxu0
        %v673 = vadd.f32 0.0, %v672
        %v674 = vpop.f32.mrb[0].mxu0
        %v675 = vpop.f32.mrb[0].mxu0
        %v676 = vpop.f32.mrb[0].mxu0
        %677 = vdwg.mxu0
        %v679 = vsel %vm343, %v583, 0
        %v682 = vsel %vm588, %v341, 0
        %684 = vmatprep.subr.bf16.mxu0 0
        %685 = vmatpush1.bf16.msra.mxu0 %v682
        %686 = vmatprep.subr.bf16.mxu0 0
        %687 = vmatpush1.bf16.msra.mxu0 0
        %688 = vmatprep.subr.bf16.mxu0 0
        %689 = vmatpush1.bf16.msra.mxu0 0
        %690 = vmatprep.subr.bf16.mxu0 0
        %691 = vmatpush1.bf16.msra.mxu0 0
        %692 = vmatprep.subr.bf16.mxu0 0
        %693 = vmatpush1.bf16.msra.mxu0 0
        %694 = vmatprep.subr.bf16.mxu0 0
        %695 = vmatpush1.bf16.msra.mxu0 0
        %696 = vmatprep.subr.bf16.mxu0 0
        %697 = vmatpush1.bf16.msra.mxu0 0
        %698 = vmatprep.subr.bf16.mxu0 0
        %699 = vmatpush1.bf16.msra.mxu0 0
        %700 = vmatprep.subr.bf16.mxu0 0
        %701 = vmatpush1.bf16.msra.mxu0 0
        %702 = vmatprep.subr.bf16.mxu0 0
        %703 = vmatpush1.bf16.msra.mxu0 0
        %704 = vmatprep.subr.bf16.mxu0 0
        %705 = vmatpush1.bf16.msra.mxu0 0
        %706 = vmatprep.subr.bf16.mxu0 0
        %707 = vmatpush1.bf16.msra.mxu0 0
        %708 = vmatprep.subr.bf16.mxu0 0
        %709 = vmatpush1.bf16.msra.mxu0 0
        %710 = vmatprep.subr.bf16.mxu0 0
        %711 = vmatpush1.bf16.msra.mxu0 0
        %712 = vmatprep.subr.bf16.mxu0 0
        %713 = vmatpush1.bf16.msra.mxu0 0
        %714 = vmatprep.subr.bf16.mxu0 0
        %715 = vmatpush1.bf16.msra.mxu0 0
        %716 = vmatprep.mubr.bf16.mxu0 0
        %717 = vmatmul.mubr.bf16.gmra.mrb[0].mxu0 %v679
        %v718 = vpop.f32.mrb[0].mxu0
        %v719 = vadd.f32 0.0, %v718
        %v720 = vpop.f32.mrb[0].mxu0
        %v721 = vpop.f32.mrb[0].mxu0
        %v722 = vpop.f32.mrb[0].mxu0
        %723 = vdwg.mxu0
        %v725 = vsel %vm343, %v584, 0
        %v728 = vsel %vm588, %v342, 0
        %730 = vmatprep.subr.bf16.mxu0 0
        %731 = vmatpush1.bf16.msra.mxu0 %v728
        %732 = vmatprep.subr.bf16.mxu0 0
        %733 = vmatpush1.bf16.msra.mxu0 0
        %734 = vmatprep.subr.bf16.mxu0 0
        %735 = vmatpush1.bf16.msra.mxu0 0
        %736 = vmatprep.subr.bf16.mxu0 0
        %737 = vmatpush1.bf16.msra.mxu0 0
        %738 = vmatprep.subr.bf16.mxu0 0
        %739 = vmatpush1.bf16.msra.mxu0 0
        %740 = vmatprep.subr.bf16.mxu0 0
        %741 = vmatpush1.bf16.msra.mxu0 0
        %742 = vmatprep.subr.bf16.mxu0 0
        %743 = vmatpush1.bf16.msra.mxu0 0
        %744 = vmatprep.subr.bf16.mxu0 0
        %745 = vmatpush1.bf16.msra.mxu0 0
        %746 = vmatprep.subr.bf16.mxu0 0
        %747 = vmatpush1.bf16.msra.mxu0 0
        %748 = vmatprep.subr.bf16.mxu0 0
        %749 = vmatpush1.bf16.msra.mxu0 0
        %750 = vmatprep.subr.bf16.mxu0 0
        %751 = vmatpush1.bf16.msra.mxu0 0
        %752 = vmatprep.subr.bf16.mxu0 0
        %753 = vmatpush1.bf16.msra.mxu0 0
        %754 = vmatprep.subr.bf16.mxu0 0
        %755 = vmatpush1.bf16.msra.mxu0 0
        %756 = vmatprep.subr.bf16.mxu0 0
        %757 = vmatpush1.bf16.msra.mxu0 0
        %758 = vmatprep.subr.bf16.mxu0 0
        %759 = vmatpush1.bf16.msra.mxu0 0
        %760 = vmatprep.subr.bf16.mxu0 0
        %761 = vmatpush1.bf16.msra.mxu0 0
        %762 = vmatprep.mubr.bf16.mxu0 0
        %763 = vmatmul.mubr.bf16.gmra.mrb[0].mxu0 %v725
        %v764 = vpop.f32.mrb[0].mxu0
        %v765 = vadd.f32 0.0, %v764
        %v766 = vpop.f32.mrb[0].mxu0
        %v767 = vpop.f32.mrb[0].mxu0
        %v768 = vpop.f32.mrb[0].mxu0
        %769 = vdwg.mxu0
        %770 = vst.msk [vmem:[%s329] sm:$0xff] %vm343, %v627
        %771 = vst.msk [vmem:[%s329 + $0x8] sm:$0xff] %vm343, %v673
        %772 = vst.msk [vmem:[%s329 + $0x10] sm:$0xff] %vm343, %v719
        %773 = vst.msk [vmem:[%s329 + $0x18] sm:$0xff] %vm343, %v765
        %s774 = sand.u32 %s139, 1
        %s775 = scalar_lea.sflag [#allocation4], %s774
        %s776 = sand.u32 %s139, 1
        %s777 = smul.addr %s776, 32
        %s778 = scalar_lea.vmem [#allocation10], %s777
        // Predicated region
        $region53: #{torch_transformer_decoder_forward.16} parent=35 // pred_check
          %p779 = pneg %p149
        $region54: #{torch_transformer_decoder_forward.16} parent=35 // pred_check_branch
          %781 = sbr.rel (%p779) target = $region56
        $region55: #{torch_transformer_decoder_forward.16} parent=35 // pred_region
          %s783 = ssub.s32 512, 512
          %784 = vsyncadd %s775, %s783
          %s785 = smul.addr %s27, 4
          %s786 = smul.addr %s785, 128
          %s787 = scalar_lea.hbm %s4, %s786
          %s788 = sshll.u32 %s778, 4
          %s789 = int_to_ptr.vmem [resolvable:$true] %s788
          %794 = dma.vmem_to_hbm [thread:$0]  %s789, 512, %s787, %s775, 128, 128, 8
        $region56: #{torch_transformer_decoder_forward.16} parent=35 // pred_fallthru
          _
      $region36: #{torch_transformer_decoder_forward.16} parent=5 // pred_fallthru
        _
      %p795 = scmp.le.s32.totalorder 2, %s22
      // Predicated region
      $region57: #{torch_transformer_decoder_forward.16} parent=5 // pred_check
        %p796 = pneg %p795
      $region58: #{torch_transformer_decoder_forward.16} parent=5 // pred_check_branch
        %798 = sbr.rel (%p796) target = $region60
      $region59: #{torch_transformer_decoder_forward.16} parent=5 // pred_region
        %s799 = ssub.s32 %s22, 2
        // Predicated region
        $region61: #{torch_transformer_decoder_forward.16} parent=59 // pred_check
          %p800 = pneg %p155
        $region62: #{torch_transformer_decoder_forward.16} parent=59 // pred_check_branch
          %802 = sbr.rel (%p800) target = $region64
        $region63: #{torch_transformer_decoder_forward.16} parent=59 // pred_region
          %s803 = sand.u32 %s140, 1
          %s804 = scalar_lea.sflag [#allocation4], %s803
          %s805 = sand.u32 %s140, 1
          %s806 = smul.addr %s805, 32
          %s807 = scalar_lea.vmem [#allocation10], %s806
          %808 = dma.done %s804, 512
        $region64: #{torch_transformer_decoder_forward.16} parent=59 // pred_fallthru
          _
      $region60: #{torch_transformer_decoder_forward.16} parent=5 // pred_fallthru
        _
    $region6: #{torch_transformer_decoder_forward.16} parent=1 // loop_footer
      %s26 = sadd.s32 1, %s22
    $region7: #{torch_transformer_decoder_forward.16} parent=1 // loop_footer_branch
      %21 = sbr.rel target = $region3
    $region8: #{torch_transformer_decoder_forward.16} parent=1 // loop_exit
      _
    %809 = vsyncpa [#allocation3], 1
    %s810 = scalar_lea.sflag [#allocation3], 1
    %811 = vsyncpa %s810, 1
    %812 = vsyncpa [#allocation6], 1
    %s813 = scalar_lea.sflag [#allocation6], 1
    %814 = vsyncpa %s813, 1
    %815 = vsyncpa [#allocation9], 1
    %s816 = scalar_lea.sflag [#allocation9], 1
    %817 = vsyncpa %s816, 1
    %818 = vsyncpa [#allocation4], 1
    %s819 = scalar_lea.sflag [#allocation4], 1
    %820 = vsyncpa %s819, 1

// kernel: torch_transformer_decoder_forward.19
$region0: #{torch_transformer_decoder_forward.19}
  #allocation0 [shape = 'u32[]', space=smem, size = 0x4, offset = 0x4, fixed_abs, tag = 'smem constant byte address 0x4 - core index']
  #allocation1 [shape = 'u32[144,128]{1,0:T(1,128)}', space=vmem, size = 0x12000, scoped, tag = 'internal scratch']
  #allocation2 [shape = 'f32[16,32]{1,0:T(8,128)}', space=vmem, size = 0x2000, scoped, tag = 'scratch operand']
  %s0 = inlined_call_operand.hbm [shape: bf16[16,32], index: 0, kind: input, shape index: {}]
  %s1 = inlined_call_operand.hbm [shape: bf16[32,64], index: 1, kind: input, shape index: {}]
  %s2 = inlined_call_operand.hbm [shape: f32[1,64], index: 2, kind: input, shape index: {}]
  %s3 = inlined_call_operand.hbm [shape: bf16[64,32], index: 3, kind: input, shape index: {}]
  %s4 = inlined_call_operand.hbm [shape: f32[1,32], index: 4, kind: input, shape index: {}]
  %s5 = inlined_call_operand.hbm [shape: f32[16,32], index: 5, kind: output, shape index: {}]
  %s6 = sld [smem:[#allocation0]]
  $region58: #{torch_transformer_decoder_forward.19} parent=0
    _
  %s8 = ssub.s32 1, %s6
  %s9 = scalar_select 0, %s8, %s6
  $region1: #{torch_transformer_decoder_forward.19} parent=0
    #allocation3 [shape = 'u8[4096]{0}', space=vmem, size = 0x1000, scoped, tag = 'input window, operand 0, single buffered']
    #allocation4 [shape = 's32[1]{0}', space=sflag, size = 0x4, scoped, tag = 'scoped memory for torch_transformer_decoder_forward.19']
    #allocation5 [shape = 's32[1]{0}', space=sflag, size = 0x4, scoped, tag = 'scoped memory for torch_transformer_decoder_forward.19']
    #allocation6 [shape = 'u8[8192]{0}', space=vmem, size = 0x2000, scoped, tag = 'input window, operand 1, single buffered']
    #allocation7 [shape = 's32[1]{0}', space=sflag, size = 0x4, scoped, tag = 'scoped memory for torch_transformer_decoder_forward.19']
    #allocation8 [shape = 'u8[512]{0}', space=vmem, size = 0x400, scoped, tag = 'input window, operand 2, single buffered']
    #allocation9 [shape = 'u8[16384]{0}', space=vmem, size = 0x4000, scoped, tag = 'input window, operand 3, single buffered']
    #allocation10 [shape = 's32[1]{0}', space=sflag, size = 0x4, scoped, tag = 'scoped memory for torch_transformer_decoder_forward.19']
    #allocation11 [shape = 'u8[512]{0}', space=vmem, size = 0x400, scoped, tag = 'input window, operand 4, single buffered']
    #allocation12 [shape = 'u8[8192]{0}', space=vmem, size = 0x2000, scoped, tag = 'output window, operand 0, single buffered']
    %10 = vsyncpa [#allocation4], 0
    %11 = vsyncpa [#allocation7], 0
    %12 = vsyncpa [#allocation10], 0
    %13 = vsyncpa [#allocation5], 0
    // Predicated region
    $region2: #{torch_transformer_decoder_forward.19} parent=1 // pred_check
      _
    $region3: #{torch_transformer_decoder_forward.19} parent=1 // pred_check_branch
      %15 = sbr.rel (0) target = $region5
    $region4: #{torch_transformer_decoder_forward.19} parent=1 // pred_region
      %s17 = ssub.s32 128, 128
      %18 = vsyncadd [#allocation4], %s17
      %s19 = sshll.u32 [#allocation3], 4
      %s20 = int_to_ptr.vmem [resolvable:$true] %s19
      %25 = dma.hbm_to_vmem [thread:$0]  %s0, 128, %s20, [#allocation4], 64, 64, 4
    $region5: #{torch_transformer_decoder_forward.19} parent=1 // pred_fallthru
      _
    // Predicated region
    $region6: #{torch_transformer_decoder_forward.19} parent=1 // pred_check
      _
    $region7: #{torch_transformer_decoder_forward.19} parent=1 // pred_check_branch
      %27 = sbr.rel (0) target = $region9
    $region8: #{torch_transformer_decoder_forward.19} parent=1 // pred_region
      %s29 = ssub.s32 256, 256
      %30 = vsyncadd [#allocation7], %s29
      %s31 = sshll.u32 [#allocation6], 4
      %s32 = int_to_ptr.vmem [resolvable:$true] %s31
      %37 = dma.hbm_to_vmem [thread:$0]  %s1, 256, %s32, [#allocation7], 64, 64, 4
    $region9: #{torch_transformer_decoder_forward.19} parent=1 // pred_fallthru
      _
    // Predicated region
    $region10: #{torch_transformer_decoder_forward.19} parent=1 // pred_check
      _
    $region11: #{torch_transformer_decoder_forward.19} parent=1 // pred_check_branch
      %39 = sbr.rel (0) target = $region13
    $region12: #{torch_transformer_decoder_forward.19} parent=1 // pred_region
      %s41 = ssub.s32 16, 16
      %42 = vsyncadd [#allocation7], %s41
      %s44 = sshll.u32 [#allocation8], 4
      %s45 = int_to_ptr.vmem [resolvable:$true] %s44
      %47 = dma.hbm_to_vmem [thread:$0]  %s2, 16, %s45, [#allocation7]
    $region13: #{torch_transformer_decoder_forward.19} parent=1 // pred_fallthru
      _
    // Predicated region
    $region14: #{torch_transformer_decoder_forward.19} parent=1 // pred_check
      _
    $region15: #{torch_transformer_decoder_forward.19} parent=1 // pred_check_branch
      %49 = sbr.rel (0) target = $region17
    $region16: #{torch_transformer_decoder_forward.19} parent=1 // pred_region
      %s51 = ssub.s32 512, 512
      %52 = vsyncadd [#allocation10], %s51
      %s53 = sshll.u32 [#allocation9], 4
      %s54 = int_to_ptr.vmem [resolvable:$true] %s53
      %59 = dma.hbm_to_vmem [thread:$0]  %s3, 512, %s54, [#allocation10], 64, 64, 4
    $region17: #{torch_transformer_decoder_forward.19} parent=1 // pred_fallthru
      _
    // Predicated region
    $region18: #{torch_transformer_decoder_forward.19} parent=1 // pred_check
      _
    $region19: #{torch_transformer_decoder_forward.19} parent=1 // pred_check_branch
      %61 = sbr.rel (0) target = $region21
    $region20: #{torch_transformer_decoder_forward.19} parent=1 // pred_region
      %s63 = ssub.s32 16, 16
      %64 = vsyncadd [#allocation10], %s63
      %s66 = sshll.u32 [#allocation11], 4
      %s67 = int_to_ptr.vmem [resolvable:$true] %s66
      %69 = dma.hbm_to_vmem [thread:$0]  %s4, 16, %s67, [#allocation10]
    $region21: #{torch_transformer_decoder_forward.19} parent=1 // pred_fallthru
      _
    // Predicated region
    $region22: #{torch_transformer_decoder_forward.19} parent=1 // pred_check
      _
    $region23: #{torch_transformer_decoder_forward.19} parent=1 // pred_check_branch
      %71 = sbr.rel (0) target = $region25
    $region24: #{torch_transformer_decoder_forward.19} parent=1 // pred_region
      %72 = dma.done [#allocation4], 128
    $region25: #{torch_transformer_decoder_forward.19} parent=1 // pred_fallthru
      _
    // Predicated region
    $region26: #{torch_transformer_decoder_forward.19} parent=1 // pred_check
      _
    $region27: #{torch_transformer_decoder_forward.19} parent=1 // pred_check_branch
      %74 = sbr.rel (0) target = $region29
    $region28: #{torch_transformer_decoder_forward.19} parent=1 // pred_region
      %75 = dma.done [#allocation7], 256
    $region29: #{torch_transformer_decoder_forward.19} parent=1 // pred_fallthru
      _
    // Predicated region
    $region30: #{torch_transformer_decoder_forward.19} parent=1 // pred_check
      _
    $region31: #{torch_transformer_decoder_forward.19} parent=1 // pred_check_branch
      %77 = sbr.rel (0) target = $region33
    $region32: #{torch_transformer_decoder_forward.19} parent=1 // pred_region
      %78 = dma.done [#allocation7], 16
    $region33: #{torch_transformer_decoder_forward.19} parent=1 // pred_fallthru
      _
    // Predicated region
    $region34: #{torch_transformer_decoder_forward.19} parent=1 // pred_check
      _
    $region35: #{torch_transformer_decoder_forward.19} parent=1 // pred_check_branch
      %80 = sbr.rel (0) target = $region37
    $region36: #{torch_transformer_decoder_forward.19} parent=1 // pred_region
      %81 = dma.done [#allocation10], 512
    $region37: #{torch_transformer_decoder_forward.19} parent=1 // pred_fallthru
      _
    // Predicated region
    $region38: #{torch_transformer_decoder_forward.19} parent=1 // pred_check
      _
    $region39: #{torch_transformer_decoder_forward.19} parent=1 // pred_check_branch
      %83 = sbr.rel (0) target = $region41
    $region40: #{torch_transformer_decoder_forward.19} parent=1 // pred_region
      %84 = dma.done [#allocation10], 16
    $region41: #{torch_transformer_decoder_forward.19} parent=1 // pred_fallthru
      _
    %p86 = scmp.eq.s32.totalorder 0, 0
    // Predicated region
    $region42: #{torch_transformer_decoder_forward.19} parent=1 // pred_check
      %p87 = pneg %p86
    $region43: #{torch_transformer_decoder_forward.19} parent=1 // pred_check_branch
      %89 = sbr.rel (%p87) target = $region45
    $region44: #{torch_transformer_decoder_forward.19} parent=1 // pred_region
      %vm90 = vcmask 261120
      %91 = vst.msk [vmem:[#allocation2] sm:$0xff] %vm90, 0.0
      %92 = vst.msk [vmem:[#allocation2 + $0x8] sm:$0xff] %vm90, 0.0
    $region45: #{torch_transformer_decoder_forward.19} parent=1 // pred_fallthru
      _
    %v93 = vld [vmem:[#allocation3] sm:$0xf]
    %v94 = vld [vmem:[#allocation3 + $0x4] sm:$0xf]
    %v95 = vld [vmem:[#allocation6] sm:$0xf]
    %v96 = vld [vmem:[#allocation6 + $0x4] sm:$0xf]
    %v97 = vld [vmem:[#allocation6 + $0x8] sm:$0xf]
    %v98 = vld [vmem:[#allocation6 + $0xc] sm:$0xf]
    %v99 = vld [vmem:[#allocation8] sm:$0x1]
    %v101 = vlaneseq
    %v102 = vshrl.u32 %v101, 7
    %v103 = vsub.s32 0, %v102
    %v104 = vrot.slane %v99, %v103
    %v108 = vunpack.c.l.b16 %v93
    %v109 = vunpack.c.l.b16 %v94
    %v110 = vpack.c.b16 %v109, %v108
    %v115 = vunpack.c.l.b16 %v95
    %v116 = vunpack.c.l.b16 %v96
    %v117 = vunpack.c.l.b16 %v97
    %v118 = vunpack.c.l.b16 %v98
    %v119 = vpack.c.b16 %v116, %v115
    %v120 = vpack.c.b16 %v118, %v117
    %vm123 = vcmask 261120
    %v125 = vsel %vm123, %v110, 0
    %127 = vmatprep.subr.bf16.mxu0 0
    %128 = vmatpush1.bf16.msra.mxu0 %v119
    %129 = vmatprep.subr.bf16.mxu0 0
    %130 = vmatpush1.bf16.msra.mxu0 %v120
    %131 = vmatprep.subr.bf16.mxu0 0
    %132 = vmatpush1.bf16.msra.mxu0 0
    %133 = vmatprep.subr.bf16.mxu0 0
    %134 = vmatpush1.bf16.msra.mxu0 0
    %135 = vmatprep.subr.bf16.mxu0 0
    %136 = vmatpush1.bf16.msra.mxu0 0
    %137 = vmatprep.subr.bf16.mxu0 0
    %138 = vmatpush1.bf16.msra.mxu0 0
    %139 = vmatprep.subr.bf16.mxu0 0
    %140 = vmatpush1.bf16.msra.mxu0 0
    %141 = vmatprep.subr.bf16.mxu0 0
    %142 = vmatpush1.bf16.msra.mxu0 0
    %143 = vmatprep.subr.bf16.mxu0 0
    %144 = vmatpush1.bf16.msra.mxu0 0
    %145 = vmatprep.subr.bf16.mxu0 0
    %146 = vmatpush1.bf16.msra.mxu0 0
    %147 = vmatprep.subr.bf16.mxu0 0
    %148 = vmatpush1.bf16.msra.mxu0 0
    %149 = vmatprep.subr.bf16.mxu0 0
    %150 = vmatpush1.bf16.msra.mxu0 0
    %151 = vmatprep.subr.bf16.mxu0 0
    %152 = vmatpush1.bf16.msra.mxu0 0
    %153 = vmatprep.subr.bf16.mxu0 0
    %154 = vmatpush1.bf16.msra.mxu0 0
    %155 = vmatprep.subr.bf16.mxu0 0
    %156 = vmatpush1.bf16.msra.mxu0 0
    %157 = vmatprep.subr.bf16.mxu0 0
    %158 = vmatpush1.bf16.msra.mxu0 0
    %159 = vmatprep.mubr.bf16.mxu0 0
    %160 = vmatmul.mubr.bf16.gmra.mrb[0].mxu0 %v125
    %v161 = vpop.f32.mrb[0].mxu0
    %v162 = vadd.f32 %v104, %v161
    %v163 = vpop.f32.mrb[0].mxu0
    %v164 = vpop.f32.mrb[0].mxu0
    %v165 = vadd.f32 %v104, %v164
    %v166 = vpop.f32.mrb[0].mxu0
    %167 = vdwg.mxu0
    %v168 = vmax.f32 %v162, 0.0
    %v169 = vmax.f32 %v165, 0.0
    %v170 = vld [vmem:[#allocation2] sm:$0xff]
    %v171 = vld [vmem:[#allocation2 + $0x8] sm:$0xff]
    %v172 = vpack.c.bf16 %v169, %v168
    %v173 = vld [vmem:[#allocation9] sm:$0xf]
    %v174 = vld [vmem:[#allocation9 + $0x4] sm:$0xf]
    %v175 = vld [vmem:[#allocation9 + $0x8] sm:$0xf]
    %v176 = vld [vmem:[#allocation9 + $0xc] sm:$0xf]
    %v177 = vld [vmem:[#allocation9 + $0x10] sm:$0xf]
    %v178 = vld [vmem:[#allocation9 + $0x14] sm:$0xf]
    %v179 = vld [vmem:[#allocation9 + $0x18] sm:$0xf]
    %v180 = vld [vmem:[#allocation9 + $0x1c] sm:$0xf]
    %v189 = vunpack.c.l.b16 %v173
    %v190 = vunpack.c.l.b16 %v174
    %v191 = vunpack.c.l.b16 %v175
    %v192 = vunpack.c.l.b16 %v176
    %v193 = vunpack.c.l.b16 %v177
    %v194 = vunpack.c.l.b16 %v178
    %v195 = vunpack.c.l.b16 %v179
    %v196 = vunpack.c.l.b16 %v180
    %v197 = vpack.c.b16 %v190, %v189
    %v198 = vpack.c.b16 %v192, %v191
    %v199 = vpack.c.b16 %v194, %v193
    %v200 = vpack.c.b16 %v196, %v195
    %vm205 = vcmask 523264
    %v207 = vsel %vm205, %v172, 0
    %209 = vmatprep.subr.bf16.mxu0 0
    %210 = vmatpush1.bf16.msra.mxu0 %v197
    %211 = vmatprep.subr.bf16.mxu0 0
    %212 = vmatpush1.bf16.msra.mxu0 %v198
    %213 = vmatprep.subr.bf16.mxu0 0
    %214 = vmatpush1.bf16.msra.mxu0 %v199
    %215 = vmatprep.subr.bf16.mxu0 0
    %216 = vmatpush1.bf16.msra.mxu0 %v200
    %217 = vmatprep.subr.bf16.mxu0 0
    %218 = vmatpush1.bf16.msra.mxu0 0
    %219 = vmatprep.subr.bf16.mxu0 0
    %220 = vmatpush1.bf16.msra.mxu0 0
    %221 = vmatprep.subr.bf16.mxu0 0
    %222 = vmatpush1.bf16.msra.mxu0 0
    %223 = vmatprep.subr.bf16.mxu0 0
    %224 = vmatpush1.bf16.msra.mxu0 0
    %225 = vmatprep.subr.bf16.mxu0 0
    %226 = vmatpush1.bf16.msra.mxu0 0
    %227 = vmatprep.subr.bf16.mxu0 0
    %228 = vmatpush1.bf16.msra.mxu0 0
    %229 = vmatprep.subr.bf16.mxu0 0
    %230 = vmatpush1.bf16.msra.mxu0 0
    %231 = vmatprep.subr.bf16.mxu0 0
    %232 = vmatpush1.bf16.msra.mxu0 0
    %233 = vmatprep.subr.bf16.mxu0 0
    %234 = vmatpush1.bf16.msra.mxu0 0
    %235 = vmatprep.subr.bf16.mxu0 0
    %236 = vmatpush1.bf16.msra.mxu0 0
    %237 = vmatprep.subr.bf16.mxu0 0
    %238 = vmatpush1.bf16.msra.mxu0 0
    %239 = vmatprep.subr.bf16.mxu0 0
    %240 = vmatpush1.bf16.msra.mxu0 0
    %241 = vmatprep.mubr.bf16.mxu0 0
    %242 = vmatmul.mubr.bf16.gmra.mrb[0].mxu0 %v207
    %v243 = vpop.f32.mrb[0].mxu0
    %v244 = vadd.f32 0.0, %v243
    %v245 = vpop.f32.mrb[0].mxu0
    %v246 = vpop.f32.mrb[0].mxu0
    %v247 = vadd.f32 0.0, %v246
    %v248 = vpop.f32.mrb[0].mxu0
    %249 = vdwg.mxu0
    %v250 = vadd.f32 %v170, %v244
    %v251 = vadd.f32 %v171, %v247
    %252 = vst.msk [vmem:[#allocation2] sm:$0xff] %vm123, %v250
    %253 = vst.msk [vmem:[#allocation2 + $0x8] sm:$0xff] %vm123, %v251
    // Predicated region
    $region46: #{torch_transformer_decoder_forward.19} parent=1 // pred_check
      %p254 = pneg %p86
    $region47: #{torch_transformer_decoder_forward.19} parent=1 // pred_check_branch
      %256 = sbr.rel (%p254) target = $region49
    $region48: #{torch_transformer_decoder_forward.19} parent=1 // pred_region
      %v257 = vld [vmem:[#allocation2] sm:$0xff]
      %v258 = vld [vmem:[#allocation2 + $0x8] sm:$0xff]
      %v259 = vld [vmem:[#allocation11] sm:$0x1]
      %v261 = vlaneseq
      %v262 = vshrl.u32 %v261, 7
      %v263 = vsub.s32 0, %v262
      %v264 = vrot.slane %v259, %v263
      %v266 = vadd.f32 %v257, %v264
      %v267 = vadd.f32 %v258, %v264
      %268 = vst.msk [vmem:[#allocation12] sm:$0xff] %vm123, %v266
      %269 = vst.msk [vmem:[#allocation12 + $0x8] sm:$0xff] %vm123, %v267
    $region49: #{torch_transformer_decoder_forward.19} parent=1 // pred_fallthru
      _
    // Predicated region
    $region50: #{torch_transformer_decoder_forward.19} parent=1 // pred_check
      _
    $region51: #{torch_transformer_decoder_forward.19} parent=1 // pred_check_branch
      %271 = sbr.rel (0) target = $region53
    $region52: #{torch_transformer_decoder_forward.19} parent=1 // pred_region
      %s273 = ssub.s32 256, 256
      %274 = vsyncadd [#allocation5], %s273
      %s275 = sshll.u32 [#allocation12], 4
      %s276 = int_to_ptr.vmem [resolvable:$true] %s275
      %281 = dma.vmem_to_hbm [thread:$0]  %s276, 256, %s5, [#allocation5], 128, 128, 8
    $region53: #{torch_transformer_decoder_forward.19} parent=1 // pred_fallthru
      _
    // Predicated region
    $region54: #{torch_transformer_decoder_forward.19} parent=1 // pred_check
      _
    $region55: #{torch_transformer_decoder_forward.19} parent=1 // pred_check_branch
      %283 = sbr.rel (0) target = $region57
    $region56: #{torch_transformer_decoder_forward.19} parent=1 // pred_region
      %284 = dma.done [#allocation5], 256
    $region57: #{torch_transformer_decoder_forward.19} parent=1 // pred_fallthru
      _
    %285 = vsyncpa [#allocation4], 1
    %286 = vsyncpa [#allocation7], 1
    %287 = vsyncpa [#allocation10], 1
    %288 = vsyncpa [#allocation5], 1

// kernel: torch_transformer_decoder_forward.27
$region0: #{torch_transformer_decoder_forward.27}
  #allocation0 [shape = 'u32[]', space=smem, size = 0x4, offset = 0x4, fixed_abs, tag = 'smem constant byte address 0x4 - core index']
  #allocation1 [shape = 'u32[144,128]{1,0:T(1,128)}', space=vmem, size = 0x12000, scoped, tag = 'internal scratch']
  #allocation2 [shape = 'f32[12,32]{1,0:T(8,128)}', space=vmem, size = 0x2000, scoped, tag = 'scratch operand']
  %s0 = inlined_call_operand.hbm [shape: bf16[12,32], index: 0, kind: input, shape index: {}]
  %s1 = inlined_call_operand.hbm [shape: bf16[32,32], index: 1, kind: input, shape index: {}]
  %s2 = inlined_call_operand.hbm [shape: f32[1,32], index: 2, kind: input, shape index: {}]
  %s3 = inlined_call_operand.hbm [shape: f32[12,32], index: 3, kind: output, shape index: {}]
  %s4 = sld [smem:[#allocation0]]
  $region42: #{torch_transformer_decoder_forward.27} parent=0
    _
  %s6 = ssub.s32 1, %s4
  %s7 = scalar_select 0, %s6, %s4
  $region1: #{torch_transformer_decoder_forward.27} parent=0
    #allocation3 [shape = 'u8[4096]{0}', space=vmem, size = 0x1000, scoped, tag = 'input window, operand 0, single buffered']
    #allocation4 [shape = 's32[1]{0}', space=sflag, size = 0x4, scoped, tag = 'scoped memory for torch_transformer_decoder_forward.27']
    #allocation5 [shape = 's32[1]{0}', space=sflag, size = 0x4, scoped, tag = 'scoped memory for torch_transformer_decoder_forward.27']
    #allocation6 [shape = 'u8[8192]{0}', space=vmem, size = 0x2000, scoped, tag = 'input window, operand 1, single buffered']
    #allocation7 [shape = 's32[1]{0}', space=sflag, size = 0x4, scoped, tag = 'scoped memory for torch_transformer_decoder_forward.27']
    #allocation8 [shape = 'u8[512]{0}', space=vmem, size = 0x400, scoped, tag = 'input window, operand 2, single buffered']
    #allocation9 [shape = 'u8[8192]{0}', space=vmem, size = 0x2000, scoped, tag = 'output window, operand 0, single buffered']
    %8 = vsyncpa [#allocation4], 0
    %9 = vsyncpa [#allocation7], 0
    %10 = vsyncpa [#allocation5], 0
    // Predicated region
    $region2: #{torch_transformer_decoder_forward.27} parent=1 // pred_check
      _
    $region3: #{torch_transformer_decoder_forward.27} parent=1 // pred_check_branch
      %12 = sbr.rel (0) target = $region5
    $region4: #{torch_transformer_decoder_forward.27} parent=1 // pred_region
      %s14 = ssub.s32 128, 128
      %15 = vsyncadd [#allocation4], %s14
      %s16 = sshll.u32 [#allocation3], 4
      %s17 = int_to_ptr.vmem [resolvable:$true] %s16
      %22 = dma.hbm_to_vmem [thread:$0]  %s0, 128, %s17, [#allocation4], 64, 64, 4
    $region5: #{torch_transformer_decoder_forward.27} parent=1 // pred_fallthru
      _
    // Predicated region
    $region6: #{torch_transformer_decoder_forward.27} parent=1 // pred_check
      _
    $region7: #{torch_transformer_decoder_forward.27} parent=1 // pred_check_branch
      %24 = sbr.rel (0) target = $region9
    $region8: #{torch_transformer_decoder_forward.27} parent=1 // pred_region
      %s26 = ssub.s32 256, 256
      %27 = vsyncadd [#allocation7], %s26
      %s28 = sshll.u32 [#allocation6], 4
      %s29 = int_to_ptr.vmem [resolvable:$true] %s28
      %34 = dma.hbm_to_vmem [thread:$0]  %s1, 256, %s29, [#allocation7], 64, 64, 4
    $region9: #{torch_transformer_decoder_forward.27} parent=1 // pred_fallthru
      _
    // Predicated region
    $region10: #{torch_transformer_decoder_forward.27} parent=1 // pred_check
      _
    $region11: #{torch_transformer_decoder_forward.27} parent=1 // pred_check_branch
      %36 = sbr.rel (0) target = $region13
    $region12: #{torch_transformer_decoder_forward.27} parent=1 // pred_region
      %s38 = ssub.s32 16, 16
      %39 = vsyncadd [#allocation7], %s38
      %s41 = sshll.u32 [#allocation8], 4
      %s42 = int_to_ptr.vmem [resolvable:$true] %s41
      %44 = dma.hbm_to_vmem [thread:$0]  %s2, 16, %s42, [#allocation7]
    $region13: #{torch_transformer_decoder_forward.27} parent=1 // pred_fallthru
      _
    // Predicated region
    $region14: #{torch_transformer_decoder_forward.27} parent=1 // pred_check
      _
    $region15: #{torch_transformer_decoder_forward.27} parent=1 // pred_check_branch
      %46 = sbr.rel (0) target = $region17
    $region16: #{torch_transformer_decoder_forward.27} parent=1 // pred_region
      %47 = dma.done [#allocation4], 128
    $region17: #{torch_transformer_decoder_forward.27} parent=1 // pred_fallthru
      _
    // Predicated region
    $region18: #{torch_transformer_decoder_forward.27} parent=1 // pred_check
      _
    $region19: #{torch_transformer_decoder_forward.27} parent=1 // pred_check_branch
      %49 = sbr.rel (0) target = $region21
    $region20: #{torch_transformer_decoder_forward.27} parent=1 // pred_region
      %50 = dma.done [#allocation7], 256
    $region21: #{torch_transformer_decoder_forward.27} parent=1 // pred_fallthru
      _
    // Predicated region
    $region22: #{torch_transformer_decoder_forward.27} parent=1 // pred_check
      _
    $region23: #{torch_transformer_decoder_forward.27} parent=1 // pred_check_branch
      %52 = sbr.rel (0) target = $region25
    $region24: #{torch_transformer_decoder_forward.27} parent=1 // pred_region
      %53 = dma.done [#allocation7], 16
    $region25: #{torch_transformer_decoder_forward.27} parent=1 // pred_fallthru
      _
    %p55 = scmp.eq.s32.totalorder 0, 0
    // Predicated region
    $region26: #{torch_transformer_decoder_forward.27} parent=1 // pred_check
      %p56 = pneg %p55
    $region27: #{torch_transformer_decoder_forward.27} parent=1 // pred_check_branch
      %58 = sbr.rel (%p56) target = $region29
    $region28: #{torch_transformer_decoder_forward.27} parent=1 // pred_region
      %vm59 = vcmask 261120
      %60 = vst.msk [vmem:[#allocation2] sm:$0xff] %vm59, 0.0
      %vm61 = vcmask 257024
      %62 = vst.msk [vmem:[#allocation2 + $0x8] sm:$0xf] %vm61, 0.0
    $region29: #{torch_transformer_decoder_forward.27} parent=1 // pred_fallthru
      _
    %v63 = vld [vmem:[#allocation2] sm:$0xff]
    %v64 = vld [vmem:[#allocation2 + $0x8] sm:$0xf]
    %v65 = vld [vmem:[#allocation3] sm:$0xf]
    %v66 = vld [vmem:[#allocation3 + $0x4] sm:$0x3]
    %v67 = vld [vmem:[#allocation6] sm:$0xf]
    %v68 = vld [vmem:[#allocation6 + $0x4] sm:$0xf]
    %v69 = vld [vmem:[#allocation6 + $0x8] sm:$0xf]
    %v70 = vld [vmem:[#allocation6 + $0xc] sm:$0xf]
    %v73 = vunpack.c.l.b16 %v65
    %v74 = vunpack.c.l.b16 %v66
    %v75 = vpack.c.b16 %v74, %v73
    %v80 = vunpack.c.l.b16 %v67
    %v81 = vunpack.c.l.b16 %v68
    %v82 = vunpack.c.l.b16 %v69
    %v83 = vunpack.c.l.b16 %v70
    %v84 = vpack.c.b16 %v81, %v80
    %v85 = vpack.c.b16 %v83, %v82
    %vm88 = vcmask 261120
    %v90 = vsel %vm88, %v75, 0
    %92 = vmatprep.subr.bf16.mxu0 0
    %93 = vmatpush1.bf16.msra.mxu0 %v84
    %94 = vmatprep.subr.bf16.mxu0 0
    %95 = vmatpush1.bf16.msra.mxu0 %v85
    %96 = vmatprep.subr.bf16.mxu0 0
    %97 = vmatpush1.bf16.msra.mxu0 0
    %98 = vmatprep.subr.bf16.mxu0 0
    %99 = vmatpush1.bf16.msra.mxu0 0
    %100 = vmatprep.subr.bf16.mxu0 0
    %101 = vmatpush1.bf16.msra.mxu0 0
    %102 = vmatprep.subr.bf16.mxu0 0
    %103 = vmatpush1.bf16.msra.mxu0 0
    %104 = vmatprep.subr.bf16.mxu0 0
    %105 = vmatpush1.bf16.msra.mxu0 0
    %106 = vmatprep.subr.bf16.mxu0 0
    %107 = vmatpush1.bf16.msra.mxu0 0
    %108 = vmatprep.subr.bf16.mxu0 0
    %109 = vmatpush1.bf16.msra.mxu0 0
    %110 = vmatprep.subr.bf16.mxu0 0
    %111 = vmatpush1.bf16.msra.mxu0 0
    %112 = vmatprep.subr.bf16.mxu0 0
    %113 = vmatpush1.bf16.msra.mxu0 0
    %114 = vmatprep.subr.bf16.mxu0 0
    %115 = vmatpush1.bf16.msra.mxu0 0
    %116 = vmatprep.subr.bf16.mxu0 0
    %117 = vmatpush1.bf16.msra.mxu0 0
    %118 = vmatprep.subr.bf16.mxu0 0
    %119 = vmatpush1.bf16.msra.mxu0 0
    %120 = vmatprep.subr.bf16.mxu0 0
    %121 = vmatpush1.bf16.msra.mxu0 0
    %122 = vmatprep.subr.bf16.mxu0 0
    %123 = vmatpush1.bf16.msra.mxu0 0
    %124 = vmatprep.mubr.bf16.mxu0 0
    %125 = vmatmul.mubr.bf16.gmra.mrb[0].mxu0 %v90
    %v126 = vpop.f32.mrb[0].mxu0
    %v127 = vadd.f32 0.0, %v126
    %v128 = vpop.f32.mrb[0].mxu0
    %v129 = vpop.f32.mrb[0].mxu0
    %v130 = vadd.f32 0.0, %v129
    %v131 = vpop.f32.mrb[0].mxu0
    %132 = vdwg.mxu0
    %v133 = vadd.f32 %v63, %v127
    %v134 = vadd.f32 %v64, %v130
    %135 = vst.msk [vmem:[#allocation2] sm:$0xff] %vm88, %v133
    %vm136 = vcmask 257024
    %137 = vst.msk [vmem:[#allocation2 + $0x8] sm:$0xf] %vm136, %v134
    // Predicated region
    $region30: #{torch_transformer_decoder_forward.27} parent=1 // pred_check
      %p138 = pneg %p55
    $region31: #{torch_transformer_decoder_forward.27} parent=1 // pred_check_branch
      %140 = sbr.rel (%p138) target = $region33
    $region32: #{torch_transformer_decoder_forward.27} parent=1 // pred_region
      %v141 = vld [vmem:[#allocation2] sm:$0xff]
      %v142 = vld [vmem:[#allocation2 + $0x8] sm:$0xf]
      %v143 = vld [vmem:[#allocation8] sm:$0x1]
      %v145 = vlaneseq
      %v146 = vshrl.u32 %v145, 7
      %v147 = vsub.s32 0, %v146
      %v148 = vrot.slane %v143, %v147
      %v150 = vadd.f32 %v141, %v148
      %v151 = vadd.f32 %v142, %v148
      %152 = vst.msk [vmem:[#allocation9] sm:$0xff] %vm88, %v150
      %153 = vst.msk [vmem:[#allocation9 + $0x8] sm:$0xf] %vm136, %v151
    $region33: #{torch_transformer_decoder_forward.27} parent=1 // pred_fallthru
      _
    // Predicated region
    $region34: #{torch_transformer_decoder_forward.27} parent=1 // pred_check
      _
    $region35: #{torch_transformer_decoder_forward.27} parent=1 // pred_check_branch
      %155 = sbr.rel (0) target = $region37
    $region36: #{torch_transformer_decoder_forward.27} parent=1 // pred_region
      %s157 = ssub.s32 256, 256
      %158 = vsyncadd [#allocation5], %s157
      %s159 = sshll.u32 [#allocation9], 4
      %s160 = int_to_ptr.vmem [resolvable:$true] %s159
      %165 = dma.vmem_to_hbm [thread:$0]  %s160, 256, %s3, [#allocation5], 128, 128, 8
    $region37: #{torch_transformer_decoder_forward.27} parent=1 // pred_fallthru
      _
    // Predicated region
    $region38: #{torch_transformer_decoder_forward.27} parent=1 // pred_check
      _
    $region39: #{torch_transformer_decoder_forward.27} parent=1 // pred_check_branch
      %167 = sbr.rel (0) target = $region41
    $region40: #{torch_transformer_decoder_forward.27} parent=1 // pred_region
      %168 = dma.done [#allocation5], 256
    $region41: #{torch_transformer_decoder_forward.27} parent=1 // pred_fallthru
      _
    %169 = vsyncpa [#allocation4], 1
    %170 = vsyncpa [#allocation7], 1
    %171 = vsyncpa [#allocation5], 1

// kernel: torch_transformer_decoder_forward.29
$region0: #{torch_transformer_decoder_forward.29}
  #allocation0 [shape = 'u32[]', space=smem, size = 0x4, offset = 0x4, fixed_abs, tag = 'smem constant byte address 0x4 - core index']
  #allocation1 [shape = 'u32[144,128]{1,0:T(1,128)}', space=vmem, size = 0x12000, scoped, tag = 'internal scratch']
  %s0 = inlined_call_operand.hbm [shape: f32[2,6,32], index: 0, kind: input, shape index: {}]
  %s1 = inlined_call_operand.hbm [shape: f32[2,8,32], index: 1, kind: input, shape index: {}]
  %s2 = inlined_call_operand.hbm [shape: bf16[32,16], index: 2, kind: input, shape index: {}]
  %s3 = inlined_call_operand.hbm [shape: f32[2,6,8,16], index: 3, kind: output, shape index: {}]
  %s4 = sld [smem:[#allocation0]]
  $region57: #{torch_transformer_decoder_forward.29} parent=0
    _
  %s6 = ssub.s32 1, %s4
  %s7 = scalar_select 0, %s6, %s4
  $region1: #{torch_transformer_decoder_forward.29} parent=0
    #allocation2 [shape = 'u8[8192]{0}', space=vmem, size = 0x2000, scoped, tag = 'input window, operand 0']
    #allocation3 [shape = 's32[2]{0}', space=sflag, size = 0x8, scoped, tag = 'scoped memory for torch_transformer_decoder_forward.29']
    #allocation4 [shape = 's32[2]{0}', space=sflag, size = 0x8, scoped, tag = 'scoped memory for torch_transformer_decoder_forward.29']
    #allocation5 [shape = 'u8[8192]{0}', space=vmem, size = 0x2000, scoped, tag = 'input window, operand 1']
    #allocation6 [shape = 's32[2]{0}', space=sflag, size = 0x8, scoped, tag = 'scoped memory for torch_transformer_decoder_forward.29']
    #allocation7 [shape = 'u8[8192]{0}', space=vmem, size = 0x2000, scoped, tag = 'input window, operand 2, single buffered']
    #allocation8 [shape = 'u8[49152]{0}', space=vmem, size = 0xc000, scoped, tag = 'output window, operand 0']
    %8 = vsyncpa [#allocation3], 0
    %s9 = scalar_lea.sflag [#allocation3], 1
    %10 = vsyncpa %s9, 0
    %11 = vsyncpa [#allocation6], 0
    %s12 = scalar_lea.sflag [#allocation6], 1
    %13 = vsyncpa %s12, 0
    %14 = vsyncpa [#allocation4], 0
    %s15 = scalar_lea.sflag [#allocation4], 1
    %16 = vsyncpa %s15, 0
    loop: start=0, step=1, limit=4
    $region2: #{torch_transformer_decoder_forward.29} parent=1 // loop_pre_header
      _
    $region3: #{torch_transformer_decoder_forward.29} parent=1 // loop_header
      %s18 = sphi 0, %s22
      %p19 = scmp.ge.s32.totalorder %s18, 4
      %s25 = sphi 0, %s51
      %s26 = sphi 0, %s47
      %s27 = sphi 0, %s43
      %s28 = sphi 0, %s39
      %s29 = sphi 0, %s25
      %s30 = sphi 0, %s26
      %s31 = sphi 0, %s27
      %s32 = sphi 0, %s28
      %s33 = sphi 0, %s29
      %s34 = sphi 0, %s30
      %s35 = sphi 0, %s31
      %s36 = sphi 0, %s32
      %s56 = sphi 0, %s58
      %s59 = sphi 0, %s56
      %s60 = sphi 0, %s59
      %s76 = sphi 0, %s60
      %s84 = sphi 0, %s86
      %s87 = sphi 0, %s84
      %s88 = sphi 0, %s87
      %s104 = sphi 0, %s88
      %s110 = sphi 0, %s112
      %s113 = sphi 0, %s110
      %s114 = sphi 0, %s113
      %s130 = sphi 0, %s114
      %s142 = sphi 0, %s144
      %s145 = sphi 0, %s142
      %s146 = sphi 0, %s145
      %s162 = sphi 0, %s146
    $region4: #{torch_transformer_decoder_forward.29} parent=1 // loop_header_branch
      %21 = sbr.rel (%p19) target = $region8
    $region5: #{torch_transformer_decoder_forward.29} parent=1 // loop_body
      %s23 = ssub.s32 %s18, 1
      %s24 = ssub.s32 %s18, 2
      %s37 = sadd.s32 1, %s28
      %p38 = scmp.ge.s32.totalorder %s37, 1
      %s39 = scalar_select %p38, 0, %s37
      %s40 = sadd.s32 1, %s27
      %s41 = scalar_select %p38, %s40, %s27
      %p42 = scmp.ge.s32.totalorder %s41, 1
      %s43 = scalar_select %p42, 0, %s41
      %s44 = sadd.s32 1, %s26
      %s45 = scalar_select %p42, %s44, %s26
      %p46 = scmp.ge.s32.totalorder %s45, 1
      %s47 = scalar_select %p46, 0, %s45
      %s48 = sadd.s32 1, %s25
      %s49 = scalar_select %p46, %s48, %s25
      %p50 = scmp.ge.s32.totalorder %s49, 2
      %s51 = scalar_select %p50, 0, %s49
      %s52 = ssub.s32 %s25, %s51
      %s53 = ssub.s32 %s26, %s47
      %s54 = sor.u32 %s52, %s53
      %p55 = scmp.eq.s32.totalorder %s54, 0
      %s57 = sadd.s32 %s56, 1
      %s58 = scalar_select %p55, %s56, %s57
      %p61 = pneg %p55
      %p62 = scmp.eq.s32.totalorder %s18, 1
      %p63 = por %p61, %p62
      %p64 = scmp.ne.s32.totalorder %s56, %s59
      %p65 = scmp.eq.s32.totalorder %s18, 0
      %p66 = por %p64, %p65
      %p67 = scmp.ne.s32.totalorder %s56, %s59
      %p68 = scmp.eq.s32.totalorder %s23, 1
      %p69 = por %p67, %p68
      %p70 = scmp.ne.s32.totalorder %s59, %s60
      %p71 = scmp.eq.s32.totalorder %s23, 0
      %p72 = por %p70, %p71
      %p73 = scmp.ne.s32.totalorder %s59, %s60
      %p74 = scmp.eq.s32.totalorder %s24, 1
      %p75 = por %p73, %p74
      %p77 = scmp.ne.s32.totalorder %s60, %s76
      %p78 = scmp.eq.s32.totalorder %s24, 0
      %p79 = por %p77, %p78
      %s80 = ssub.s32 %s25, %s51
      %s81 = ssub.s32 %s27, %s43
      %s82 = sor.u32 %s80, %s81
      %p83 = scmp.eq.s32.totalorder %s82, 0
      %s85 = sadd.s32 %s84, 1
      %s86 = scalar_select %p83, %s84, %s85
      %p89 = pneg %p83
      %p90 = scmp.eq.s32.totalorder %s18, 1
      %p91 = por %p89, %p90
      %p92 = scmp.ne.s32.totalorder %s84, %s87
      %p93 = scmp.eq.s32.totalorder %s18, 0
      %p94 = por %p92, %p93
      %p95 = scmp.ne.s32.totalorder %s84, %s87
      %p96 = scmp.eq.s32.totalorder %s23, 1
      %p97 = por %p95, %p96
      %p98 = scmp.ne.s32.totalorder %s87, %s88
      %p99 = scmp.eq.s32.totalorder %s23, 0
      %p100 = por %p98, %p99
      %p101 = scmp.ne.s32.totalorder %s87, %s88
      %p102 = scmp.eq.s32.totalorder %s24, 1
      %p103 = por %p101, %p102
      %p105 = scmp.ne.s32.totalorder %s88, %s104
      %p106 = scmp.eq.s32.totalorder %s24, 0
      %p107 = por %p105, %p106
      %s108 = ssub.s32 %s28, %s39
      %p109 = scmp.eq.s32.totalorder %s108, 0
      %s111 = sadd.s32 %s110, 1
      %s112 = scalar_select %p109, %s110, %s111
      %p115 = pneg %p109
      %p116 = scmp.eq.s32.totalorder %s18, 1
      %p117 = por %p115, %p116
      %p118 = scmp.ne.s32.totalorder %s110, %s113
      %p119 = scmp.eq.s32.totalorder %s18, 0
      %p120 = por %p118, %p119
      %p121 = scmp.ne.s32.totalorder %s110, %s113
      %p122 = scmp.eq.s32.totalorder %s23, 1
      %p123 = por %p121, %p122
      %p124 = scmp.ne.s32.totalorder %s113, %s114
      %p125 = scmp.eq.s32.totalorder %s23, 0
      %p126 = por %p124, %p125
      %p127 = scmp.ne.s32.totalorder %s113, %s114
      %p128 = scmp.eq.s32.totalorder %s24, 1
      %p129 = por %p127, %p128
      %p131 = scmp.ne.s32.totalorder %s114, %s130
      %p132 = scmp.eq.s32.totalorder %s24, 0
      %p133 = por %p131, %p132
      %s134 = ssub.s32 %s25, %s51
      %s135 = ssub.s32 %s26, %s47
      %s136 = sor.u32 %s134, %s135
      %s137 = ssub.s32 %s27, %s43
      %s138 = sor.u32 %s136, %s137
      %s139 = ssub.s32 %s28, %s39
      %s140 = sor.u32 %s138, %s139
      %p141 = scmp.eq.s32.totalorder %s140, 0
      %s143 = sadd.s32 %s142, 1
      %s144 = scalar_select %p141, %s142, %s143
      %p147 = pneg %p141
      %p148 = scmp.eq.s32.totalorder %s18, 1
      %p149 = por %p147, %p148
      %p150 = scmp.ne.s32.totalorder %s142, %s145
      %p151 = scmp.eq.s32.totalorder %s18, 0
      %p152 = por %p150, %p151
      %p153 = scmp.ne.s32.totalorder %s142, %s145
      %p154 = scmp.eq.s32.totalorder %s23, 1
      %p155 = por %p153, %p154
      %p156 = scmp.ne.s32.totalorder %s145, %s146
      %p157 = scmp.eq.s32.totalorder %s23, 0
      %p158 = por %p156, %p157
      %p159 = scmp.ne.s32.totalorder %s145, %s146
      %p160 = scmp.eq.s32.totalorder %s24, 1
      %p161 = por %p159, %p160
      %p163 = scmp.ne.s32.totalorder %s146, %s162
      %p164 = scmp.eq.s32.totalorder %s24, 0
      %p165 = por %p163, %p164
      %p166 = scmp.le.s32.totalorder 1, %s18
      %p167 = scmp.lt.s32.totalorder %s18, 3
      %p168 = pnand %p166, %p167
      %p169 = pneg %p168
      // Predicated region
      $region9: #{torch_transformer_decoder_forward.29} parent=5 // pred_check
        _
      $region10: #{torch_transformer_decoder_forward.29} parent=5 // pred_check_branch
        %171 = sbr.rel (%p168) target = $region12
      $region11: #{torch_transformer_decoder_forward.29} parent=5 // pred_region
        %s172 = ssub.s32 %s18, 1
        // Predicated region
        $region13: #{torch_transformer_decoder_forward.29} parent=11 // pred_check
          %p173 = pneg %p126
        $region14: #{torch_transformer_decoder_forward.29} parent=11 // pred_check_branch
          %175 = sbr.rel (%p173) target = $region16
        $region15: #{torch_transformer_decoder_forward.29} parent=11 // pred_region
          %s177 = ssub.s32 256, 256
          %178 = vsyncadd [#allocation6], %s177
          %s179 = smul.addr %s32, 64
          %s180 = scalar_lea.hbm %s2, %s179
          %s181 = sshll.u32 [#allocation7], 4
          %s182 = int_to_ptr.vmem [resolvable:$true] %s181
          %187 = dma.hbm_to_vmem [thread:$0]  %s180, 256, %s182, [#allocation6], 64, 64, 4
        $region16: #{torch_transformer_decoder_forward.29} parent=11 // pred_fallthru
          _
      $region12: #{torch_transformer_decoder_forward.29} parent=5 // pred_fallthru
        _
      %p188 = scmp.lt.s32.totalorder %s18, 2
      // Predicated region
      $region17: #{torch_transformer_decoder_forward.29} parent=5 // pred_check
        %p189 = pneg %p188
      $region18: #{torch_transformer_decoder_forward.29} parent=5 // pred_check_branch
        %191 = sbr.rel (%p189) target = $region20
      $region19: #{torch_transformer_decoder_forward.29} parent=5 // pred_region
        // Predicated region
        $region21: #{torch_transformer_decoder_forward.29} parent=19 // pred_check
          %p192 = pneg %p66
        $region22: #{torch_transformer_decoder_forward.29} parent=19 // pred_check_branch
          %194 = sbr.rel (%p192) target = $region24
        $region23: #{torch_transformer_decoder_forward.29} parent=19 // pred_region
          %s195 = sand.u32 %s56, 1
          %s196 = scalar_lea.sflag [#allocation3], %s195
          %s197 = sand.u32 %s56, 1
          %s198 = smul.addr %s197, 8
          %s199 = scalar_lea.vmem [#allocation2], %s198
          %s201 = ssub.s32 128, 128
          %202 = vsyncadd %s196, %s201
          %s203 = sadd.s32 %s26, %s25
          %s204 = smul.addr %s203, 128
          %s205 = scalar_lea.hbm %s0, %s204
          %s207 = sshll.u32 %s199, 4
          %s208 = int_to_ptr.vmem [resolvable:$true] %s207
          %210 = dma.hbm_to_vmem [thread:$0]  %s205, 128, %s208, %s196
        $region24: #{torch_transformer_decoder_forward.29} parent=19 // pred_fallthru
          _
        // Predicated region
        $region25: #{torch_transformer_decoder_forward.29} parent=19 // pred_check
          %p211 = pneg %p94
        $region26: #{torch_transformer_decoder_forward.29} parent=19 // pred_check_branch
          %213 = sbr.rel (%p211) target = $region28
        $region27: #{torch_transformer_decoder_forward.29} parent=19 // pred_region
          %s214 = sand.u32 %s18, 1
          %s215 = scalar_lea.sflag [#allocation6], %s214
          %s216 = sand.u32 %s84, 1
          %s217 = smul.addr %s216, 8
          %s218 = scalar_lea.vmem [#allocation5], %s217
          %s220 = ssub.s32 128, 128
          %221 = vsyncadd %s215, %s220
          %s222 = sadd.s32 %s27, %s25
          %s223 = smul.addr %s222, 128
          %s224 = scalar_lea.hbm %s1, %s223
          %s226 = sshll.u32 %s218, 4
          %s227 = int_to_ptr.vmem [resolvable:$true] %s226
          %229 = dma.hbm_to_vmem [thread:$0]  %s224, 128, %s227, %s215
        $region28: #{torch_transformer_decoder_forward.29} parent=19 // pred_fallthru
          _
      $region20: #{torch_transformer_decoder_forward.29} parent=5 // pred_fallthru
        _
      %p230 = scmp.le.s32.totalorder 1, %s18
      %p231 = scmp.lt.s32.totalorder %s18, 3
      %p232 = pnand %p230, %p231
      %p233 = pneg %p232
      // Predicated region
      $region29: #{torch_transformer_decoder_forward.29} parent=5 // pred_check
        _
      $region30: #{torch_transformer_decoder_forward.29} parent=5 // pred_check_branch
        %235 = sbr.rel (%p232) target = $region32
      $region31: #{torch_transformer_decoder_forward.29} parent=5 // pred_region
        %s236 = ssub.s32 %s18, 1
        %s237 = sand.u32 %s59, 1
        %s238 = scalar_lea.sflag [#allocation3], %s237
        %s239 = sand.u32 %s59, 1
        %s240 = smul.addr %s239, 8
        %s241 = scalar_lea.vmem [#allocation2], %s240
        // Predicated region
        $region33: #{torch_transformer_decoder_forward.29} parent=31 // pred_check
          %p242 = pneg %p72
        $region34: #{torch_transformer_decoder_forward.29} parent=31 // pred_check_branch
          %244 = sbr.rel (%p242) target = $region36
        $region35: #{torch_transformer_decoder_forward.29} parent=31 // pred_region
          %245 = dma.done %s238, 128
        $region36: #{torch_transformer_decoder_forward.29} parent=31 // pred_fallthru
          _
        %s246 = sand.u32 %s23, 1
        %s247 = scalar_lea.sflag [#allocation6], %s246
        %s248 = sand.u32 %s87, 1
        %s249 = smul.addr %s248, 8
        %s250 = scalar_lea.vmem [#allocation5], %s249
        // Predicated region
        $region37: #{torch_transformer_decoder_forward.29} parent=31 // pred_check
          %p251 = pneg %p100
        $region38: #{torch_transformer_decoder_forward.29} parent=31 // pred_check_branch
          %253 = sbr.rel (%p251) target = $region40
        $region39: #{torch_transformer_decoder_forward.29} parent=31 // pred_region
          %254 = dma.done %s247, 128
        $region40: #{torch_transformer_decoder_forward.29} parent=31 // pred_fallthru
          _
        // Predicated region
        $region41: #{torch_transformer_decoder_forward.29} parent=31 // pred_check
          %p255 = pneg %p126
        $region42: #{torch_transformer_decoder_forward.29} parent=31 // pred_check_branch
          %257 = sbr.rel (%p255) target = $region44
        $region43: #{torch_transformer_decoder_forward.29} parent=31 // pred_region
          %258 = dma.done [#allocation6], 256
        $region44: #{torch_transformer_decoder_forward.29} parent=31 // pred_fallthru
          _
        %s259 = sand.u32 %s59, 1
        %s260 = scalar_lea.sflag [#allocation3], %s259
        %s261 = sand.u32 %s59, 1
        %s262 = smul.addr %s261, 8
        %s263 = scalar_lea.vmem [#allocation2], %s262
        %p264 = pneg %p72
        %p265 = pneg %p69
        %s266 = sand.u32 %s23, 1
        %s267 = scalar_lea.sflag [#allocation6], %s266
        %s268 = sand.u32 %s87, 1
        %s269 = smul.addr %s268, 8
        %s270 = scalar_lea.vmem [#allocation5], %s269
        %p271 = pneg %p100
        %p272 = pneg %p97
        %p273 = pneg %p126
        %p274 = pneg %p123
        %p275 = pneg %p158
        %p276 = pneg %p155
        %s277 = sand.u32 %s145, 1
        %s278 = scalar_lea.sflag [#allocation4], %s277
        %s279 = sand.u32 %s145, 1
        %s280 = smul.addr %s279, 48
        %s281 = scalar_lea.vmem [#allocation8], %s280
        %s282 = smul.u32 6, %s30
        %v284 = vld [vmem:[%s241] sm:$0x3f]
        %v285 = vld [vmem:[%s250] sm:$0xff]
        %v287 = vcombine.high %v284, %v284
        %v289 = vunpack.c.l.s4 1966171168
        %v290 = vunpack.c.0.s8 %v289
        %v291 = vlaneseq
        %v292 = vshrl.u32 %v291, 7
        %v293 = vsub.s32 %v290, %v292
        %v294 = vrot.slane %v284, %v293
        %v296 = vunpack.c.l.s4 1966171168
        %v297 = vunpack.c.0.s8 %v296
        %v298 = vlaneseq
        %v299 = vshrl.u32 %v298, 7
        %v300 = vsub.s32 %v297, %v299
        %v301 = vrot.slane %v287, %v300
        %v302 = vcombine.high %v294, %v294
        %v303 = vcombine.high %v301, %v301
        %v305 = vunpack.c.l.s4 1966171168
        %v306 = vunpack.c.0.s8 %v305
        %v307 = vlaneseq
        %v308 = vshrl.u32 %v307, 7
        %v309 = vsub.s32 %v306, %v308
        %v310 = vrot.slane %v294, %v309
        %v312 = vunpack.c.l.s4 1966171168
        %v313 = vunpack.c.0.s8 %v312
        %v314 = vlaneseq
        %v315 = vshrl.u32 %v314, 7
        %v316 = vsub.s32 %v313, %v315
        %v317 = vrot.slane %v301, %v316
        %v319 = vunpack.c.l.s4 1966171168
        %v320 = vunpack.c.0.s8 %v319
        %v321 = vlaneseq
        %v322 = vshrl.u32 %v321, 7
        %v323 = vsub.s32 %v320, %v322
        %v324 = vrot.slane %v302, %v323
        %v326 = vunpack.c.l.s4 1966171168
        %v327 = vunpack.c.0.s8 %v326
        %v328 = vlaneseq
        %v329 = vshrl.u32 %v328, 7
        %v330 = vsub.s32 %v327, %v329
        %v331 = vrot.slane %v303, %v330
        %v332 = vcombine.high %v310, %v310
        %v333 = vcombine.high %v324, %v324
        %v334 = vlaneseq
        %v335 = vshrl.u32 %v334, 7
        %v336 = vsub.s32 0, %v335
        %v337 = vrot.slane %v310, %v336
        %v338 = vlaneseq
        %v339 = vshrl.u32 %v338, 7
        %v340 = vsub.s32 0, %v339
        %v341 = vrot.slane %v324, %v340
        %v342 = vlaneseq
        %v343 = vshrl.u32 %v342, 7
        %v344 = vsub.s32 0, %v343
        %v345 = vrot.slane %v332, %v344
        %v346 = vlaneseq
        %v347 = vshrl.u32 %v346, 7
        %v348 = vsub.s32 0, %v347
        %v349 = vrot.slane %v333, %v348
        %v350 = vlaneseq
        %v351 = vshrl.u32 %v350, 7
        %v352 = vsub.s32 0, %v351
        %v353 = vrot.slane %v317, %v352
        %v354 = vlaneseq
        %v355 = vshrl.u32 %v354, 7
        %v356 = vsub.s32 0, %v355
        %v357 = vrot.slane %v331, %v356
        %v364 = vadd.f32 %v337, %v285
        %v365 = vadd.f32 %v341, %v285
        %v366 = vadd.f32 %v345, %v285
        %v367 = vadd.f32 %v349, %v285
        %v368 = vadd.f32 %v353, %v285
        %v369 = vadd.f32 %v357, %v285
        %v370 = vtanh.pop %v364
        %v371 = vtanh.pop %v365
        %v372 = vtanh.pop %v366
        %v373 = vtanh.pop %v367
        %v374 = vtanh.pop %v368
        %v375 = vtanh.pop %v369
        %v376 = vpack.c.bf16 %v370, %v370
        %v377 = vpack.c.bf16 %v371, %v371
        %v378 = vpack.c.bf16 %v372, %v372
        %v379 = vpack.c.bf16 %v373, %v373
        %v380 = vpack.c.bf16 %v374, %v374
        %v381 = vpack.c.bf16 %v375, %v375
        %v382 = vld [vmem:[#allocation7] sm:$0xf]
        %v383 = vld [vmem:[#allocation7 + $0x4] sm:$0xf]
        %v384 = vld [vmem:[#allocation7 + $0x8] sm:$0xf]
        %v385 = vld [vmem:[#allocation7 + $0xc] sm:$0xf]
        %v392 = vunpack.c.l.b16 %v376
        %v393 = vunpack.c.l.b16 %v377
        %v394 = vunpack.c.l.b16 %v378
        %v395 = vunpack.c.l.b16 %v379
        %v396 = vunpack.c.l.b16 %v380
        %v397 = vunpack.c.l.b16 %v381
        %v398 = vpack.c.b16 %v393, %v392
        %v399 = vpack.c.b16 %v395, %v394
        %v400 = vpack.c.b16 %v397, %v396
        %v405 = vunpack.c.l.b16 %v382
        %v406 = vunpack.c.l.b16 %v383
        %v407 = vunpack.c.l.b16 %v384
        %v408 = vunpack.c.l.b16 %v385
        %v409 = vpack.c.b16 %v406, %v405
        %v410 = vpack.c.b16 %v408, %v407
        %vm413 = vcmask 261120
        %v415 = vsel %vm413, %v398, 0
        %v418 = vsel %vm413, %v399, 0
        %v421 = vsel %vm413, %v400, 0
        %423 = vmatprep.subr.bf16.mxu0 0
        %424 = vmatpush1.bf16.msra.mxu0 %v409
        %425 = vmatprep.subr.bf16.mxu0 0
        %426 = vmatpush1.bf16.msra.mxu0 %v410
        %427 = vmatprep.subr.bf16.mxu0 0
        %428 = vmatpush1.bf16.msra.mxu0 0
        %429 = vmatprep.subr.bf16.mxu0 0
        %430 = vmatpush1.bf16.msra.mxu0 0
        %431 = vmatprep.subr.bf16.mxu0 0
        %432 = vmatpush1.bf16.msra.mxu0 0
        %433 = vmatprep.subr.bf16.mxu0 0
        %434 = vmatpush1.bf16.msra.mxu0 0
        %435 = vmatprep.subr.bf16.mxu0 0
        %436 = vmatpush1.bf16.msra.mxu0 0
        %437 = vmatprep.subr.bf16.mxu0 0
        %438 = vmatpush1.bf16.msra.mxu0 0
        %439 = vmatprep.subr.bf16.mxu0 0
        %440 = vmatpush1.bf16.msra.mxu0 0
        %441 = vmatprep.subr.bf16.mxu0 0
        %442 = vmatpush1.bf16.msra.mxu0 0
        %443 = vmatprep.subr.bf16.mxu0 0
        %444 = vmatpush1.bf16.msra.mxu0 0
        %445 = vmatprep.subr.bf16.mxu0 0
        %446 = vmatpush1.bf16.msra.mxu0 0
        %447 = vmatprep.subr.bf16.mxu0 0
        %448 = vmatpush1.bf16.msra.mxu0 0
        %449 = vmatprep.subr.bf16.mxu0 0
        %450 = vmatpush1.bf16.msra.mxu0 0
        %451 = vmatprep.subr.bf16.mxu0 0
        %452 = vmatpush1.bf16.msra.mxu0 0
        %453 = vmatprep.subr.bf16.mxu0 0
        %454 = vmatpush1.bf16.msra.mxu0 0
        %455 = vmatprep.mubr.bf16.mxu0 0
        %456 = vmatmul.mubr.bf16.gmra.mrb[0].mxu0 %v415
        %v457 = vpop.f32.mrb[0].mxu0
        %v458 = vadd.f32 0.0, %v457
        %v459 = vpop.f32.mrb[0].mxu0
        %v460 = vpop.f32.mrb[0].mxu0
        %v461 = vadd.f32 0.0, %v460
        %v462 = vpop.f32.mrb[0].mxu0
        %463 = vmatprep.mubr.bf16.mxu0 0
        %464 = vmatmul.mubr.bf16.gmra.mrb[0].mxu0 %v418
        %v465 = vpop.f32.mrb[0].mxu0
        %v466 = vadd.f32 0.0, %v465
        %v467 = vpop.f32.mrb[0].mxu0
        %v468 = vpop.f32.mrb[0].mxu0
        %v469 = vadd.f32 0.0, %v468
        %v470 = vpop.f32.mrb[0].mxu0
        %471 = vmatprep.mubr.bf16.mxu0 0
        %472 = vmatmul.mubr.bf16.gmra.mrb[0].mxu0 %v421
        %v473 = vpop.f32.mrb[0].mxu0
        %v474 = vadd.f32 0.0, %v473
        %v475 = vpop.f32.mrb[0].mxu0
        %v476 = vpop.f32.mrb[0].mxu0
        %v477 = vadd.f32 0.0, %v476
        %v478 = vpop.f32.mrb[0].mxu0
        %479 = vdwg.mxu0
        %vm480 = vcmask 130048
        %481 = vst.msk [vmem:[%s281] sm:$0xff] %vm480, %v458
        %482 = vst.msk [vmem:[%s281 + $0x8] sm:$0xff] %vm480, %v461
        %483 = vst.msk [vmem:[%s281 + $0x10] sm:$0xff] %vm480, %v466
        %484 = vst.msk [vmem:[%s281 + $0x18] sm:$0xff] %vm480, %v469
        %485 = vst.msk [vmem:[%s281 + $0x20] sm:$0xff] %vm480, %v474
        %486 = vst.msk [vmem:[%s281 + $0x28] sm:$0xff] %vm480, %v477
        %s487 = sand.u32 %s145, 1
        %s488 = scalar_lea.sflag [#allocation4], %s487
        %s489 = sand.u32 %s145, 1
        %s490 = smul.addr %s489, 48
        %s491 = scalar_lea.vmem [#allocation8], %s490
        // Predicated region
        $region45: #{torch_transformer_decoder_forward.29} parent=31 // pred_check
          %p492 = pneg %p155
        $region46: #{torch_transformer_decoder_forward.29} parent=31 // pred_check_branch
          %494 = sbr.rel (%p492) target = $region48
        $region47: #{torch_transformer_decoder_forward.29} parent=31 // pred_region
          %s495 = smul.u32 6, %s30
          %s497 = ssub.s32 768, 768
          %498 = vsyncadd %s488, %s497
          %s499 = sadd.s32 %s32, %s31
          %s500 = sadd.s32 %s499, %s495
          %s501 = smul.addr %s29, 6
          %s502 = sadd.s32 %s500, %s501
          %s503 = smul.addr %s502, 128
          %s504 = scalar_lea.hbm %s3, %s503
          %s505 = sshll.u32 %s491, 4
          %s506 = int_to_ptr.vmem [resolvable:$true] %s505
          %511 = dma.vmem_to_hbm [thread:$0]  %s506, 768, %s504, %s488, 128, 128, 8
        $region48: #{torch_transformer_decoder_forward.29} parent=31 // pred_fallthru
          _
      $region32: #{torch_transformer_decoder_forward.29} parent=5 // pred_fallthru
        _
      %p512 = scmp.le.s32.totalorder 2, %s18
      // Predicated region
      $region49: #{torch_transformer_decoder_forward.29} parent=5 // pred_check
        %p513 = pneg %p512
      $region50: #{torch_transformer_decoder_forward.29} parent=5 // pred_check_branch
        %515 = sbr.rel (%p513) target = $region52
      $region51: #{torch_transformer_decoder_forward.29} parent=5 // pred_region
        %s516 = ssub.s32 %s18, 2
        // Predicated region
        $region53: #{torch_transformer_decoder_forward.29} parent=51 // pred_check
          %p517 = pneg %p161
        $region54: #{torch_transformer_decoder_forward.29} parent=51 // pred_check_branch
          %519 = sbr.rel (%p517) target = $region56
        $region55: #{torch_transformer_decoder_forward.29} parent=51 // pred_region
          %s520 = sand.u32 %s146, 1
          %s521 = scalar_lea.sflag [#allocation4], %s520
          %s522 = sand.u32 %s146, 1
          %s523 = smul.addr %s522, 48
          %s524 = scalar_lea.vmem [#allocation8], %s523
          %525 = dma.done %s521, 768
        $region56: #{torch_transformer_decoder_forward.29} parent=51 // pred_fallthru
          _
      $region52: #{torch_transformer_decoder_forward.29} parent=5 // pred_fallthru
        _
    $region6: #{torch_transformer_decoder_forward.29} parent=1 // loop_footer
      %s22 = sadd.s32 1, %s18
    $region7: #{torch_transformer_decoder_forward.29} parent=1 // loop_footer_branch
      %17 = sbr.rel target = $region3
    $region8: #{torch_transformer_decoder_forward.29} parent=1 // loop_exit
      _
    %526 = vsyncpa [#allocation3], 1
    %s527 = scalar_lea.sflag [#allocation3], 1
    %528 = vsyncpa %s527, 1
    %529 = vsyncpa [#allocation6], 1
    %s530 = scalar_lea.sflag [#allocation6], 1
    %531 = vsyncpa %s530, 1
    %532 = vsyncpa [#allocation4], 1
    %s533 = scalar_lea.sflag [#allocation4], 1
    %534 = vsyncpa %s533, 1

</llo_original>
